<compile_context>
chip_gen: v7x
topology: tpu7x:2x2x1
jax: 0.10.0
libtpu: 0.0.40
codegen_flags: <defaults>
</compile_context>

<pallas_src>
import functools

import jax
import jax.numpy as jnp
from jax.experimental import pallas as pl
from jax.experimental.pallas import tpu as pltpu

C_PAD = 128  # channel dim padded to a full lane group -> contiguous x DMAs


# ----------------------------------------------------------------------------
# Kernel 1: per-point MLP.  Raw (pre-bias) layer-3 activations are max-reduced
# over the point tile; bias3 + ReLU are applied once per batch at the final
# tile (they commute with the max).  Grid = (batch, n_tiles), n innermost.
# ----------------------------------------------------------------------------
def _point_mlp_kernel(x_ref,
                      w1_ref, b1_ref,
                      w2_ref, b2_ref,
                      w3_ref, b3_ref,
                      out_ref,
                      acc_ref,
                      *, n_valid, n_tile, masked):
    n_idx = pl.program_id(1)
    last = pl.num_programs(1) - 1

    @pl.when(n_idx == 0)
    def _():
        acc_ref[...] = jnp.full_like(acc_ref, -jnp.inf)

    x = x_ref[0]                                                       # (n_tile, 128) bf16
    h = jnp.dot(x, w1_ref[...], preferred_element_type=jnp.float32)    # (n_tile, 64)
    h = jnp.maximum(h + b1_ref[...], 0.0)
    h = jnp.dot(h.astype(jnp.bfloat16), w2_ref[...],
                preferred_element_type=jnp.float32)                    # (n_tile, 128)
    h = jnp.maximum(h + b2_ref[...], 0.0)
    h = jnp.dot(h.astype(jnp.bfloat16), w3_ref[...],
                preferred_element_type=jnp.float32)                    # (n_tile, 1024) RAW

    if masked:  # static: only emitted when N was padded up to a tile multiple
        @pl.when(n_idx == last)
        def _():
            row = jax.lax.broadcasted_iota(jnp.int32, (n_tile, 1), 0)
            valid = (n_idx * n_tile + row) < n_valid
            hm = jnp.where(valid, h, -jnp.inf)
            acc_ref[...] = jnp.maximum(acc_ref[...],
                                       jnp.max(hm, axis=0, keepdims=True))

        @pl.when(n_idx != last)
        def _():
            acc_ref[...] = jnp.maximum(acc_ref[...],
                                       jnp.max(h, axis=0, keepdims=True))
    else:
        acc_ref[...] = jnp.maximum(acc_ref[...],
                                   jnp.max(h, axis=0, keepdims=True))

    @pl.when(n_idx == last)
    def _():
        # bias3 + ReLU hoisted past the max; write the pooled row once per batch.
        pooled = jnp.maximum(acc_ref[...] + b3_ref[...], 0.0)          # (1, 1024)
        out_ref[...] = pooled[None]                                    # (1, 1, 1024)


# ----------------------------------------------------------------------------
# Kernel 2: fully-connected head
#   relu(g@w4+b4) -> relu(@w5+b5) -> @w6 + (bias6 + identity), lane-dense out.
# ----------------------------------------------------------------------------
def _fc_head_kernel(g_ref,
                    w4_ref, b4_ref,
                    w5_ref, b5_ref,
                    w6_ref, b6_ref,
                    out_ref):
    g = g_ref[...].astype(jnp.bfloat16)                                # (B_pad, 1024)
    h = jnp.dot(g, w4_ref[...], preferred_element_type=jnp.float32)    # (B_pad, 512)
    h = jnp.maximum(h + b4_ref[...], 0.0)
    h = jnp.dot(h.astype(jnp.bfloat16), w5_ref[...],
                preferred_element_type=jnp.float32)                    # (B_pad, 256)
    h = jnp.maximum(h + b5_ref[...], 0.0)
    h = jnp.dot(h.astype(jnp.bfloat16), w6_ref[...],
                preferred_element_type=jnp.float32)                    # (B_pad, 128)
    out_ref[...] = h + b6_ref[...]      # bias already includes identity; cols 9..127 unused


# ----------------------------------------------------------------------------
# Parameter construction (deterministic, synthetic).  BN running stats folded:
# scale into the weight columns, (bias - mean)*scale + beta into the bias.
# ----------------------------------------------------------------------------
def make_params(channel, key):
    ks = jax.random.split(key, 32)
    ki = iter(range(32))

    def conv_or_fc(cin, cout):
        w = jax.random.normal(ks[next(ki)], (cout, cin), jnp.float32) * 0.1
        b = jax.random.normal(ks[next(ki)], (cout,), jnp.float32) * 0.05
        return w, b

    def bn(c):
        gamma = 0.5 + jax.random.uniform(ks[next(ki)], (c,), jnp.float32)
        beta = jax.random.normal(ks[next(ki)], (c,), jnp.float32) * 0.1
        mean = jax.random.normal(ks[next(ki)], (c,), jnp.float32) * 0.1
        var = 0.5 + jax.random.uniform(ks[next(ki)], (c,), jnp.float32)
        return gamma, beta, mean, var

    eps = 1e-5

    def fold(w, b, bn_p, cin_pad=None):
        gamma, beta, mean, var = bn_p
        scale = gamma / jnp.sqrt(var + eps)
        bias = (b - mean) * scale + beta
        wf = jnp.transpose(w) * scale[None, :]                          # (cin, cout) f32
        if cin_pad is not None and cin_pad != wf.shape[0]:
            wf = jnp.pad(wf, ((0, cin_pad - wf.shape[0]), (0, 0)))      # zero rows: no-op
        return wf.astype(jnp.bfloat16), bias.reshape(1, -1).astype(jnp.float32)

    p = {}
    p['w1'], p['b1'] = fold(*conv_or_fc(channel, 64), bn(64), cin_pad=C_PAD)
    p['w2'], p['b2'] = fold(*conv_or_fc(64, 128), bn(128))
    p['w3'], p['b3'] = fold(*conv_or_fc(128, 1024), bn(1024))
    p['w4'], p['b4'] = fold(*conv_or_fc(1024, 512), bn(512))
    p['w5'], p['b5'] = fold(*conv_or_fc(512, 256), bn(256))

    # fc3: no BN; pad to 128 output lanes for a lane-dense store.
    w6, b6 = conv_or_fc(256, 9)
    iden = jnp.eye(3, dtype=jnp.float32).reshape(9)
    w6p = jnp.zeros((256, 128), jnp.float32).at[:, :9].set(jnp.transpose(w6))
    p['w6'] = w6p.astype(jnp.bfloat16)
    p['b6'] = jnp.zeros((1, 128), jnp.float32).at[0, :9].set(b6 + iden)
    return p


def _round_up(x, m):
    return ((x + m - 1) // m) * m


# ----------------------------------------------------------------------------
# Pallas wrapper.
# ----------------------------------------------------------------------------
@functools.partial(jax.jit, static_argnames=("n_tile_max",))
def stn3d_forward(x_ncw, p, n_tile_max=1024):
    B, C, N = x_ncw.shape
    assert N >= 1, "need at least one point per cloud"

    # NCW -> NWC, bf16, channel dim zero-padded to a full 128-lane group so the
    # per-tile x DMA is one contiguous lane-dense copy.
    x = jnp.transpose(x_ncw, (0, 2, 1)).astype(jnp.bfloat16)           # (B, N, C)

    # Point-axis tiling: default 1024-row tiles (safe on v7x's 64 MiB VMEM);
    # remainder handled by zero-pad + last-tile mask.
    if N <= n_tile_max:
        n_tile, n_pad = N, N
    else:
        assert n_tile_max % 8 == 0, "n_tile_max must be a multiple of 8"
        n_tile = n_tile_max
        n_pad = _round_up(N, n_tile)
    x = jnp.pad(x, ((0, 0), (0, n_pad - N), (0, C_PAD - C)))           # (B, n_pad, 128)
    num_n = n_pad // n_tile

    flops = 2 * B * n_pad * (C_PAD * 64 + 64 * 128 + 128 * 1024)
    bytes_accessed = (B * n_pad * C_PAD * 2
                      + (C_PAD * 64 + 64 * 128 + 128 * 1024) * 2
                      + (64 + 128 + 1024) * 4
                      + B * 1024 * 4)

    stage1_kernel = functools.partial(
        _point_mlp_kernel, n_valid=N, n_tile=n_tile, masked=(n_pad != N))

    # --- stage 1: point MLP + running max-pool over point tiles -------------
    pooled = pl.pallas_call(
        stage1_kernel,
        out_shape=jax.ShapeDtypeStruct((B, 1, 1024), jnp.float32),
        grid_spec=pltpu.PrefetchScalarGridSpec(
            num_scalar_prefetch=0,
            grid=(B, num_n),
            in_specs=[
                pl.BlockSpec((1, n_tile, C_PAD), lambda b, n: (b, n, 0)),
                pl.BlockSpec((C_PAD, 64), lambda b, n: (0, 0)),
                pl.BlockSpec((1, 64), lambda b, n: (0, 0)),
                pl.BlockSpec((64, 128), lambda b, n: (0, 0)),
                pl.BlockSpec((1, 128), lambda b, n: (0, 0)),
                pl.BlockSpec((128, 1024), lambda b, n: (0, 0)),
                pl.BlockSpec((1, 1024), lambda b, n: (0, 0)),
            ],
            out_specs=pl.BlockSpec((1, 1, 1024), lambda b, n: (b, 0, 0)),
            scratch_shapes=[pltpu.VMEM((1, 1024), jnp.float32)],
        ),
        compiler_params=pltpu.CompilerParams(
            dimension_semantics=("parallel", "arbitrary"),
            vmem_limit_bytes=32 * 1024 * 1024),
        cost_estimate=pl.CostEstimate(
            flops=flops, transcendentals=0, bytes_accessed=bytes_accessed),
    )(x, p['w1'], p['b1'], p['w2'], p['b2'], p['w3'], p['b3'])

    # --- stage 2: FC head (+ identity folded into bias), lane-dense output --
    g = pooled.reshape(B, 1024)
    B_pad = _round_up(B, 8)                       # sublane-dense blocks
    if B_pad != B:
        g = jnp.pad(g, ((0, B_pad - B), (0, 0)))

    fc_flops = 2 * B_pad * (1024 * 512 + 512 * 256 + 256 * 128)
    fc_bytes = ((1024 * 512 + 512 * 256 + 256 * 128) * 2
                + B_pad * 1024 * 4 + B_pad * 128 * 4)

    out128 = pl.pallas_call(
        _fc_head_kernel,
        out_shape=jax.ShapeDtypeStruct((B_pad, 128), jnp.float32),
        grid_spec=pltpu.PrefetchScalarGridSpec(
            num_scalar_prefetch=0,
            grid=(1,),
            in_specs=[
                pl.BlockSpec((B_pad, 1024), lambda i: (0, 0)),
                pl.BlockSpec((1024, 512), lambda i: (0, 0)),
                pl.BlockSpec((1, 512), lambda i: (0, 0)),
                pl.BlockSpec((512, 256), lambda i: (0, 0)),
                pl.BlockSpec((1, 256), lambda i: (0, 0)),
                pl.BlockSpec((256, 128), lambda i: (0, 0)),
                pl.BlockSpec((1, 128), lambda i: (0, 0)),
            ],
            out_specs=pl.BlockSpec((B_pad, 128), lambda i: (0, 0)),
        ),
        compiler_params=pltpu.CompilerParams(
            dimension_semantics=("arbitrary",),
            vmem_limit_bytes=32 * 1024 * 1024),
        cost_estimate=pl.CostEstimate(
            flops=fc_flops, transcendentals=0, bytes_accessed=fc_bytes),
    )(g, p['w4'], p['b4'], p['w5'], p['b5'], p['w6'], p['b6'])

    return out128[:B, :9].reshape(B, 3, 3)        # x.view(-1, 3, 3)


# ----------------------------------------------------------------------------
# Pure-JAX reference with the same bf16-input / f32-accumulate matmul math.
# (Applying bias3+ReLU before the max is value-identical to the hoisted form.)
# ----------------------------------------------------------------------------
def reference_forward(x_ncw, p):
    B, C, N = x_ncw.shape

    def mm(a, w):
        return jnp.dot(a.astype(jnp.bfloat16), w,
                       preferred_element_type=jnp.float32)

    x = jnp.transpose(x_ncw, (0, 2, 1))                       # (B, N, C)
    x = jnp.pad(x, ((0, 0), (0, 0), (0, C_PAD - C)))          # (B, N, 128)
    h = jnp.maximum(mm(x, p['w1']) + p['b1'], 0.0)
    h = jnp.maximum(mm(h, p['w2']) + p['b2'], 0.0)
    h = jnp.maximum(mm(h, p['w3']) + p['b3'], 0.0)
    g = jnp.max(h, axis=1)                                    # (B, 1024)
    f = jnp.maximum(mm(g, p['w4']) + p['b4'], 0.0)
    f = jnp.maximum(mm(f, p['w5']) + p['b5'], 0.0)
    o = mm(f, p['w6']) + p['b6']                              # (B, 128)
    return o[:, :9].reshape(B, 3, 3)


if __name__ == "__main__":
    key = jax.random.PRNGKey(0)
    k_param, k_x = jax.random.split(key)

    # Small NCW point cloud, like PyTorch Conv1d input (B, C, N).
    B, C, N = 2, 3, 80
    params = make_params(C, k_param)
    x = jax.random.normal(k_x, (B, C, N), jnp.float32)

    # n_tile_max=32 exercises point-axis tiling + the last-tile mask path even
    # at this small N (3 tiles, the last one partially padded).  Production use
    # keeps the default n_tile_max=1024.
    out = stn3d_forward(x, params, n_tile_max=32)
    out = jax.block_until_ready(out)

    ref = reference_forward(x, params)
    assert out.shape == (B, 3, 3)
    max_err = float(jnp.max(jnp.abs(out - ref)))
    assert jnp.allclose(out, ref, atol=1e-2, rtol=1e-2), \
        f"mismatch vs reference (max abs err {max_err})"

    print("KERNEL_OK")
</pallas_src>

<mosaic_0001>
module attributes {stable_mosaic.version = 11 : i64} {
  func.func @_point_mlp_kernel(%arg0: i32, %arg1: i32, %arg2: memref<1x32x128xbf16, #tpu.memory_space<vmem>>, %arg3: memref<128x64xbf16, #tpu.memory_space<vmem>>, %arg4: memref<1x64xf32, #tpu.memory_space<vmem>>, %arg5: memref<64x128xbf16, #tpu.memory_space<vmem>>, %arg6: memref<1x128xf32, #tpu.memory_space<vmem>>, %arg7: memref<128x1024xbf16, #tpu.memory_space<vmem>>, %arg8: memref<1x1024xf32, #tpu.memory_space<vmem>>, %arg9: memref<1x1x1024xf32, #tpu.memory_space<vmem>>, %arg10: memref<1x1024xf32, #tpu.memory_space<vmem>>) attributes {dimension_semantics = [#tpu.dimension_semantics<parallel>, #tpu.dimension_semantics<arbitrary>], iteration_bounds = array<i64: 2, 3>, scalar_prefetch = 0 : i64, scratch_operands = 1 : i64, tpu.core_type = #tpu.core_type<tc>, window_params = [{transform_indices = @transform_0, window_bounds = array<i64: 1, 32, 128>}, {pipeline_mode = #tpu.pipeline_mode<synchronous>, transform_indices = @transform_1, window_bounds = array<i64: 128, 64>}, {pipeline_mode = #tpu.pipeline_mode<synchronous>, transform_indices = @transform_2, window_bounds = array<i64: 1, 64>}, {pipeline_mode = #tpu.pipeline_mode<synchronous>, transform_indices = @transform_3, window_bounds = array<i64: 64, 128>}, {pipeline_mode = #tpu.pipeline_mode<synchronous>, transform_indices = @transform_4, window_bounds = array<i64: 1, 128>}, {pipeline_mode = #tpu.pipeline_mode<synchronous>, transform_indices = @transform_5, window_bounds = array<i64: 128, 1024>}, {pipeline_mode = #tpu.pipeline_mode<synchronous>, transform_indices = @transform_6, window_bounds = array<i64: 1, 1024>}, {transform_indices = @transform_7, window_bounds = array<i64: 1, 1, 1024>}]} {
    %c0_i32 = arith.constant 0 : i32
    %0 = arith.cmpi eq, %arg1, %c0_i32 : i32
    %1 = arith.extui %0 : i1 to i32
    %c0_i32_0 = arith.constant 0 : i32
    %2 = arith.cmpi ne, %1, %c0_i32_0 : i32
    scf.if %2 {
      %cst_22 = arith.constant 0xFF800000 : f32
      %32 = vector.broadcast %cst_22 : f32 to vector<1x1024xf32>
      %c0_23 = arith.constant 0 : index
      %c0_24 = arith.constant 0 : index
      %33 = vector.load %arg10[%c0_23, %c0_24] : memref<1x1024xf32, #tpu.memory_space<vmem>>, vector<1x1024xf32>
      tpu.vector_store %arg10[%c0_23, %c0_24], %32 {strides = array<i32>} : memref<1x1024xf32, #tpu.memory_space<vmem>>, vector<1x1024xf32>,
    } else {
    }
    %c0 = arith.constant 0 : index
    %c0_1 = arith.constant 0 : index
    %c0_2 = arith.constant 0 : index
    %3 = vector.load %arg2[%c0, %c0_1, %c0_2] : memref<1x32x128xbf16, #tpu.memory_space<vmem>>, vector<1x32x128xbf16>
    %4 = vector.shape_cast %3 : vector<1x32x128xbf16> to vector<32x128xbf16>
    %c0_3 = arith.constant 0 : index
    %c0_4 = arith.constant 0 : index
    %5 = vector.load %arg3[%c0_3, %c0_4] : memref<128x64xbf16, #tpu.memory_space<vmem>>, vector<128x64xbf16>
    %cst = arith.constant dense<0.000000e+00> : vector<32x64xf32>
    %6 = tpu.matmul %4, %5, %cst {dimension_numbers = #tpu.dot_dimension_numbers<[1], [0], [0], [1], [0, 0, 1, 1], [], []>} : vector<32x128xbf16>, vector<128x64xbf16>, vector<32x64xf32> -> vector<32x64xf32>
    %c0_5 = arith.constant 0 : index
    %c0_6 = arith.constant 0 : index
    %7 = vector.load %arg4[%c0_5, %c0_6] : memref<1x64xf32, #tpu.memory_space<vmem>>, vector<1x64xf32>
    %8 = vector.broadcast %7 : vector<1x64xf32> to vector<32x64xf32>
    %9 = arith.addf %6, %8 : vector<32x64xf32>
    %cst_7 = arith.constant 0.000000e+00 : f32
    %10 = vector.broadcast %cst_7 : f32 to vector<32x64xf32>
    %11 = arith.maximumf %9, %10 : vector<32x64xf32>
    %12 = arith.truncf %11 : vector<32x64xf32> to vector<32x64xbf16>
    %c0_8 = arith.constant 0 : index
    %c0_9 = arith.constant 0 : index
    %13 = vector.load %arg5[%c0_8, %c0_9] : memref<64x128xbf16, #tpu.memory_space<vmem>>, vector<64x128xbf16>
    %cst_10 = arith.constant dense<0.000000e+00> : vector<32x128xf32>
    %14 = tpu.matmul %12, %13, %cst_10 {dimension_numbers = #tpu.dot_dimension_numbers<[1], [0], [0], [1], [0, 0, 1, 1], [], []>} : vector<32x64xbf16>, vector<64x128xbf16>, vector<32x128xf32> -> vector<32x128xf32>
    %c0_11 = arith.constant 0 : index
    %c0_12 = arith.constant 0 : index
    %15 = vector.load %arg6[%c0_11, %c0_12] : memref<1x128xf32, #tpu.memory_space<vmem>>, vector<1x128xf32>
    %16 = vector.broadcast %15 : vector<1x128xf32> to vector<32x128xf32>
    %17 = arith.addf %14, %16 : vector<32x128xf32>
    %cst_13 = arith.constant 0.000000e+00 : f32
    %18 = vector.broadcast %cst_13 : f32 to vector<32x128xf32>
    %19 = arith.maximumf %17, %18 : vector<32x128xf32>
    %20 = arith.truncf %19 : vector<32x128xf32> to vector<32x128xbf16>
    %c0_14 = arith.constant 0 : index
    %c0_15 = arith.constant 0 : index
    %21 = vector.load %arg7[%c0_14, %c0_15] : memref<128x1024xbf16, #tpu.memory_space<vmem>>, vector<128x1024xbf16>
    %cst_16 = arith.constant dense<0.000000e+00> : vector<32x1024xf32>
    %22 = tpu.matmul %20, %21, %cst_16 {dimension_numbers = #tpu.dot_dimension_numbers<[1], [0], [0], [1], [0, 0, 1, 1], [], []>} : vector<32x128xbf16>, vector<128x1024xbf16>, vector<32x1024xf32> -> vector<32x1024xf32>
    %c2_i32 = arith.constant 2 : i32
    %23 = arith.cmpi eq, %arg1, %c2_i32 : i32
    %24 = arith.extui %23 : i1 to i32
    %c0_i32_17 = arith.constant 0 : i32
    %25 = arith.cmpi ne, %24, %c0_i32_17 : i32
    scf.if %25 {
      %32 = tpu.iota {dimensions = array<i32: 0>} : vector<32x1xi32>
      %c32_i32 = arith.constant 32 : i32
      %33 = arith.muli %arg1, %c32_i32 : i32
      %34 = vector.broadcast %33 : i32 to vector<32x1xi32>
      %35 = arith.addi %34, %32 : vector<32x1xi32>
      %c80_i32 = arith.constant 80 : i32
      %36 = vector.broadcast %c80_i32 : i32 to vector<32x1xi32>
      %37 = arith.cmpi slt, %35, %36 : vector<32x1xi32>
      %cst_22 = arith.constant 0xFF800000 : f32
      %38 = vector.shape_cast %37 : vector<32x1xi1> to vector<32x1xi1>
      %39 = vector.broadcast %38 : vector<32x1xi1> to vector<32x1024xi1>
      %40 = vector.broadcast %cst_22 : f32 to vector<32x1024xf32>
      %41 = arith.select %39, %22, %40 : vector<32x1024xi1>, vector<32x1024xf32>
      %c0_23 = arith.constant 0 : index
      %c0_24 = arith.constant 0 : index
      %42 = vector.load %arg10[%c0_23, %c0_24] : memref<1x1024xf32, #tpu.memory_space<vmem>>, vector<1x1024xf32>
      %cst_25 = arith.constant dense<0xFF800000> : vector<1024xf32>
      %43 = vector.multi_reduction <maximumf>, %41, %cst_25 [0] : vector<32x1024xf32> to vector<1024xf32>
      %44 = vector.shape_cast %43 : vector<1024xf32> to vector<1x1024xf32>
      %45 = arith.maximumf %42, %44 : vector<1x1024xf32>
      %c0_26 = arith.constant 0 : index
      %c0_27 = arith.constant 0 : index
      %46 = vector.load %arg10[%c0_26, %c0_27] : memref<1x1024xf32, #tpu.memory_space<vmem>>, vector<1x1024xf32>
      tpu.vector_store %arg10[%c0_26, %c0_27], %45 {strides = array<i32>} : memref<1x1024xf32, #tpu.memory_space<vmem>>, vector<1x1024xf32>,
    } else {
    }
    %c2_i32_18 = arith.constant 2 : i32
    %26 = arith.cmpi ne, %arg1, %c2_i32_18 : i32
    %27 = arith.extui %26 : i1 to i32
    %c0_i32_19 = arith.constant 0 : i32
    %28 = arith.cmpi ne, %27, %c0_i32_19 : i32
    scf.if %28 {
      %c0_22 = arith.constant 0 : index
      %c0_23 = arith.constant 0 : index
      %32 = vector.load %arg10[%c0_22, %c0_23] : memref<1x1024xf32, #tpu.memory_space<vmem>>, vector<1x1024xf32>
      %cst_24 = arith.constant dense<0xFF800000> : vector<1024xf32>
      %33 = vector.multi_reduction <maximumf>, %22, %cst_24 [0] : vector<32x1024xf32> to vector<1024xf32>
      %34 = vector.shape_cast %33 : vector<1024xf32> to vector<1x1024xf32>
      %35 = arith.maximumf %32, %34 : vector<1x1024xf32>
      %c0_25 = arith.constant 0 : index
      %c0_26 = arith.constant 0 : index
      %36 = vector.load %arg10[%c0_25, %c0_26] : memref<1x1024xf32, #tpu.memory_space<vmem>>, vector<1x1024xf32>
      tpu.vector_store %arg10[%c0_25, %c0_26], %35 {strides = array<i32>} : memref<1x1024xf32, #tpu.memory_space<vmem>>, vector<1x1024xf32>,
    } else {
    }
    %c2_i32_20 = arith.constant 2 : i32
    %29 = arith.cmpi eq, %arg1, %c2_i32_20 : i32
    %30 = arith.extui %29 : i1 to i32
    %c0_i32_21 = arith.constant 0 : i32
    %31 = arith.cmpi ne, %30, %c0_i32_21 : i32
    scf.if %31 {
      %c0_22 = arith.constant 0 : index
      %c0_23 = arith.constant 0 : index
      %32 = vector.load %arg10[%c0_22, %c0_23] : memref<1x1024xf32, #tpu.memory_space<vmem>>, vector<1x1024xf32>
      %c0_24 = arith.constant 0 : index
      %c0_25 = arith.constant 0 : index
      %33 = vector.load %arg8[%c0_24, %c0_25] : memref<1x1024xf32, #tpu.memory_space<vmem>>, vector<1x1024xf32>
      %34 = arith.addf %32, %33 : vector<1x1024xf32>
      %cst_26 = arith.constant 0.000000e+00 : f32
      %35 = vector.broadcast %cst_26 : f32 to vector<1x1024xf32>
      %36 = arith.maximumf %34, %35 : vector<1x1024xf32>
      %37 = vector.shape_cast %36 : vector<1x1024xf32> to vector<1x1x1024xf32>
      %c0_27 = arith.constant 0 : index
      %c0_28 = arith.constant 0 : index
      %c0_29 = arith.constant 0 : index
      %38 = vector.load %arg9[%c0_27, %c0_28, %c0_29] : memref<1x1x1024xf32, #tpu.memory_space<vmem>>, vector<1x1x1024xf32>
      tpu.vector_store %arg9[%c0_27, %c0_28, %c0_29], %37 {strides = array<i32>} : memref<1x1x1024xf32, #tpu.memory_space<vmem>>, vector<1x1x1024xf32>,
    } else {
    }
    return
  }
  func.func @transform_0(%arg0: i32, %arg1: i32) -> (i32, i32, i32) {
    %c0_i32 = arith.constant 0 : i32
    %c0_i32_0 = arith.constant 0 : i32
    return %arg0, %arg1, %c0_i32 : i32, i32, i32
  }
  func.func @transform_1(%arg0: i32, %arg1: i32) -> (i32, i32) {
    %c0_i32 = arith.constant 0 : i32
    %c0_i32_0 = arith.constant 0 : i32
    %c0_i32_1 = arith.constant 0 : i32
    return %c0_i32, %c0_i32_0 : i32, i32
  }
  func.func @transform_2(%arg0: i32, %arg1: i32) -> (i32, i32) {
    %c0_i32 = arith.constant 0 : i32
    %c0_i32_0 = arith.constant 0 : i32
    %c0_i32_1 = arith.constant 0 : i32
    return %c0_i32, %c0_i32_0 : i32, i32
  }
  func.func @transform_3(%arg0: i32, %arg1: i32) -> (i32, i32) {
    %c0_i32 = arith.constant 0 : i32
    %c0_i32_0 = arith.constant 0 : i32
    %c0_i32_1 = arith.constant 0 : i32
    return %c0_i32, %c0_i32_0 : i32, i32
  }
  func.func @transform_4(%arg0: i32, %arg1: i32) -> (i32, i32) {
    %c0_i32 = arith.constant 0 : i32
    %c0_i32_0 = arith.constant 0 : i32
    %c0_i32_1 = arith.constant 0 : i32
    return %c0_i32, %c0_i32_0 : i32, i32
  }
  func.func @transform_5(%arg0: i32, %arg1: i32) -> (i32, i32) {
    %c0_i32 = arith.constant 0 : i32
    %c0_i32_0 = arith.constant 0 : i32
    %c0_i32_1 = arith.constant 0 : i32
    return %c0_i32, %c0_i32_0 : i32, i32
  }
  func.func @transform_6(%arg0: i32, %arg1: i32) -> (i32, i32) {
    %c0_i32 = arith.constant 0 : i32
    %c0_i32_0 = arith.constant 0 : i32
    %c0_i32_1 = arith.constant 0 : i32
    return %c0_i32, %c0_i32_0 : i32, i32
  }
  func.func @transform_7(%arg0: i32, %arg1: i32) -> (i32, i32, i32) {
    %c0_i32 = arith.constant 0 : i32
    %c0_i32_0 = arith.constant 0 : i32
    %c0_i32_1 = arith.constant 0 : i32
    return %arg0, %c0_i32, %c0_i32_0 : i32, i32, i32
  }
}

module attributes {stable_mosaic.version = 11 : i64} {
  func.func @_fc_head_kernel(%arg0: i32, %arg1: memref<8x1024xf32, #tpu.memory_space<vmem>>, %arg2: memref<1024x512xbf16, #tpu.memory_space<vmem>>, %arg3: memref<1x512xf32, #tpu.memory_space<vmem>>, %arg4: memref<512x256xbf16, #tpu.memory_space<vmem>>, %arg5: memref<1x256xf32, #tpu.memory_space<vmem>>, %arg6: memref<256x128xbf16, #tpu.memory_space<vmem>>, %arg7: memref<1x128xf32, #tpu.memory_space<vmem>>, %arg8: memref<8x128xf32, #tpu.memory_space<vmem>>) attributes {dimension_semantics = [#tpu.dimension_semantics<arbitrary>], iteration_bounds = array<i64: 1>, scalar_prefetch = 0 : i64, scratch_operands = 0 : i64, tpu.core_type = #tpu.core_type<tc>, window_params = [{pipeline_mode = #tpu.pipeline_mode<synchronous>, transform_indices = @transform_0, window_bounds = array<i64: 8, 1024>}, {pipeline_mode = #tpu.pipeline_mode<synchronous>, transform_indices = @transform_1, window_bounds = array<i64: 1024, 512>}, {pipeline_mode = #tpu.pipeline_mode<synchronous>, transform_indices = @transform_2, window_bounds = array<i64: 1, 512>}, {pipeline_mode = #tpu.pipeline_mode<synchronous>, transform_indices = @transform_3, window_bounds = array<i64: 512, 256>}, {pipeline_mode = #tpu.pipeline_mode<synchronous>, transform_indices = @transform_4, window_bounds = array<i64: 1, 256>}, {pipeline_mode = #tpu.pipeline_mode<synchronous>, transform_indices = @transform_5, window_bounds = array<i64: 256, 128>}, {pipeline_mode = #tpu.pipeline_mode<synchronous>, transform_indices = @transform_6, window_bounds = array<i64: 1, 128>}, {pipeline_mode = #tpu.pipeline_mode<synchronous>, transform_indices = @transform_7, window_bounds = array<i64: 8, 128>}]} {
    %c0 = arith.constant 0 : index
    %c0_0 = arith.constant 0 : index
    %0 = vector.load %arg1[%c0, %c0_0] : memref<8x1024xf32, #tpu.memory_space<vmem>>, vector<8x1024xf32>
    %1 = arith.truncf %0 : vector<8x1024xf32> to vector<8x1024xbf16>
    %c0_1 = arith.constant 0 : index
    %c0_2 = arith.constant 0 : index
    %2 = vector.load %arg2[%c0_1, %c0_2] : memref<1024x512xbf16, #tpu.memory_space<vmem>>, vector<1024x512xbf16>
    %cst = arith.constant dense<0.000000e+00> : vector<8x512xf32>
    %3 = tpu.matmul %1, %2, %cst {dimension_numbers = #tpu.dot_dimension_numbers<[1], [0], [0], [1], [0, 0, 1, 1], [], []>} : vector<8x1024xbf16>, vector<1024x512xbf16>, vector<8x512xf32> -> vector<8x512xf32>
    %c0_3 = arith.constant 0 : index
    %c0_4 = arith.constant 0 : index
    %4 = vector.load %arg3[%c0_3, %c0_4] : memref<1x512xf32, #tpu.memory_space<vmem>>, vector<1x512xf32>
    %5 = vector.broadcast %4 : vector<1x512xf32> to vector<8x512xf32>
    %6 = arith.addf %3, %5 : vector<8x512xf32>
    %cst_5 = arith.constant 0.000000e+00 : f32
    %7 = vector.broadcast %cst_5 : f32 to vector<8x512xf32>
    %8 = arith.maximumf %6, %7 : vector<8x512xf32>
    %9 = arith.truncf %8 : vector<8x512xf32> to vector<8x512xbf16>
    %c0_6 = arith.constant 0 : index
    %c0_7 = arith.constant 0 : index
    %10 = vector.load %arg4[%c0_6, %c0_7] : memref<512x256xbf16, #tpu.memory_space<vmem>>, vector<512x256xbf16>
    %cst_8 = arith.constant dense<0.000000e+00> : vector<8x256xf32>
    %11 = tpu.matmul %9, %10, %cst_8 {dimension_numbers = #tpu.dot_dimension_numbers<[1], [0], [0], [1], [0, 0, 1, 1], [], []>} : vector<8x512xbf16>, vector<512x256xbf16>, vector<8x256xf32> -> vector<8x256xf32>
    %c0_9 = arith.constant 0 : index
    %c0_10 = arith.constant 0 : index
    %12 = vector.load %arg5[%c0_9, %c0_10] : memref<1x256xf32, #tpu.memory_space<vmem>>, vector<1x256xf32>
    %13 = vector.broadcast %12 : vector<1x256xf32> to vector<8x256xf32>
    %14 = arith.addf %11, %13 : vector<8x256xf32>
    %cst_11 = arith.constant 0.000000e+00 : f32
    %15 = vector.broadcast %cst_11 : f32 to vector<8x256xf32>
    %16 = arith.maximumf %14, %15 : vector<8x256xf32>
    %17 = arith.truncf %16 : vector<8x256xf32> to vector<8x256xbf16>
    %c0_12 = arith.constant 0 : index
    %c0_13 = arith.constant 0 : index
    %18 = vector.load %arg6[%c0_12, %c0_13] : memref<256x128xbf16, #tpu.memory_space<vmem>>, vector<256x128xbf16>
    %cst_14 = arith.constant dense<0.000000e+00> : vector<8x128xf32>
    %19 = tpu.matmul %17, %18, %cst_14 {dimension_numbers = #tpu.dot_dimension_numbers<[1], [0], [0], [1], [0, 0, 1, 1], [], []>} : vector<8x256xbf16>, vector<256x128xbf16>, vector<8x128xf32> -> vector<8x128xf32>
    %c0_15 = arith.constant 0 : index
    %c0_16 = arith.constant 0 : index
    %20 = vector.load %arg7[%c0_15, %c0_16] : memref<1x128xf32, #tpu.memory_space<vmem>>, vector<1x128xf32>
    %21 = vector.broadcast %20 : vector<1x128xf32> to vector<8x128xf32>
    %22 = arith.addf %19, %21 : vector<8x128xf32>
    %c0_17 = arith.constant 0 : index
    %c0_18 = arith.constant 0 : index
    %23 = vector.load %arg8[%c0_17, %c0_18] : memref<8x128xf32, #tpu.memory_space<vmem>>, vector<8x128xf32>
    tpu.vector_store %arg8[%c0_17, %c0_18], %22 {strides = array<i32>} : memref<8x128xf32, #tpu.memory_space<vmem>>, vector<8x128xf32>,
    return
  }
  func.func @transform_0(%arg0: i32) -> (i32, i32) {
    %c0_i32 = arith.constant 0 : i32
    %c0_i32_0 = arith.constant 0 : i32
    %c0_i32_1 = arith.constant 0 : i32
    return %c0_i32, %c0_i32_0 : i32, i32
  }
  func.func @transform_1(%arg0: i32) -> (i32, i32) {
    %c0_i32 = arith.constant 0 : i32
    %c0_i32_0 = arith.constant 0 : i32
    %c0_i32_1 = arith.constant 0 : i32
    return %c0_i32, %c0_i32_0 : i32, i32
  }
  func.func @transform_2(%arg0: i32) -> (i32, i32) {
    %c0_i32 = arith.constant 0 : i32
    %c0_i32_0 = arith.constant 0 : i32
    %c0_i32_1 = arith.constant 0 : i32
    return %c0_i32, %c0_i32_0 : i32, i32
  }
  func.func @transform_3(%arg0: i32) -> (i32, i32) {
    %c0_i32 = arith.constant 0 : i32
    %c0_i32_0 = arith.constant 0 : i32
    %c0_i32_1 = arith.constant 0 : i32
    return %c0_i32, %c0_i32_0 : i32, i32
  }
  func.func @transform_4(%arg0: i32) -> (i32, i32) {
    %c0_i32 = arith.constant 0 : i32
    %c0_i32_0 = arith.constant 0 : i32
    %c0_i32_1 = arith.constant 0 : i32
    return %c0_i32, %c0_i32_0 : i32, i32
  }
  func.func @transform_5(%arg0: i32) -> (i32, i32) {
    %c0_i32 = arith.constant 0 : i32
    %c0_i32_0 = arith.constant 0 : i32
    %c0_i32_1 = arith.constant 0 : i32
    return %c0_i32, %c0_i32_0 : i32, i32
  }
  func.func @transform_6(%arg0: i32) -> (i32, i32) {
    %c0_i32 = arith.constant 0 : i32
    %c0_i32_0 = arith.constant 0 : i32
    %c0_i32_1 = arith.constant 0 : i32
    return %c0_i32, %c0_i32_0 : i32, i32
  }
  func.func @transform_7(%arg0: i32) -> (i32, i32) {
    %c0_i32 = arith.constant 0 : i32
    %c0_i32_0 = arith.constant 0 : i32
    %c0_i32_1 = arith.constant 0 : i32
    return %c0_i32, %c0_i32_0 : i32, i32
  }
}

</mosaic_0001>

<llo_original>
// kernel: stn3d_forward.2
$region0: #{stn3d_forward.2}
  #allocation0 [shape = 'u32[]', space=smem, size = 0x4, offset = 0x4, fixed_abs, tag = 'smem constant byte address 0x4 - core index']
  #allocation1 [shape = 'u32[144,128]{1,0:T(1,128)}', space=vmem, size = 0x12000, scoped, tag = 'internal scratch']
  #allocation2 [shape = 'f32[1,1024]{1,0:T(1,128)}', space=vmem, size = 0x1000, scoped, tag = 'scratch operand']
  %s0 = inlined_call_operand.vmem [shape: bf16[2,96,128], index: 0, kind: input, shape index: {}]
  %s1 = inlined_call_operand.vmem [shape: bf16[128,64], index: 1, kind: input, shape index: {}]
  %s2 = inlined_call_operand.vmem [shape: f32[1,64], index: 2, kind: input, shape index: {}]
  %s3 = inlined_call_operand.vmem [shape: bf16[64,128], index: 3, kind: input, shape index: {}]
  %s4 = inlined_call_operand.vmem [shape: f32[1,128], index: 4, kind: input, shape index: {}]
  %s5 = inlined_call_operand.hbm [shape: bf16[128,1024], index: 5, kind: input, shape index: {}]
  %s6 = inlined_call_operand.vmem [shape: f32[1,1024], index: 6, kind: input, shape index: {}]
  %s7 = inlined_call_operand.vmem [shape: f32[2,1,1024], index: 7, kind: output, shape index: {}]
  %s8 = sld [smem:[#allocation0]]
  $region81: #{stn3d_forward.2} parent=0
    _
  %s10 = ssub.s32 1, %s8
  %s11 = scalar_select 0, %s10, %s8
  $region1: #{stn3d_forward.2} parent=0
    #allocation3 [shape = 'u8[262144]{0}', space=vmem, size = 0x40000, scoped, tag = 'input window, operand 5, single buffered']
    #allocation4 [shape = 's32[2]{0}', space=sflag, size = 0x8, scoped, tag = 'scoped memory for stn3d_forward.2']
    %12 = vsyncpa [#allocation4], 0
    loop: start=0, step=1, limit=8
    $region2: #{stn3d_forward.2} parent=1 // loop_pre_header
      _
    $region3: #{stn3d_forward.2} parent=1 // loop_header
      %s14 = sphi 0, %s18
      %p15 = scmp.ge.s32.totalorder %s14, 8
      %s21 = sphi 0, %s33
      %s22 = sphi 0, %s29
      %s23 = sphi 0, %s21
      %s24 = sphi 0, %s22
      %s25 = sphi 0, %s23
      %s26 = sphi 0, %s24
      %s38 = sphi 0, %s40
      %s41 = sphi 0, %s38
      %s42 = sphi 0, %s41
      %s58 = sphi 0, %s42
      %s62 = sphi 0, %s62
      %s64 = sphi 0, %s62
      %s65 = sphi 0, %s64
      %s79 = sphi 0, %s65
      %s83 = sphi 0, %s83
      %s85 = sphi 0, %s83
      %s86 = sphi 0, %s85
      %s100 = sphi 0, %s86
      %s104 = sphi 0, %s104
      %s106 = sphi 0, %s104
      %s107 = sphi 0, %s106
      %s121 = sphi 0, %s107
      %s125 = sphi 0, %s125
      %s127 = sphi 0, %s125
      %s128 = sphi 0, %s127
      %s142 = sphi 0, %s128
      %s146 = sphi 0, %s146
      %s148 = sphi 0, %s146
      %s149 = sphi 0, %s148
      %s163 = sphi 0, %s149
      %s167 = sphi 0, %s167
      %s169 = sphi 0, %s167
      %s170 = sphi 0, %s169
      %s184 = sphi 0, %s170
      %s190 = sphi 0, %s192
      %s193 = sphi 0, %s190
      %s194 = sphi 0, %s193
      %s210 = sphi 0, %s194
    $region4: #{stn3d_forward.2} parent=1 // loop_header_branch
      %17 = sbr.rel (%p15) target = $region8
    $region5: #{stn3d_forward.2} parent=1 // loop_body
      %s19 = ssub.s32 %s14, 1
      %s20 = ssub.s32 %s14, 2
      %s27 = sadd.s32 1, %s22
      %p28 = scmp.ge.s32.totalorder %s27, 3
      %s29 = scalar_select %p28, 0, %s27
      %s30 = sadd.s32 1, %s21
      %s31 = scalar_select %p28, %s30, %s21
      %p32 = scmp.ge.s32.totalorder %s31, 2
      %s33 = scalar_select %p32, 0, %s31
      %s34 = ssub.s32 %s21, %s33
      %s35 = ssub.s32 %s22, %s29
      %s36 = sor.u32 %s34, %s35
      %p37 = scmp.eq.s32.totalorder %s36, 0
      %s39 = sadd.s32 %s38, 1
      %s40 = scalar_select %p37, %s38, %s39
      %p43 = pneg %p37
      %p44 = scmp.eq.s32.totalorder %s14, 5
      %p45 = por %p43, %p44
      %p46 = scmp.ne.s32.totalorder %s38, %s41
      %p47 = scmp.eq.s32.totalorder %s14, 0
      %p48 = por %p46, %p47
      %p49 = scmp.ne.s32.totalorder %s38, %s41
      %p50 = scmp.eq.s32.totalorder %s19, 5
      %p51 = por %p49, %p50
      %p52 = scmp.ne.s32.totalorder %s41, %s42
      %p53 = scmp.eq.s32.totalorder %s19, 0
      %p54 = por %p52, %p53
      %p55 = scmp.ne.s32.totalorder %s41, %s42
      %p56 = scmp.eq.s32.totalorder %s20, 5
      %p57 = por %p55, %p56
      %p59 = scmp.ne.s32.totalorder %s42, %s58
      %p60 = scmp.eq.s32.totalorder %s20, 0
      %p61 = por %p59, %p60
      %s63 = sadd.s32 %s62, 1
      %p66 = scmp.eq.s32.totalorder %s14, 5
      %p67 = scmp.ne.s32.totalorder %s62, %s64
      %p68 = scmp.eq.s32.totalorder %s14, 0
      %p69 = por %p67, %p68
      %p70 = scmp.ne.s32.totalorder %s62, %s64
      %p71 = scmp.eq.s32.totalorder %s19, 5
      %p72 = por %p70, %p71
      %p73 = scmp.ne.s32.totalorder %s64, %s65
      %p74 = scmp.eq.s32.totalorder %s19, 0
      %p75 = por %p73, %p74
      %p76 = scmp.ne.s32.totalorder %s64, %s65
      %p77 = scmp.eq.s32.totalorder %s20, 5
      %p78 = por %p76, %p77
      %p80 = scmp.ne.s32.totalorder %s65, %s79
      %p81 = scmp.eq.s32.totalorder %s20, 0
      %p82 = por %p80, %p81
      %s84 = sadd.s32 %s83, 1
      %p87 = scmp.eq.s32.totalorder %s14, 5
      %p88 = scmp.ne.s32.totalorder %s83, %s85
      %p89 = scmp.eq.s32.totalorder %s14, 0
      %p90 = por %p88, %p89
      %p91 = scmp.ne.s32.totalorder %s83, %s85
      %p92 = scmp.eq.s32.totalorder %s19, 5
      %p93 = por %p91, %p92
      %p94 = scmp.ne.s32.totalorder %s85, %s86
      %p95 = scmp.eq.s32.totalorder %s19, 0
      %p96 = por %p94, %p95
      %p97 = scmp.ne.s32.totalorder %s85, %s86
      %p98 = scmp.eq.s32.totalorder %s20, 5
      %p99 = por %p97, %p98
      %p101 = scmp.ne.s32.totalorder %s86, %s100
      %p102 = scmp.eq.s32.totalorder %s20, 0
      %p103 = por %p101, %p102
      %s105 = sadd.s32 %s104, 1
      %p108 = scmp.eq.s32.totalorder %s14, 5
      %p109 = scmp.ne.s32.totalorder %s104, %s106
      %p110 = scmp.eq.s32.totalorder %s14, 0
      %p111 = por %p109, %p110
      %p112 = scmp.ne.s32.totalorder %s104, %s106
      %p113 = scmp.eq.s32.totalorder %s19, 5
      %p114 = por %p112, %p113
      %p115 = scmp.ne.s32.totalorder %s106, %s107
      %p116 = scmp.eq.s32.totalorder %s19, 0
      %p117 = por %p115, %p116
      %p118 = scmp.ne.s32.totalorder %s106, %s107
      %p119 = scmp.eq.s32.totalorder %s20, 5
      %p120 = por %p118, %p119
      %p122 = scmp.ne.s32.totalorder %s107, %s121
      %p123 = scmp.eq.s32.totalorder %s20, 0
      %p124 = por %p122, %p123
      %s126 = sadd.s32 %s125, 1
      %p129 = scmp.eq.s32.totalorder %s14, 5
      %p130 = scmp.ne.s32.totalorder %s125, %s127
      %p131 = scmp.eq.s32.totalorder %s14, 0
      %p132 = por %p130, %p131
      %p133 = scmp.ne.s32.totalorder %s125, %s127
      %p134 = scmp.eq.s32.totalorder %s19, 5
      %p135 = por %p133, %p134
      %p136 = scmp.ne.s32.totalorder %s127, %s128
      %p137 = scmp.eq.s32.totalorder %s19, 0
      %p138 = por %p136, %p137
      %p139 = scmp.ne.s32.totalorder %s127, %s128
      %p140 = scmp.eq.s32.totalorder %s20, 5
      %p141 = por %p139, %p140
      %p143 = scmp.ne.s32.totalorder %s128, %s142
      %p144 = scmp.eq.s32.totalorder %s20, 0
      %p145 = por %p143, %p144
      %s147 = sadd.s32 %s146, 1
      %p150 = scmp.eq.s32.totalorder %s14, 5
      %p151 = scmp.ne.s32.totalorder %s146, %s148
      %p152 = scmp.eq.s32.totalorder %s14, 0
      %p153 = por %p151, %p152
      %p154 = scmp.ne.s32.totalorder %s146, %s148
      %p155 = scmp.eq.s32.totalorder %s19, 5
      %p156 = por %p154, %p155
      %p157 = scmp.ne.s32.totalorder %s148, %s149
      %p158 = scmp.eq.s32.totalorder %s19, 0
      %p159 = por %p157, %p158
      %p160 = scmp.ne.s32.totalorder %s148, %s149
      %p161 = scmp.eq.s32.totalorder %s20, 5
      %p162 = por %p160, %p161
      %p164 = scmp.ne.s32.totalorder %s149, %s163
      %p165 = scmp.eq.s32.totalorder %s20, 0
      %p166 = por %p164, %p165
      %s168 = sadd.s32 %s167, 1
      %p171 = scmp.eq.s32.totalorder %s14, 5
      %p172 = scmp.ne.s32.totalorder %s167, %s169
      %p173 = scmp.eq.s32.totalorder %s14, 0
      %p174 = por %p172, %p173
      %p175 = scmp.ne.s32.totalorder %s167, %s169
      %p176 = scmp.eq.s32.totalorder %s19, 5
      %p177 = por %p175, %p176
      %p178 = scmp.ne.s32.totalorder %s169, %s170
      %p179 = scmp.eq.s32.totalorder %s19, 0
      %p180 = por %p178, %p179
      %p181 = scmp.ne.s32.totalorder %s169, %s170
      %p182 = scmp.eq.s32.totalorder %s20, 5
      %p183 = por %p181, %p182
      %p185 = scmp.ne.s32.totalorder %s170, %s184
      %p186 = scmp.eq.s32.totalorder %s20, 0
      %p187 = por %p185, %p186
      %s188 = ssub.s32 %s21, %s33
      %p189 = scmp.eq.s32.totalorder %s188, 0
      %s191 = sadd.s32 %s190, 1
      %s192 = scalar_select %p189, %s190, %s191
      %p195 = pneg %p189
      %p196 = scmp.eq.s32.totalorder %s14, 5
      %p197 = por %p195, %p196
      %p198 = scmp.ne.s32.totalorder %s190, %s193
      %p199 = scmp.eq.s32.totalorder %s14, 0
      %p200 = por %p198, %p199
      %p201 = scmp.ne.s32.totalorder %s190, %s193
      %p202 = scmp.eq.s32.totalorder %s19, 5
      %p203 = por %p201, %p202
      %p204 = scmp.ne.s32.totalorder %s193, %s194
      %p205 = scmp.eq.s32.totalorder %s19, 0
      %p206 = por %p204, %p205
      %p207 = scmp.ne.s32.totalorder %s193, %s194
      %p208 = scmp.eq.s32.totalorder %s20, 5
      %p209 = por %p207, %p208
      %p211 = scmp.ne.s32.totalorder %s194, %s210
      %p212 = scmp.eq.s32.totalorder %s20, 0
      %p213 = por %p211, %p212
      %p214 = scmp.le.s32.totalorder 1, %s14
      %p215 = scmp.lt.s32.totalorder %s14, 7
      %p216 = pnand %p214, %p215
      %p217 = pneg %p216
      // Predicated region
      $region9: #{stn3d_forward.2} parent=5 // pred_check
        _
      $region10: #{stn3d_forward.2} parent=5 // pred_check_branch
        %219 = sbr.rel (%p216) target = $region12
      $region11: #{stn3d_forward.2} parent=5 // pred_region
        %s220 = ssub.s32 %s14, 1
        // Predicated region
        $region13: #{stn3d_forward.2} parent=11 // pred_check
          %p221 = pneg %p75
        $region14: #{stn3d_forward.2} parent=11 // pred_check_branch
          %223 = sbr.rel (%p221) target = $region16
        $region15: #{stn3d_forward.2} parent=11 // pred_region
          _
        $region16: #{stn3d_forward.2} parent=11 // pred_fallthru
          _
        // Predicated region
        $region17: #{stn3d_forward.2} parent=11 // pred_check
          %p224 = pneg %p96
        $region18: #{stn3d_forward.2} parent=11 // pred_check_branch
          %226 = sbr.rel (%p224) target = $region20
        $region19: #{stn3d_forward.2} parent=11 // pred_region
          _
        $region20: #{stn3d_forward.2} parent=11 // pred_fallthru
          _
        // Predicated region
        $region21: #{stn3d_forward.2} parent=11 // pred_check
          %p227 = pneg %p117
        $region22: #{stn3d_forward.2} parent=11 // pred_check_branch
          %229 = sbr.rel (%p227) target = $region24
        $region23: #{stn3d_forward.2} parent=11 // pred_region
          _
        $region24: #{stn3d_forward.2} parent=11 // pred_fallthru
          _
        // Predicated region
        $region25: #{stn3d_forward.2} parent=11 // pred_check
          %p230 = pneg %p138
        $region26: #{stn3d_forward.2} parent=11 // pred_check_branch
          %232 = sbr.rel (%p230) target = $region28
        $region27: #{stn3d_forward.2} parent=11 // pred_region
          _
        $region28: #{stn3d_forward.2} parent=11 // pred_fallthru
          _
        // Predicated region
        $region29: #{stn3d_forward.2} parent=11 // pred_check
          %p233 = pneg %p159
        $region30: #{stn3d_forward.2} parent=11 // pred_check_branch
          %235 = sbr.rel (%p233) target = $region32
        $region31: #{stn3d_forward.2} parent=11 // pred_region
          %s237 = ssub.s32 8192, 8192
          %238 = vsyncadd [#allocation4], %s237
          %s239 = sshll.u32 [#allocation3], 4
          %s240 = int_to_ptr.vmem [resolvable:$true] %s239
          %245 = dma.hbm_to_vmem [thread:$0]  %s5, 8192, %s240, [#allocation4], 512, 512, 32
        $region32: #{stn3d_forward.2} parent=11 // pred_fallthru
          _
        // Predicated region
        $region33: #{stn3d_forward.2} parent=11 // pred_check
          %p246 = pneg %p180
        $region34: #{stn3d_forward.2} parent=11 // pred_check_branch
          %248 = sbr.rel (%p246) target = $region36
        $region35: #{stn3d_forward.2} parent=11 // pred_region
          _
        $region36: #{stn3d_forward.2} parent=11 // pred_fallthru
          _
      $region12: #{stn3d_forward.2} parent=5 // pred_fallthru
        _
      %p249 = scmp.lt.s32.totalorder %s14, 6
      // Predicated region
      $region37: #{stn3d_forward.2} parent=5 // pred_check
        %p250 = pneg %p249
      $region38: #{stn3d_forward.2} parent=5 // pred_check_branch
        %252 = sbr.rel (%p250) target = $region40
      $region39: #{stn3d_forward.2} parent=5 // pred_region
        // Predicated region
        $region41: #{stn3d_forward.2} parent=39 // pred_check
          %p253 = pneg %p48
        $region42: #{stn3d_forward.2} parent=39 // pred_check_branch
          %255 = sbr.rel (%p253) target = $region44
        $region43: #{stn3d_forward.2} parent=39 // pred_region
          %s256 = smul.u32 4, %s22
          %p257 = scmp.lt.s32.totalorder %s21, 1
          %s258 = scalar_select %p257, %s21, 1
          %p259 = scmp.lt.s32.totalorder %s256, 11
          %s260 = scalar_select %p259, %s256, 11
          %s261 = smul.addr %s258, 12
          %s262 = sadd.s32 %s260, %s261
          %s263 = smul.addr %s262, 4
          %s264 = scalar_lea.vmem %s0, %s263
          %s265 = smul.u32 4, %s22
        $region44: #{stn3d_forward.2} parent=39 // pred_fallthru
          _
      $region40: #{stn3d_forward.2} parent=5 // pred_fallthru
        _
      %p266 = scmp.le.s32.totalorder 1, %s14
      %p267 = scmp.lt.s32.totalorder %s14, 7
      %p268 = pnand %p266, %p267
      %p269 = pneg %p268
      // Predicated region
      $region45: #{stn3d_forward.2} parent=5 // pred_check
        _
      $region46: #{stn3d_forward.2} parent=5 // pred_check_branch
        %271 = sbr.rel (%p268) target = $region48
      $region47: #{stn3d_forward.2} parent=5 // pred_region
        %s272 = ssub.s32 %s14, 1
        // Predicated region
        $region49: #{stn3d_forward.2} parent=47 // pred_check
          %p273 = pneg %p159
        $region50: #{stn3d_forward.2} parent=47 // pred_check_branch
          %275 = sbr.rel (%p273) target = $region52
        $region51: #{stn3d_forward.2} parent=47 // pred_region
          %276 = dma.done [#allocation4], 8192
        $region52: #{stn3d_forward.2} parent=47 // pred_fallthru
          _
        %s277 = smul.u32 4, %s24
        %p278 = scmp.lt.s32.totalorder %s23, 1
        %s279 = scalar_select %p278, %s23, 1
        %p280 = scmp.lt.s32.totalorder %s277, 11
        %s281 = scalar_select %p280, %s277, 11
        %s282 = smul.addr %s279, 12
        %s283 = sadd.s32 %s281, %s282
        %s284 = smul.addr %s283, 4
        %s285 = scalar_lea.vmem %s0, %s284
        %p286 = pneg %p54
        %p287 = pneg %p51
        %p288 = pneg %p75
        %p289 = pneg %p72
        %p290 = pneg %p96
        %p291 = pneg %p93
        %p292 = pneg %p117
        %p293 = pneg %p114
        %p294 = pneg %p138
        %p295 = pneg %p135
        %p296 = pneg %p159
        %p297 = pneg %p156
        %p298 = pneg %p180
        %p299 = pneg %p177
        %p300 = pneg %p206
        %p301 = pneg %p203
        %p302 = scmp.lt.s32.totalorder %s23, 1
        %s303 = scalar_select %p302, %s23, 1
        %s304 = smul.addr %s303, 8
        %s305 = scalar_lea.vmem %s7, %s304
        %s306 = smul.u32 4, %s24
        %p307 = scmp.lt.s32.totalorder %s23, 1
        %s308 = scalar_select %p307, %s23, 1
        %p309 = scmp.lt.s32.totalorder %s306, 11
        %s310 = scalar_select %p309, %s306, 11
        %s311 = smul.addr %s308, 12
        %s312 = sadd.s32 %s310, %s311
        %s313 = smul.addr %s312, 4
        %s314 = scalar_lea.vmem %s0, %s313
        %s315 = smul.u32 4, %s24
        %p316 = scmp.lt.s32.totalorder %s23, 1
        %s317 = scalar_select %p316, %s23, 1
        %s318 = smul.addr %s317, 8
        %s319 = scalar_lea.vmem %s7, %s318
        %p321 = scmp.eq.s32.totalorder %s24, 0
        // Predicated region
        $region53: #{stn3d_forward.2} parent=47 // pred_check
          %p322 = pneg %p321
        $region54: #{stn3d_forward.2} parent=47 // pred_check_branch
          %324 = sbr.rel (%p322) target = $region56
        $region55: #{stn3d_forward.2} parent=47 // pred_region
          %325 = vst [vmem:[#allocation2] sm:$0xff] -inf
        $region56: #{stn3d_forward.2} parent=47 // pred_fallthru
          _
        %v326 = vld [vmem:[%s314] sm:$0xf]
        %v327 = vld [vmem:[%s314 + $0x4] sm:$0xf]
        %v328 = vld [vmem:[%s314 + $0x8] sm:$0xf]
        %v329 = vld [vmem:[%s314 + $0xc] sm:$0xf]
        %v330 = vld [vmem:[%s1] sm:$0xf]
        %v331 = vld [vmem:[%s1 + $0x4] sm:$0xf]
        %v332 = vld [vmem:[%s1 + $0x8] sm:$0xf]
        %v333 = vld [vmem:[%s1 + $0xc] sm:$0xf]
        %v334 = vld [vmem:[%s1 + $0x10] sm:$0xf]
        %v335 = vld [vmem:[%s1 + $0x14] sm:$0xf]
        %v336 = vld [vmem:[%s1 + $0x18] sm:$0xf]
        %v337 = vld [vmem:[%s1 + $0x1c] sm:$0xf]
        %v338 = vld [vmem:[%s1 + $0x20] sm:$0xf]
        %v339 = vld [vmem:[%s1 + $0x24] sm:$0xf]
        %v340 = vld [vmem:[%s1 + $0x28] sm:$0xf]
        %v341 = vld [vmem:[%s1 + $0x2c] sm:$0xf]
        %v342 = vld [vmem:[%s1 + $0x30] sm:$0xf]
        %v343 = vld [vmem:[%s1 + $0x34] sm:$0xf]
        %v344 = vld [vmem:[%s1 + $0x38] sm:$0xf]
        %v345 = vld [vmem:[%s1 + $0x3c] sm:$0xf]
        %v346 = vld [vmem:[%s2] sm:$0x1]
        %v348 = vlaneseq
        %v349 = vshrl.u32 %v348, 7
        %v350 = vsub.s32 0, %v349
        %v351 = vrot.slane %v346, %v350
        %v357 = vunpack.c.l.b16 %v326
        %v358 = vunpack.c.l.b16 %v327
        %v359 = vunpack.c.l.b16 %v328
        %v360 = vunpack.c.l.b16 %v329
        %v361 = vpack.c.b16 %v358, %v357
        %v362 = vpack.c.b16 %v360, %v359
        %v381 = vunpack.c.l.b16 %v330
        %v382 = vunpack.c.l.b16 %v331
        %v383 = vunpack.c.l.b16 %v332
        %v384 = vunpack.c.l.b16 %v333
        %v385 = vunpack.c.l.b16 %v334
        %v386 = vunpack.c.l.b16 %v335
        %v387 = vunpack.c.l.b16 %v336
        %v388 = vunpack.c.l.b16 %v337
        %v389 = vunpack.c.l.b16 %v338
        %v390 = vunpack.c.l.b16 %v339
        %v391 = vunpack.c.l.b16 %v340
        %v392 = vunpack.c.l.b16 %v341
        %v393 = vunpack.c.l.b16 %v342
        %v394 = vunpack.c.l.b16 %v343
        %v395 = vunpack.c.l.b16 %v344
        %v396 = vunpack.c.l.b16 %v345
        %v397 = vpack.c.b16 %v382, %v381
        %v398 = vpack.c.b16 %v384, %v383
        %v399 = vpack.c.b16 %v386, %v385
        %v400 = vpack.c.b16 %v388, %v387
        %v401 = vpack.c.b16 %v390, %v389
        %v402 = vpack.c.b16 %v392, %v391
        %v403 = vpack.c.b16 %v394, %v393
        %v404 = vpack.c.b16 %v396, %v395
        %413 = vmatprep.subr.bf16.mxu0 0
        %414 = vmatpush1.bf16.msra.mxu0 %v397
        %415 = vmatprep.subr.bf16.mxu0 0
        %416 = vmatpush1.bf16.msra.mxu0 %v398
        %417 = vmatprep.subr.bf16.mxu0 0
        %418 = vmatpush1.bf16.msra.mxu0 %v399
        %419 = vmatprep.subr.bf16.mxu0 0
        %420 = vmatpush1.bf16.msra.mxu0 %v400
        %421 = vmatprep.subr.bf16.mxu0 0
        %422 = vmatpush1.bf16.msra.mxu0 %v401
        %423 = vmatprep.subr.bf16.mxu0 0
        %424 = vmatpush1.bf16.msra.mxu0 %v402
        %425 = vmatprep.subr.bf16.mxu0 0
        %426 = vmatpush1.bf16.msra.mxu0 %v403
        %427 = vmatprep.subr.bf16.mxu0 0
        %428 = vmatpush1.bf16.msra.mxu0 %v404
        %429 = vmatprep.subr.bf16.mxu0 0
        %430 = vmatpush1.bf16.msra.mxu0 0
        %431 = vmatprep.subr.bf16.mxu0 0
        %432 = vmatpush1.bf16.msra.mxu0 0
        %433 = vmatprep.subr.bf16.mxu0 0
        %434 = vmatpush1.bf16.msra.mxu0 0
        %435 = vmatprep.subr.bf16.mxu0 0
        %436 = vmatpush1.bf16.msra.mxu0 0
        %437 = vmatprep.subr.bf16.mxu0 0
        %438 = vmatpush1.bf16.msra.mxu0 0
        %439 = vmatprep.subr.bf16.mxu0 0
        %440 = vmatpush1.bf16.msra.mxu0 0
        %441 = vmatprep.subr.bf16.mxu0 0
        %442 = vmatpush1.bf16.msra.mxu0 0
        %443 = vmatprep.subr.bf16.mxu0 0
        %444 = vmatpush1.bf16.msra.mxu0 0
        %445 = vmatprep.mubr.bf16.mxu0 0
        %446 = vmatmul.mubr.bf16.gmra.mrb[0].mxu0 %v361
        %v447 = vpop.f32.mrb[0].mxu0
        %v448 = vadd.f32 %v351, %v447
        %v449 = vpop.f32.mrb[0].mxu0
        %v450 = vpop.f32.mrb[0].mxu0
        %v451 = vadd.f32 %v351, %v450
        %v452 = vpop.f32.mrb[0].mxu0
        %453 = vmatprep.mubr.bf16.mxu0 0
        %454 = vmatmul.mubr.bf16.gmra.mrb[0].mxu0 %v362
        %v455 = vpop.f32.mrb[0].mxu0
        %v456 = vadd.f32 %v351, %v455
        %v457 = vpop.f32.mrb[0].mxu0
        %v458 = vpop.f32.mrb[0].mxu0
        %v459 = vadd.f32 %v351, %v458
        %v460 = vpop.f32.mrb[0].mxu0
        %461 = vdwg.mxu0
        %v462 = vmax.f32 %v448, 0.0
        %v463 = vmax.f32 %v451, 0.0
        %v464 = vmax.f32 %v456, 0.0
        %v465 = vmax.f32 %v459, 0.0
        %v466 = vpack.c.bf16 %v463, %v462
        %v467 = vpack.c.bf16 %v465, %v464
        %v468 = vld [vmem:[%s3] sm:$0xf]
        %v469 = vld [vmem:[%s3 + $0x4] sm:$0xf]
        %v470 = vld [vmem:[%s3 + $0x8] sm:$0xf]
        %v471 = vld [vmem:[%s3 + $0xc] sm:$0xf]
        %v472 = vld [vmem:[%s3 + $0x10] sm:$0xf]
        %v473 = vld [vmem:[%s3 + $0x14] sm:$0xf]
        %v474 = vld [vmem:[%s3 + $0x18] sm:$0xf]
        %v475 = vld [vmem:[%s3 + $0x1c] sm:$0xf]
        %v476 = vld [vmem:[%s4] sm:$0x1]
        %v478 = vlaneseq
        %v479 = vshrl.u32 %v478, 7
        %v480 = vsub.s32 0, %v479
        %v481 = vrot.slane %v476, %v480
        %v491 = vunpack.c.l.b16 %v468
        %v492 = vunpack.c.l.b16 %v469
        %v493 = vunpack.c.l.b16 %v470
        %v494 = vunpack.c.l.b16 %v471
        %v495 = vunpack.c.l.b16 %v472
        %v496 = vunpack.c.l.b16 %v473
        %v497 = vunpack.c.l.b16 %v474
        %v498 = vunpack.c.l.b16 %v475
        %v499 = vpack.c.b16 %v492, %v491
        %v500 = vpack.c.b16 %v494, %v493
        %v501 = vpack.c.b16 %v496, %v495
        %v502 = vpack.c.b16 %v498, %v497
        %vm507 = vcmask 523264
        %v509 = vsel %vm507, %v466, 0
        %v512 = vsel %vm507, %v467, 0
        %514 = vmatprep.subr.bf16.mxu0 0
        %515 = vmatpush1.bf16.msra.mxu0 %v499
        %516 = vmatprep.subr.bf16.mxu0 0
        %517 = vmatpush1.bf16.msra.mxu0 %v500
        %518 = vmatprep.subr.bf16.mxu0 0
        %519 = vmatpush1.bf16.msra.mxu0 %v501
        %520 = vmatprep.subr.bf16.mxu0 0
        %521 = vmatpush1.bf16.msra.mxu0 %v502
        %522 = vmatprep.subr.bf16.mxu0 0
        %523 = vmatpush1.bf16.msra.mxu0 0
        %524 = vmatprep.subr.bf16.mxu0 0
        %525 = vmatpush1.bf16.msra.mxu0 0
        %526 = vmatprep.subr.bf16.mxu0 0
        %527 = vmatpush1.bf16.msra.mxu0 0
        %528 = vmatprep.subr.bf16.mxu0 0
        %529 = vmatpush1.bf16.msra.mxu0 0
        %530 = vmatprep.subr.bf16.mxu0 0
        %531 = vmatpush1.bf16.msra.mxu0 0
        %532 = vmatprep.subr.bf16.mxu0 0
        %533 = vmatpush1.bf16.msra.mxu0 0
        %534 = vmatprep.subr.bf16.mxu0 0
        %535 = vmatpush1.bf16.msra.mxu0 0
        %536 = vmatprep.subr.bf16.mxu0 0
        %537 = vmatpush1.bf16.msra.mxu0 0
        %538 = vmatprep.subr.bf16.mxu0 0
        %539 = vmatpush1.bf16.msra.mxu0 0
        %540 = vmatprep.subr.bf16.mxu0 0
        %541 = vmatpush1.bf16.msra.mxu0 0
        %542 = vmatprep.subr.bf16.mxu0 0
        %543 = vmatpush1.bf16.msra.mxu0 0
        %544 = vmatprep.subr.bf16.mxu0 0
        %545 = vmatpush1.bf16.msra.mxu0 0
        %546 = vmatprep.mubr.bf16.mxu0 0
        %547 = vmatmul.mubr.bf16.gmra.mrb[0].mxu0 %v509
        %v548 = vpop.f32.mrb[0].mxu0
        %v549 = vadd.f32 %v481, %v548
        %v550 = vpop.f32.mrb[0].mxu0
        %v551 = vpop.f32.mrb[0].mxu0
        %v552 = vadd.f32 %v481, %v551
        %v553 = vpop.f32.mrb[0].mxu0
        %554 = vmatprep.mubr.bf16.mxu0 0
        %555 = vmatmul.mubr.bf16.gmra.mrb[0].mxu0 %v512
        %v556 = vpop.f32.mrb[0].mxu0
        %v557 = vadd.f32 %v481, %v556
        %v558 = vpop.f32.mrb[0].mxu0
        %v559 = vpop.f32.mrb[0].mxu0
        %v560 = vadd.f32 %v481, %v559
        %v561 = vpop.f32.mrb[0].mxu0
        %562 = vdwg.mxu0
        %v563 = vmax.f32 %v549, 0.0
        %v564 = vmax.f32 %v552, 0.0
        %v565 = vmax.f32 %v557, 0.0
        %v566 = vmax.f32 %v560, 0.0
        %v567 = vpack.c.bf16 %v564, %v563
        %v568 = vpack.c.bf16 %v566, %v565
        %v569 = vld [vmem:[#allocation3] sm:$0xff]
        %v570 = vld [vmem:[#allocation3 + $0x8] sm:$0xff]
        %v571 = vld [vmem:[#allocation3 + $0x10] sm:$0xff]
        %v572 = vld [vmem:[#allocation3 + $0x18] sm:$0xff]
        %v573 = vld [vmem:[#allocation3 + $0x20] sm:$0xff]
        %v574 = vld [vmem:[#allocation3 + $0x28] sm:$0xff]
        %v575 = vld [vmem:[#allocation3 + $0x30] sm:$0xff]
        %v576 = vld [vmem:[#allocation3 + $0x38] sm:$0xff]
        %v577 = vld [vmem:[#allocation3 + $0x40] sm:$0xff]
        %v578 = vld [vmem:[#allocation3 + $0x48] sm:$0xff]
        %v579 = vld [vmem:[#allocation3 + $0x50] sm:$0xff]
        %v580 = vld [vmem:[#allocation3 + $0x58] sm:$0xff]
        %v581 = vld [vmem:[#allocation3 + $0x60] sm:$0xff]
        %v582 = vld [vmem:[#allocation3 + $0x68] sm:$0xff]
        %v583 = vld [vmem:[#allocation3 + $0x70] sm:$0xff]
        %v584 = vld [vmem:[#allocation3 + $0x78] sm:$0xff]
        %v585 = vld [vmem:[#allocation3 + $0x80] sm:$0xff]
        %v586 = vld [vmem:[#allocation3 + $0x88] sm:$0xff]
        %v587 = vld [vmem:[#allocation3 + $0x90] sm:$0xff]
        %v588 = vld [vmem:[#allocation3 + $0x98] sm:$0xff]
        %v589 = vld [vmem:[#allocation3 + $0xa0] sm:$0xff]
        %v590 = vld [vmem:[#allocation3 + $0xa8] sm:$0xff]
        %v591 = vld [vmem:[#allocation3 + $0xb0] sm:$0xff]
        %v592 = vld [vmem:[#allocation3 + $0xb8] sm:$0xff]
        %v593 = vld [vmem:[#allocation3 + $0xc0] sm:$0xff]
        %v594 = vld [vmem:[#allocation3 + $0xc8] sm:$0xff]
        %v595 = vld [vmem:[#allocation3 + $0xd0] sm:$0xff]
        %v596 = vld [vmem:[#allocation3 + $0xd8] sm:$0xff]
        %v597 = vld [vmem:[#allocation3 + $0xe0] sm:$0xff]
        %v598 = vld [vmem:[#allocation3 + $0xe8] sm:$0xff]
        %v599 = vld [vmem:[#allocation3 + $0xf0] sm:$0xff]
        %v600 = vld [vmem:[#allocation3 + $0xf8] sm:$0xff]
        %v601 = vld [vmem:[#allocation3 + $0x100] sm:$0xff]
        %v602 = vld [vmem:[#allocation3 + $0x108] sm:$0xff]
        %v603 = vld [vmem:[#allocation3 + $0x110] sm:$0xff]
        %v604 = vld [vmem:[#allocation3 + $0x118] sm:$0xff]
        %v605 = vld [vmem:[#allocation3 + $0x120] sm:$0xff]
        %v606 = vld [vmem:[#allocation3 + $0x128] sm:$0xff]
        %v607 = vld [vmem:[#allocation3 + $0x130] sm:$0xff]
        %v608 = vld [vmem:[#allocation3 + $0x138] sm:$0xff]
        %v609 = vld [vmem:[#allocation3 + $0x140] sm:$0xff]
        %v610 = vld [vmem:[#allocation3 + $0x148] sm:$0xff]
        %v611 = vld [vmem:[#allocation3 + $0x150] sm:$0xff]
        %v612 = vld [vmem:[#allocation3 + $0x158] sm:$0xff]
        %v613 = vld [vmem:[#allocation3 + $0x160] sm:$0xff]
        %v614 = vld [vmem:[#allocation3 + $0x168] sm:$0xff]
        %v615 = vld [vmem:[#allocation3 + $0x170] sm:$0xff]
        %v616 = vld [vmem:[#allocation3 + $0x178] sm:$0xff]
        %v617 = vld [vmem:[#allocation3 + $0x180] sm:$0xff]
        %v618 = vld [vmem:[#allocation3 + $0x188] sm:$0xff]
        %v619 = vld [vmem:[#allocation3 + $0x190] sm:$0xff]
        %v620 = vld [vmem:[#allocation3 + $0x198] sm:$0xff]
        %v621 = vld [vmem:[#allocation3 + $0x1a0] sm:$0xff]
        %v622 = vld [vmem:[#allocation3 + $0x1a8] sm:$0xff]
        %v623 = vld [vmem:[#allocation3 + $0x1b0] sm:$0xff]
        %v624 = vld [vmem:[#allocation3 + $0x1b8] sm:$0xff]
        %v625 = vld [vmem:[#allocation3 + $0x1c0] sm:$0xff]
        %v626 = vld [vmem:[#allocation3 + $0x1c8] sm:$0xff]
        %v627 = vld [vmem:[#allocation3 + $0x1d0] sm:$0xff]
        %v628 = vld [vmem:[#allocation3 + $0x1d8] sm:$0xff]
        %v629 = vld [vmem:[#allocation3 + $0x1e0] sm:$0xff]
        %v630 = vld [vmem:[#allocation3 + $0x1e8] sm:$0xff]
        %v631 = vld [vmem:[#allocation3 + $0x1f0] sm:$0xff]
        %v632 = vld [vmem:[#allocation3 + $0x1f8] sm:$0xff]
        %v697 = vunpack.c.l.b16 %v569
        %v698 = vunpack.c.h.b16 %v569
        %v699 = vunpack.c.l.b16 %v570
        %v700 = vunpack.c.h.b16 %v570
        %v701 = vunpack.c.l.b16 %v571
        %v702 = vunpack.c.h.b16 %v571
        %v703 = vunpack.c.l.b16 %v572
        %v704 = vunpack.c.h.b16 %v572
        %v705 = vunpack.c.l.b16 %v573
        %v706 = vunpack.c.h.b16 %v573
        %v707 = vunpack.c.l.b16 %v574
        %v708 = vunpack.c.h.b16 %v574
        %v709 = vunpack.c.l.b16 %v575
        %v710 = vunpack.c.h.b16 %v575
        %v711 = vunpack.c.l.b16 %v576
        %v712 = vunpack.c.h.b16 %v576
        %v713 = vunpack.c.l.b16 %v577
        %v714 = vunpack.c.h.b16 %v577
        %v715 = vunpack.c.l.b16 %v578
        %v716 = vunpack.c.h.b16 %v578
        %v717 = vunpack.c.l.b16 %v579
        %v718 = vunpack.c.h.b16 %v579
        %v719 = vunpack.c.l.b16 %v580
        %v720 = vunpack.c.h.b16 %v580
        %v721 = vunpack.c.l.b16 %v581
        %v722 = vunpack.c.h.b16 %v581
        %v723 = vunpack.c.l.b16 %v582
        %v724 = vunpack.c.h.b16 %v582
        %v725 = vunpack.c.l.b16 %v583
        %v726 = vunpack.c.h.b16 %v583
        %v727 = vunpack.c.l.b16 %v584
        %v728 = vunpack.c.h.b16 %v584
        %v729 = vunpack.c.l.b16 %v585
        %v730 = vunpack.c.h.b16 %v585
        %v731 = vunpack.c.l.b16 %v586
        %v732 = vunpack.c.h.b16 %v586
        %v733 = vunpack.c.l.b16 %v587
        %v734 = vunpack.c.h.b16 %v587
        %v735 = vunpack.c.l.b16 %v588
        %v736 = vunpack.c.h.b16 %v588
        %v737 = vunpack.c.l.b16 %v589
        %v738 = vunpack.c.h.b16 %v589
        %v739 = vunpack.c.l.b16 %v590
        %v740 = vunpack.c.h.b16 %v590
        %v741 = vunpack.c.l.b16 %v591
        %v742 = vunpack.c.h.b16 %v591
        %v743 = vunpack.c.l.b16 %v592
        %v744 = vunpack.c.h.b16 %v592
        %v745 = vunpack.c.l.b16 %v593
        %v746 = vunpack.c.h.b16 %v593
        %v747 = vunpack.c.l.b16 %v594
        %v748 = vunpack.c.h.b16 %v594
        %v749 = vunpack.c.l.b16 %v595
        %v750 = vunpack.c.h.b16 %v595
        %v751 = vunpack.c.l.b16 %v596
        %v752 = vunpack.c.h.b16 %v596
        %v753 = vunpack.c.l.b16 %v597
        %v754 = vunpack.c.h.b16 %v597
        %v755 = vunpack.c.l.b16 %v598
        %v756 = vunpack.c.h.b16 %v598
        %v757 = vunpack.c.l.b16 %v599
        %v758 = vunpack.c.h.b16 %v599
        %v759 = vunpack.c.l.b16 %v600
        %v760 = vunpack.c.h.b16 %v600
        %v761 = vunpack.c.l.b16 %v601
        %v762 = vunpack.c.h.b16 %v601
        %v763 = vunpack.c.l.b16 %v602
        %v764 = vunpack.c.h.b16 %v602
        %v765 = vunpack.c.l.b16 %v603
        %v766 = vunpack.c.h.b16 %v603
        %v767 = vunpack.c.l.b16 %v604
        %v768 = vunpack.c.h.b16 %v604
        %v769 = vunpack.c.l.b16 %v605
        %v770 = vunpack.c.h.b16 %v605
        %v771 = vunpack.c.l.b16 %v606
        %v772 = vunpack.c.h.b16 %v606
        %v773 = vunpack.c.l.b16 %v607
        %v774 = vunpack.c.h.b16 %v607
        %v775 = vunpack.c.l.b16 %v608
        %v776 = vunpack.c.h.b16 %v608
        %v777 = vunpack.c.l.b16 %v609
        %v778 = vunpack.c.h.b16 %v609
        %v779 = vunpack.c.l.b16 %v610
        %v780 = vunpack.c.h.b16 %v610
        %v781 = vunpack.c.l.b16 %v611
        %v782 = vunpack.c.h.b16 %v611
        %v783 = vunpack.c.l.b16 %v612
        %v784 = vunpack.c.h.b16 %v612
        %v785 = vunpack.c.l.b16 %v613
        %v786 = vunpack.c.h.b16 %v613
        %v787 = vunpack.c.l.b16 %v614
        %v788 = vunpack.c.h.b16 %v614
        %v789 = vunpack.c.l.b16 %v615
        %v790 = vunpack.c.h.b16 %v615
        %v791 = vunpack.c.l.b16 %v616
        %v792 = vunpack.c.h.b16 %v616
        %v793 = vunpack.c.l.b16 %v617
        %v794 = vunpack.c.h.b16 %v617
        %v795 = vunpack.c.l.b16 %v618
        %v796 = vunpack.c.h.b16 %v618
        %v797 = vunpack.c.l.b16 %v619
        %v798 = vunpack.c.h.b16 %v619
        %v799 = vunpack.c.l.b16 %v620
        %v800 = vunpack.c.h.b16 %v620
        %v801 = vunpack.c.l.b16 %v621
        %v802 = vunpack.c.h.b16 %v621
        %v803 = vunpack.c.l.b16 %v622
        %v804 = vunpack.c.h.b16 %v622
        %v805 = vunpack.c.l.b16 %v623
        %v806 = vunpack.c.h.b16 %v623
        %v807 = vunpack.c.l.b16 %v624
        %v808 = vunpack.c.h.b16 %v624
        %v809 = vunpack.c.l.b16 %v625
        %v810 = vunpack.c.h.b16 %v625
        %v811 = vunpack.c.l.b16 %v626
        %v812 = vunpack.c.h.b16 %v626
        %v813 = vunpack.c.l.b16 %v627
        %v814 = vunpack.c.h.b16 %v627
        %v815 = vunpack.c.l.b16 %v628
        %v816 = vunpack.c.h.b16 %v628
        %v817 = vunpack.c.l.b16 %v629
        %v818 = vunpack.c.h.b16 %v629
        %v819 = vunpack.c.l.b16 %v630
        %v820 = vunpack.c.h.b16 %v630
        %v821 = vunpack.c.l.b16 %v631
        %v822 = vunpack.c.h.b16 %v631
        %v823 = vunpack.c.l.b16 %v632
        %v824 = vunpack.c.h.b16 %v632
        %v825 = vpack.c.b16 %v705, %v697
        %v826 = vpack.c.b16 %v706, %v698
        %v827 = vpack.c.b16 %v707, %v699
        %v828 = vpack.c.b16 %v708, %v700
        %v829 = vpack.c.b16 %v709, %v701
        %v830 = vpack.c.b16 %v710, %v702
        %v831 = vpack.c.b16 %v711, %v703
        %v832 = vpack.c.b16 %v712, %v704
        %v833 = vpack.c.b16 %v721, %v713
        %v834 = vpack.c.b16 %v722, %v714
        %v835 = vpack.c.b16 %v723, %v715
        %v836 = vpack.c.b16 %v724, %v716
        %v837 = vpack.c.b16 %v725, %v717
        %v838 = vpack.c.b16 %v726, %v718
        %v839 = vpack.c.b16 %v727, %v719
        %v840 = vpack.c.b16 %v728, %v720
        %v841 = vpack.c.b16 %v737, %v729
        %v842 = vpack.c.b16 %v738, %v730
        %v843 = vpack.c.b16 %v739, %v731
        %v844 = vpack.c.b16 %v740, %v732
        %v845 = vpack.c.b16 %v741, %v733
        %v846 = vpack.c.b16 %v742, %v734
        %v847 = vpack.c.b16 %v743, %v735
        %v848 = vpack.c.b16 %v744, %v736
        %v849 = vpack.c.b16 %v753, %v745
        %v850 = vpack.c.b16 %v754, %v746
        %v851 = vpack.c.b16 %v755, %v747
        %v852 = vpack.c.b16 %v756, %v748
        %v853 = vpack.c.b16 %v757, %v749
        %v854 = vpack.c.b16 %v758, %v750
        %v855 = vpack.c.b16 %v759, %v751
        %v856 = vpack.c.b16 %v760, %v752
        %v857 = vpack.c.b16 %v769, %v761
        %v858 = vpack.c.b16 %v770, %v762
        %v859 = vpack.c.b16 %v771, %v763
        %v860 = vpack.c.b16 %v772, %v764
        %v861 = vpack.c.b16 %v773, %v765
        %v862 = vpack.c.b16 %v774, %v766
        %v863 = vpack.c.b16 %v775, %v767
        %v864 = vpack.c.b16 %v776, %v768
        %v865 = vpack.c.b16 %v785, %v777
        %v866 = vpack.c.b16 %v786, %v778
        %v867 = vpack.c.b16 %v787, %v779
        %v868 = vpack.c.b16 %v788, %v780
        %v869 = vpack.c.b16 %v789, %v781
        %v870 = vpack.c.b16 %v790, %v782
        %v871 = vpack.c.b16 %v791, %v783
        %v872 = vpack.c.b16 %v792, %v784
        %v873 = vpack.c.b16 %v801, %v793
        %v874 = vpack.c.b16 %v802, %v794
        %v875 = vpack.c.b16 %v803, %v795
        %v876 = vpack.c.b16 %v804, %v796
        %v877 = vpack.c.b16 %v805, %v797
        %v878 = vpack.c.b16 %v806, %v798
        %v879 = vpack.c.b16 %v807, %v799
        %v880 = vpack.c.b16 %v808, %v800
        %v881 = vpack.c.b16 %v817, %v809
        %v882 = vpack.c.b16 %v818, %v810
        %v883 = vpack.c.b16 %v819, %v811
        %v884 = vpack.c.b16 %v820, %v812
        %v885 = vpack.c.b16 %v821, %v813
        %v886 = vpack.c.b16 %v822, %v814
        %v887 = vpack.c.b16 %v823, %v815
        %v888 = vpack.c.b16 %v824, %v816
        %953 = vmatprep.subr.bf16.mxu0 %v826
        %954 = vmatpush1.bf16.msra.mxu0 %v825
        %955 = vmatprep.subr.bf16.mxu0 %v834
        %956 = vmatpush1.bf16.msra.mxu0 %v833
        %957 = vmatprep.subr.bf16.mxu0 %v842
        %958 = vmatpush1.bf16.msra.mxu0 %v841
        %959 = vmatprep.subr.bf16.mxu0 %v850
        %960 = vmatpush1.bf16.msra.mxu0 %v849
        %961 = vmatprep.subr.bf16.mxu0 %v858
        %962 = vmatpush1.bf16.msra.mxu0 %v857
        %963 = vmatprep.subr.bf16.mxu0 %v866
        %964 = vmatpush1.bf16.msra.mxu0 %v865
        %965 = vmatprep.subr.bf16.mxu0 %v874
        %966 = vmatpush1.bf16.msra.mxu0 %v873
        %967 = vmatprep.subr.bf16.mxu0 %v882
        %968 = vmatpush1.bf16.msra.mxu0 %v881
        %969 = vmatprep.subr.bf16.mxu0 0
        %970 = vmatpush1.bf16.msra.mxu0 0
        %971 = vmatprep.subr.bf16.mxu0 0
        %972 = vmatpush1.bf16.msra.mxu0 0
        %973 = vmatprep.subr.bf16.mxu0 0
        %974 = vmatpush1.bf16.msra.mxu0 0
        %975 = vmatprep.subr.bf16.mxu0 0
        %976 = vmatpush1.bf16.msra.mxu0 0
        %977 = vmatprep.subr.bf16.mxu0 0
        %978 = vmatpush1.bf16.msra.mxu0 0
        %979 = vmatprep.subr.bf16.mxu0 0
        %980 = vmatpush1.bf16.msra.mxu0 0
        %981 = vmatprep.subr.bf16.mxu0 0
        %982 = vmatpush1.bf16.msra.mxu0 0
        %983 = vmatprep.subr.bf16.mxu0 0
        %984 = vmatpush1.bf16.msra.mxu0 0
        %985 = vmatprep.mubr.bf16.mxu0 0
        %986 = vmatmul.mubr.bf16.gmra.mrb[0].mxu0 %v567
        %v987 = vpop.f32.mrb[0].mxu0
        %v988 = vadd.f32 0.0, %v987
        %v989 = vpop.f32.mrb[0].mxu0
        %v990 = vadd.f32 0.0, %v989
        %v991 = vpop.f32.mrb[0].mxu0
        %v992 = vadd.f32 0.0, %v991
        %v993 = vpop.f32.mrb[0].mxu0
        %v994 = vadd.f32 0.0, %v993
        %995 = vmatprep.mubr.bf16.mxu0 0
        %996 = vmatmul.mubr.bf16.gmra.mrb[0].mxu0 %v568
        %v997 = vpop.f32.mrb[0].mxu0
        %v998 = vadd.f32 0.0, %v997
        %v999 = vpop.f32.mrb[0].mxu0
        %v1000 = vadd.f32 0.0, %v999
        %v1001 = vpop.f32.mrb[0].mxu0
        %v1002 = vadd.f32 0.0, %v1001
        %v1003 = vpop.f32.mrb[0].mxu0
        %v1004 = vadd.f32 0.0, %v1003
        %1005 = vdwg.mxu0
        %1006 = vmatprep.subr.bf16.mxu0 %v828
        %1007 = vmatpush1.bf16.msra.mxu0 %v827
        %1008 = vmatprep.subr.bf16.mxu0 %v836
        %1009 = vmatpush1.bf16.msra.mxu0 %v835
        %1010 = vmatprep.subr.bf16.mxu0 %v844
        %1011 = vmatpush1.bf16.msra.mxu0 %v843
        %1012 = vmatprep.subr.bf16.mxu0 %v852
        %1013 = vmatpush1.bf16.msra.mxu0 %v851
        %1014 = vmatprep.subr.bf16.mxu0 %v860
        %1015 = vmatpush1.bf16.msra.mxu0 %v859
        %1016 = vmatprep.subr.bf16.mxu0 %v868
        %1017 = vmatpush1.bf16.msra.mxu0 %v867
        %1018 = vmatprep.subr.bf16.mxu0 %v876
        %1019 = vmatpush1.bf16.msra.mxu0 %v875
        %1020 = vmatprep.subr.bf16.mxu0 %v884
        %1021 = vmatpush1.bf16.msra.mxu0 %v883
        %1022 = vmatprep.subr.bf16.mxu0 0
        %1023 = vmatpush1.bf16.msra.mxu0 0
        %1024 = vmatprep.subr.bf16.mxu0 0
        %1025 = vmatpush1.bf16.msra.mxu0 0
        %1026 = vmatprep.subr.bf16.mxu0 0
        %1027 = vmatpush1.bf16.msra.mxu0 0
        %1028 = vmatprep.subr.bf16.mxu0 0
        %1029 = vmatpush1.bf16.msra.mxu0 0
        %1030 = vmatprep.subr.bf16.mxu0 0
        %1031 = vmatpush1.bf16.msra.mxu0 0
        %1032 = vmatprep.subr.bf16.mxu0 0
        %1033 = vmatpush1.bf16.msra.mxu0 0
        %1034 = vmatprep.subr.bf16.mxu0 0
        %1035 = vmatpush1.bf16.msra.mxu0 0
        %1036 = vmatprep.subr.bf16.mxu0 0
        %1037 = vmatpush1.bf16.msra.mxu0 0
        %1038 = vmatprep.mubr.bf16.mxu0 0
        %1039 = vmatmul.mubr.bf16.gmra.mrb[0].mxu0 %v567
        %v1040 = vpop.f32.mrb[0].mxu0
        %v1041 = vadd.f32 0.0, %v1040
        %v1042 = vpop.f32.mrb[0].mxu0
        %v1043 = vadd.f32 0.0, %v1042
        %v1044 = vpop.f32.mrb[0].mxu0
        %v1045 = vadd.f32 0.0, %v1044
        %v1046 = vpop.f32.mrb[0].mxu0
        %v1047 = vadd.f32 0.0, %v1046
        %1048 = vmatprep.mubr.bf16.mxu0 0
        %1049 = vmatmul.mubr.bf16.gmra.mrb[0].mxu0 %v568
        %v1050 = vpop.f32.mrb[0].mxu0
        %v1051 = vadd.f32 0.0, %v1050
        %v1052 = vpop.f32.mrb[0].mxu0
        %v1053 = vadd.f32 0.0, %v1052
        %v1054 = vpop.f32.mrb[0].mxu0
        %v1055 = vadd.f32 0.0, %v1054
        %v1056 = vpop.f32.mrb[0].mxu0
        %v1057 = vadd.f32 0.0, %v1056
        %1058 = vdwg.mxu0
        %1059 = vmatprep.subr.bf16.mxu0 %v830
        %1060 = vmatpush1.bf16.msra.mxu0 %v829
        %1061 = vmatprep.subr.bf16.mxu0 %v838
        %1062 = vmatpush1.bf16.msra.mxu0 %v837
        %1063 = vmatprep.subr.bf16.mxu0 %v846
        %1064 = vmatpush1.bf16.msra.mxu0 %v845
        %1065 = vmatprep.subr.bf16.mxu0 %v854
        %1066 = vmatpush1.bf16.msra.mxu0 %v853
        %1067 = vmatprep.subr.bf16.mxu0 %v862
        %1068 = vmatpush1.bf16.msra.mxu0 %v861
        %1069 = vmatprep.subr.bf16.mxu0 %v870
        %1070 = vmatpush1.bf16.msra.mxu0 %v869
        %1071 = vmatprep.subr.bf16.mxu0 %v878
        %1072 = vmatpush1.bf16.msra.mxu0 %v877
        %1073 = vmatprep.subr.bf16.mxu0 %v886
        %1074 = vmatpush1.bf16.msra.mxu0 %v885
        %1075 = vmatprep.subr.bf16.mxu0 0
        %1076 = vmatpush1.bf16.msra.mxu0 0
        %1077 = vmatprep.subr.bf16.mxu0 0
        %1078 = vmatpush1.bf16.msra.mxu0 0
        %1079 = vmatprep.subr.bf16.mxu0 0
        %1080 = vmatpush1.bf16.msra.mxu0 0
        %1081 = vmatprep.subr.bf16.mxu0 0
        %1082 = vmatpush1.bf16.msra.mxu0 0
        %1083 = vmatprep.subr.bf16.mxu0 0
        %1084 = vmatpush1.bf16.msra.mxu0 0
        %1085 = vmatprep.subr.bf16.mxu0 0
        %1086 = vmatpush1.bf16.msra.mxu0 0
        %1087 = vmatprep.subr.bf16.mxu0 0
        %1088 = vmatpush1.bf16.msra.mxu0 0
        %1089 = vmatprep.subr.bf16.mxu0 0
        %1090 = vmatpush1.bf16.msra.mxu0 0
        %1091 = vmatprep.mubr.bf16.mxu0 0
        %1092 = vmatmul.mubr.bf16.gmra.mrb[0].mxu0 %v567
        %v1093 = vpop.f32.mrb[0].mxu0
        %v1094 = vadd.f32 0.0, %v1093
        %v1095 = vpop.f32.mrb[0].mxu0
        %v1096 = vadd.f32 0.0, %v1095
        %v1097 = vpop.f32.mrb[0].mxu0
        %v1098 = vadd.f32 0.0, %v1097
        %v1099 = vpop.f32.mrb[0].mxu0
        %v1100 = vadd.f32 0.0, %v1099
        %1101 = vmatprep.mubr.bf16.mxu0 0
        %1102 = vmatmul.mubr.bf16.gmra.mrb[0].mxu0 %v568
        %v1103 = vpop.f32.mrb[0].mxu0
        %v1104 = vadd.f32 0.0, %v1103
        %v1105 = vpop.f32.mrb[0].mxu0
        %v1106 = vadd.f32 0.0, %v1105
        %v1107 = vpop.f32.mrb[0].mxu0
        %v1108 = vadd.f32 0.0, %v1107
        %v1109 = vpop.f32.mrb[0].mxu0
        %v1110 = vadd.f32 0.0, %v1109
        %1111 = vdwg.mxu0
        %1112 = vmatprep.subr.bf16.mxu0 %v832
        %1113 = vmatpush1.bf16.msra.mxu0 %v831
        %1114 = vmatprep.subr.bf16.mxu0 %v840
        %1115 = vmatpush1.bf16.msra.mxu0 %v839
        %1116 = vmatprep.subr.bf16.mxu0 %v848
        %1117 = vmatpush1.bf16.msra.mxu0 %v847
        %1118 = vmatprep.subr.bf16.mxu0 %v856
        %1119 = vmatpush1.bf16.msra.mxu0 %v855
        %1120 = vmatprep.subr.bf16.mxu0 %v864
        %1121 = vmatpush1.bf16.msra.mxu0 %v863
        %1122 = vmatprep.subr.bf16.mxu0 %v872
        %1123 = vmatpush1.bf16.msra.mxu0 %v871
        %1124 = vmatprep.subr.bf16.mxu0 %v880
        %1125 = vmatpush1.bf16.msra.mxu0 %v879
        %1126 = vmatprep.subr.bf16.mxu0 %v888
        %1127 = vmatpush1.bf16.msra.mxu0 %v887
        %1128 = vmatprep.subr.bf16.mxu0 0
        %1129 = vmatpush1.bf16.msra.mxu0 0
        %1130 = vmatprep.subr.bf16.mxu0 0
        %1131 = vmatpush1.bf16.msra.mxu0 0
        %1132 = vmatprep.subr.bf16.mxu0 0
        %1133 = vmatpush1.bf16.msra.mxu0 0
        %1134 = vmatprep.subr.bf16.mxu0 0
        %1135 = vmatpush1.bf16.msra.mxu0 0
        %1136 = vmatprep.subr.bf16.mxu0 0
        %1137 = vmatpush1.bf16.msra.mxu0 0
        %1138 = vmatprep.subr.bf16.mxu0 0
        %1139 = vmatpush1.bf16.msra.mxu0 0
        %1140 = vmatprep.subr.bf16.mxu0 0
        %1141 = vmatpush1.bf16.msra.mxu0 0
        %1142 = vmatprep.subr.bf16.mxu0 0
        %1143 = vmatpush1.bf16.msra.mxu0 0
        %1144 = vmatprep.mubr.bf16.mxu0 0
        %1145 = vmatmul.mubr.bf16.gmra.mrb[0].mxu0 %v567
        %v1146 = vpop.f32.mrb[0].mxu0
        %v1147 = vadd.f32 0.0, %v1146
        %v1148 = vpop.f32.mrb[0].mxu0
        %v1149 = vadd.f32 0.0, %v1148
        %v1150 = vpop.f32.mrb[0].mxu0
        %v1151 = vadd.f32 0.0, %v1150
        %v1152 = vpop.f32.mrb[0].mxu0
        %v1153 = vadd.f32 0.0, %v1152
        %1154 = vmatprep.mubr.bf16.mxu0 0
        %1155 = vmatmul.mubr.bf16.gmra.mrb[0].mxu0 %v568
        %v1156 = vpop.f32.mrb[0].mxu0
        %v1157 = vadd.f32 0.0, %v1156
        %v1158 = vpop.f32.mrb[0].mxu0
        %v1159 = vadd.f32 0.0, %v1158
        %v1160 = vpop.f32.mrb[0].mxu0
        %v1161 = vadd.f32 0.0, %v1160
        %v1162 = vpop.f32.mrb[0].mxu0
        %v1163 = vadd.f32 0.0, %v1162
        %1164 = vdwg.mxu0
        %p1165 = scmp.eq.s32.totalorder %s24, 2
        // Predicated region
        $region57: #{stn3d_forward.2} parent=47 // pred_check
          %p1166 = pneg %p1165
        $region58: #{stn3d_forward.2} parent=47 // pred_check_branch
          %1168 = sbr.rel (%p1166) target = $region60
        $region59: #{stn3d_forward.2} parent=47 // pred_region
          %v1169 = vlaneseq
          %v1170 = vshrl.u32 %v1169, 7
          %v1171 = vadd.s32 %v1170, 8
          %v1172 = vadd.s32 %v1170, 16
          %v1173 = vadd.s32 %v1170, 24
          %s1174 = smul.u32 %s24, 32
          %v1175 = vstv %s1174
          %v1176 = vadd.s32 %v1175, %v1170
          %v1177 = vadd.s32 %v1175, %v1171
          %v1178 = vadd.s32 %v1175, %v1172
          %v1179 = vadd.s32 %v1175, %v1173
          %vm1180 = vcmp.lt.s32.totalorder %v1176, 80
          %vm1181 = vcmp.lt.s32.totalorder %v1177, 80
          %vm1182 = vcmp.lt.s32.totalorder %v1178, 80
          %vm1183 = vcmp.lt.s32.totalorder %v1179, 80
          %v1184 = vsel %vm1180, 1, 0
          %v1185 = vsel %vm1181, 1, 0
          %v1186 = vsel %vm1182, 1, 0
          %v1187 = vsel %vm1183, 1, 0
          %vm1188 = vcmp.eq.s32.totalorder %v1184, 1
          %vm1189 = vcmp.eq.s32.totalorder %v1185, 1
          %vm1190 = vcmp.eq.s32.totalorder %v1186, 1
          %vm1191 = vcmp.eq.s32.totalorder %v1187, 1
          %v1192 = vsel %vm1188, %v988, -inf
          %v1193 = vsel %vm1188, %v990, -inf
          %v1194 = vsel %vm1188, %v1041, -inf
          %v1195 = vsel %vm1188, %v1043, -inf
          %v1196 = vsel %vm1188, %v1094, -inf
          %v1197 = vsel %vm1188, %v1096, -inf
          %v1198 = vsel %vm1188, %v1147, -inf
          %v1199 = vsel %vm1188, %v1149, -inf
          %v1200 = vsel %vm1189, %v992, -inf
          %v1201 = vsel %vm1189, %v994, -inf
          %v1202 = vsel %vm1189, %v1045, -inf
          %v1203 = vsel %vm1189, %v1047, -inf
          %v1204 = vsel %vm1189, %v1098, -inf
          %v1205 = vsel %vm1189, %v1100, -inf
          %v1206 = vsel %vm1189, %v1151, -inf
          %v1207 = vsel %vm1189, %v1153, -inf
          %v1208 = vsel %vm1190, %v998, -inf
          %v1209 = vsel %vm1190, %v1000, -inf
          %v1210 = vsel %vm1190, %v1051, -inf
          %v1211 = vsel %vm1190, %v1053, -inf
          %v1212 = vsel %vm1190, %v1104, -inf
          %v1213 = vsel %vm1190, %v1106, -inf
          %v1214 = vsel %vm1190, %v1157, -inf
          %v1215 = vsel %vm1190, %v1159, -inf
          %v1216 = vsel %vm1191, %v1002, -inf
          %v1217 = vsel %vm1191, %v1004, -inf
          %v1218 = vsel %vm1191, %v1055, -inf
          %v1219 = vsel %vm1191, %v1057, -inf
          %v1220 = vsel %vm1191, %v1108, -inf
          %v1221 = vsel %vm1191, %v1110, -inf
          %v1222 = vsel %vm1191, %v1161, -inf
          %v1223 = vsel %vm1191, %v1163, -inf
          %v1224 = vld [vmem:[#allocation2] sm:$0xff]
          %v1225 = vmax.f32 %v1192, %v1200
          %v1226 = vmax.f32 %v1225, %v1208
          %v1227 = vmax.f32 %v1226, %v1216
          %v1228 = vrot.slane %v1227, 4
          %v1229 = vmax.f32 %v1227, %v1228
          %v1230 = vrot.slane %v1229, 2
          %v1231 = vmax.f32 %v1229, %v1230
          %v1232 = vrot.slane %v1231, 1
          %v1233 = vmax.f32 %v1231, %v1232
          %v1234 = vmax.f32 %v1193, %v1201
          %v1235 = vmax.f32 %v1234, %v1209
          %v1236 = vmax.f32 %v1235, %v1217
          %v1237 = vrot.slane %v1236, 4
          %v1238 = vmax.f32 %v1236, %v1237
          %v1239 = vrot.slane %v1238, 2
          %v1240 = vmax.f32 %v1238, %v1239
          %v1241 = vrot.slane %v1240, 1
          %v1242 = vmax.f32 %v1240, %v1241
          %v1243 = vmax.f32 %v1194, %v1202
          %v1244 = vmax.f32 %v1243, %v1210
          %v1245 = vmax.f32 %v1244, %v1218
          %v1246 = vrot.slane %v1245, 4
          %v1247 = vmax.f32 %v1245, %v1246
          %v1248 = vrot.slane %v1247, 2
          %v1249 = vmax.f32 %v1247, %v1248
          %v1250 = vrot.slane %v1249, 1
          %v1251 = vmax.f32 %v1249, %v1250
          %v1252 = vmax.f32 %v1195, %v1203
          %v1253 = vmax.f32 %v1252, %v1211
          %v1254 = vmax.f32 %v1253, %v1219
          %v1255 = vrot.slane %v1254, 4
          %v1256 = vmax.f32 %v1254, %v1255
          %v1257 = vrot.slane %v1256, 2
          %v1258 = vmax.f32 %v1256, %v1257
          %v1259 = vrot.slane %v1258, 1
          %v1260 = vmax.f32 %v1258, %v1259
          %v1261 = vmax.f32 %v1196, %v1204
          %v1262 = vmax.f32 %v1261, %v1212
          %v1263 = vmax.f32 %v1262, %v1220
          %v1264 = vrot.slane %v1263, 4
          %v1265 = vmax.f32 %v1263, %v1264
          %v1266 = vrot.slane %v1265, 2
          %v1267 = vmax.f32 %v1265, %v1266
          %v1268 = vrot.slane %v1267, 1
          %v1269 = vmax.f32 %v1267, %v1268
          %v1270 = vmax.f32 %v1197, %v1205
          %v1271 = vmax.f32 %v1270, %v1213
          %v1272 = vmax.f32 %v1271, %v1221
          %v1273 = vrot.slane %v1272, 4
          %v1274 = vmax.f32 %v1272, %v1273
          %v1275 = vrot.slane %v1274, 2
          %v1276 = vmax.f32 %v1274, %v1275
          %v1277 = vrot.slane %v1276, 1
          %v1278 = vmax.f32 %v1276, %v1277
          %v1279 = vmax.f32 %v1198, %v1206
          %v1280 = vmax.f32 %v1279, %v1214
          %v1281 = vmax.f32 %v1280, %v1222
          %v1282 = vrot.slane %v1281, 4
          %v1283 = vmax.f32 %v1281, %v1282
          %v1284 = vrot.slane %v1283, 2
          %v1285 = vmax.f32 %v1283, %v1284
          %v1286 = vrot.slane %v1285, 1
          %v1287 = vmax.f32 %v1285, %v1286
          %v1288 = vmax.f32 %v1199, %v1207
          %v1289 = vmax.f32 %v1288, %v1215
          %v1290 = vmax.f32 %v1289, %v1223
          %v1291 = vrot.slane %v1290, 4
          %v1292 = vmax.f32 %v1290, %v1291
          %v1293 = vrot.slane %v1292, 2
          %v1294 = vmax.f32 %v1292, %v1293
          %v1295 = vrot.slane %v1294, 1
          %v1296 = vmax.f32 %v1294, %v1295
          %v1305 = vcombine.low %v1233, %v1242
          %v1306 = vcombine.low %v1251, %v1260
          %v1307 = vcombine.low %v1269, %v1278
          %v1308 = vcombine.low %v1287, %v1296
          %v1310 = vunpack.c.l.s4 1966171168
          %v1311 = vunpack.c.0.s8 %v1310
          %v1312 = vlaneseq
          %v1313 = vshrl.u32 %v1312, 7
          %v1314 = vsub.s32 %v1311, %v1313
          %v1315 = vrot.slane %v1305, %v1314
          %v1317 = vunpack.c.l.s4 1966171168
          %v1318 = vunpack.c.0.s8 %v1317
          %v1319 = vlaneseq
          %v1320 = vshrl.u32 %v1319, 7
          %v1321 = vsub.s32 %v1318, %v1320
          %v1322 = vrot.slane %v1306, %v1321
          %v1324 = vunpack.c.l.s4 1966171168
          %v1325 = vunpack.c.0.s8 %v1324
          %v1326 = vlaneseq
          %v1327 = vshrl.u32 %v1326, 7
          %v1328 = vsub.s32 %v1325, %v1327
          %v1329 = vrot.slane %v1307, %v1328
          %v1331 = vunpack.c.l.s4 1966171168
          %v1332 = vunpack.c.0.s8 %v1331
          %v1333 = vlaneseq
          %v1334 = vshrl.u32 %v1333, 7
          %v1335 = vsub.s32 %v1332, %v1334
          %v1336 = vrot.slane %v1308, %v1335
          %v1337 = vcombine.low %v1315, %v1322
          %v1338 = vcombine.low %v1329, %v1336
          %v1340 = vunpack.c.l.s4 1966171168
          %v1341 = vunpack.c.0.s8 %v1340
          %v1342 = vlaneseq
          %v1343 = vshrl.u32 %v1342, 7
          %v1344 = vsub.s32 %v1341, %v1343
          %v1345 = vrot.slane %v1337, %v1344
          %v1347 = vunpack.c.l.s4 1966171168
          %v1348 = vunpack.c.0.s8 %v1347
          %v1349 = vlaneseq
          %v1350 = vshrl.u32 %v1349, 7
          %v1351 = vsub.s32 %v1348, %v1350
          %v1352 = vrot.slane %v1338, %v1351
          %v1353 = vcombine.low %v1345, %v1352
          %v1355 = vmax.f32 %v1224, %v1353
          %1356 = vst [vmem:[#allocation2] sm:$0xff] %v1355
        $region60: #{stn3d_forward.2} parent=47 // pred_fallthru
          _
        %p1357 = scmp.ne.s32.totalorder %s24, 2
        // Predicated region
        $region61: #{stn3d_forward.2} parent=47 // pred_check
          %p1358 = pneg %p1357
        $region62: #{stn3d_forward.2} parent=47 // pred_check_branch
          %1360 = sbr.rel (%p1358) target = $region64
        $region63: #{stn3d_forward.2} parent=47 // pred_region
          %v1361 = vld [vmem:[#allocation2] sm:$0xff]
          %v1362 = vmax.f32 %v988, %v992
          %v1363 = vmax.f32 %v1362, %v998
          %v1364 = vmax.f32 %v1363, %v1002
          %v1365 = vrot.slane %v1364, 4
          %v1366 = vmax.f32 %v1364, %v1365
          %v1367 = vrot.slane %v1366, 2
          %v1368 = vmax.f32 %v1366, %v1367
          %v1369 = vrot.slane %v1368, 1
          %v1370 = vmax.f32 %v1368, %v1369
          %v1371 = vmax.f32 %v990, %v994
          %v1372 = vmax.f32 %v1371, %v1000
          %v1373 = vmax.f32 %v1372, %v1004
          %v1374 = vrot.slane %v1373, 4
          %v1375 = vmax.f32 %v1373, %v1374
          %v1376 = vrot.slane %v1375, 2
          %v1377 = vmax.f32 %v1375, %v1376
          %v1378 = vrot.slane %v1377, 1
          %v1379 = vmax.f32 %v1377, %v1378
          %v1380 = vmax.f32 %v1041, %v1045
          %v1381 = vmax.f32 %v1380, %v1051
          %v1382 = vmax.f32 %v1381, %v1055
          %v1383 = vrot.slane %v1382, 4
          %v1384 = vmax.f32 %v1382, %v1383
          %v1385 = vrot.slane %v1384, 2
          %v1386 = vmax.f32 %v1384, %v1385
          %v1387 = vrot.slane %v1386, 1
          %v1388 = vmax.f32 %v1386, %v1387
          %v1389 = vmax.f32 %v1043, %v1047
          %v1390 = vmax.f32 %v1389, %v1053
          %v1391 = vmax.f32 %v1390, %v1057
          %v1392 = vrot.slane %v1391, 4
          %v1393 = vmax.f32 %v1391, %v1392
          %v1394 = vrot.slane %v1393, 2
          %v1395 = vmax.f32 %v1393, %v1394
          %v1396 = vrot.slane %v1395, 1
          %v1397 = vmax.f32 %v1395, %v1396
          %v1398 = vmax.f32 %v1094, %v1098
          %v1399 = vmax.f32 %v1398, %v1104
          %v1400 = vmax.f32 %v1399, %v1108
          %v1401 = vrot.slane %v1400, 4
          %v1402 = vmax.f32 %v1400, %v1401
          %v1403 = vrot.slane %v1402, 2
          %v1404 = vmax.f32 %v1402, %v1403
          %v1405 = vrot.slane %v1404, 1
          %v1406 = vmax.f32 %v1404, %v1405
          %v1407 = vmax.f32 %v1096, %v1100
          %v1408 = vmax.f32 %v1407, %v1106
          %v1409 = vmax.f32 %v1408, %v1110
          %v1410 = vrot.slane %v1409, 4
          %v1411 = vmax.f32 %v1409, %v1410
          %v1412 = vrot.slane %v1411, 2
          %v1413 = vmax.f32 %v1411, %v1412
          %v1414 = vrot.slane %v1413, 1
          %v1415 = vmax.f32 %v1413, %v1414
          %v1416 = vmax.f32 %v1147, %v1151
          %v1417 = vmax.f32 %v1416, %v1157
          %v1418 = vmax.f32 %v1417, %v1161
          %v1419 = vrot.slane %v1418, 4
          %v1420 = vmax.f32 %v1418, %v1419
          %v1421 = vrot.slane %v1420, 2
          %v1422 = vmax.f32 %v1420, %v1421
          %v1423 = vrot.slane %v1422, 1
          %v1424 = vmax.f32 %v1422, %v1423
          %v1425 = vmax.f32 %v1149, %v1153
          %v1426 = vmax.f32 %v1425, %v1159
          %v1427 = vmax.f32 %v1426, %v1163
          %v1428 = vrot.slane %v1427, 4
          %v1429 = vmax.f32 %v1427, %v1428
          %v1430 = vrot.slane %v1429, 2
          %v1431 = vmax.f32 %v1429, %v1430
          %v1432 = vrot.slane %v1431, 1
          %v1433 = vmax.f32 %v1431, %v1432
          %v1442 = vcombine.low %v1370, %v1379
          %v1443 = vcombine.low %v1388, %v1397
          %v1444 = vcombine.low %v1406, %v1415
          %v1445 = vcombine.low %v1424, %v1433
          %v1447 = vunpack.c.l.s4 1966171168
          %v1448 = vunpack.c.0.s8 %v1447
          %v1449 = vlaneseq
          %v1450 = vshrl.u32 %v1449, 7
          %v1451 = vsub.s32 %v1448, %v1450
          %v1452 = vrot.slane %v1442, %v1451
          %v1454 = vunpack.c.l.s4 1966171168
          %v1455 = vunpack.c.0.s8 %v1454
          %v1456 = vlaneseq
          %v1457 = vshrl.u32 %v1456, 7
          %v1458 = vsub.s32 %v1455, %v1457
          %v1459 = vrot.slane %v1443, %v1458
          %v1461 = vunpack.c.l.s4 1966171168
          %v1462 = vunpack.c.0.s8 %v1461
          %v1463 = vlaneseq
          %v1464 = vshrl.u32 %v1463, 7
          %v1465 = vsub.s32 %v1462, %v1464
          %v1466 = vrot.slane %v1444, %v1465
          %v1468 = vunpack.c.l.s4 1966171168
          %v1469 = vunpack.c.0.s8 %v1468
          %v1470 = vlaneseq
          %v1471 = vshrl.u32 %v1470, 7
          %v1472 = vsub.s32 %v1469, %v1471
          %v1473 = vrot.slane %v1445, %v1472
          %v1474 = vcombine.low %v1452, %v1459
          %v1475 = vcombine.low %v1466, %v1473
          %v1477 = vunpack.c.l.s4 1966171168
          %v1478 = vunpack.c.0.s8 %v1477
          %v1479 = vlaneseq
          %v1480 = vshrl.u32 %v1479, 7
          %v1481 = vsub.s32 %v1478, %v1480
          %v1482 = vrot.slane %v1474, %v1481
          %v1484 = vunpack.c.l.s4 1966171168
          %v1485 = vunpack.c.0.s8 %v1484
          %v1486 = vlaneseq
          %v1487 = vshrl.u32 %v1486, 7
          %v1488 = vsub.s32 %v1485, %v1487
          %v1489 = vrot.slane %v1475, %v1488
          %v1490 = vcombine.low %v1482, %v1489
          %v1492 = vmax.f32 %v1361, %v1490
          %1493 = vst [vmem:[#allocation2] sm:$0xff] %v1492
        $region64: #{stn3d_forward.2} parent=47 // pred_fallthru
          _
        // Predicated region
        $region65: #{stn3d_forward.2} parent=47 // pred_check
          %p1494 = pneg %p1165
        $region66: #{stn3d_forward.2} parent=47 // pred_check_branch
          %1496 = sbr.rel (%p1494) target = $region68
        $region67: #{stn3d_forward.2} parent=47 // pred_region
          %v1497 = vld [vmem:[#allocation2] sm:$0xff]
          %v1498 = vld [vmem:[%s6] sm:$0xff]
          %v1499 = vadd.f32 %v1497, %v1498
          %v1500 = vmax.f32 %v1499, 0.0
          %1501 = vst [vmem:[%s319] sm:$0xff] %v1500
        $region68: #{stn3d_forward.2} parent=47 // pred_fallthru
          _
        %p1502 = scmp.lt.s32.totalorder %s23, 1
        %s1503 = scalar_select %p1502, %s23, 1
        %s1504 = smul.addr %s1503, 8
        %s1505 = scalar_lea.vmem %s7, %s1504
        // Predicated region
        $region69: #{stn3d_forward.2} parent=47 // pred_check
          %p1506 = pneg %p203
        $region70: #{stn3d_forward.2} parent=47 // pred_check_branch
          %1508 = sbr.rel (%p1506) target = $region72
        $region71: #{stn3d_forward.2} parent=47 // pred_region
          _
        $region72: #{stn3d_forward.2} parent=47 // pred_fallthru
          _
      $region48: #{stn3d_forward.2} parent=5 // pred_fallthru
        _
      %p1509 = scmp.le.s32.totalorder 2, %s14
      // Predicated region
      $region73: #{stn3d_forward.2} parent=5 // pred_check
        %p1510 = pneg %p1509
      $region74: #{stn3d_forward.2} parent=5 // pred_check_branch
        %1512 = sbr.rel (%p1510) target = $region76
      $region75: #{stn3d_forward.2} parent=5 // pred_region
        %s1513 = ssub.s32 %s14, 2
        // Predicated region
        $region77: #{stn3d_forward.2} parent=75 // pred_check
          %p1514 = pneg %p209
        $region78: #{stn3d_forward.2} parent=75 // pred_check_branch
          %1516 = sbr.rel (%p1514) target = $region80
        $region79: #{stn3d_forward.2} parent=75 // pred_region
          %p1517 = scmp.lt.s32.totalorder %s25, 1
          %s1518 = scalar_select %p1517, %s25, 1
          %s1519 = smul.addr %s1518, 8
          %s1520 = scalar_lea.vmem %s7, %s1519
        $region80: #{stn3d_forward.2} parent=75 // pred_fallthru
          _
      $region76: #{stn3d_forward.2} parent=5 // pred_fallthru
        _
    $region6: #{stn3d_forward.2} parent=1 // loop_footer
      %s18 = sadd.s32 1, %s14
    $region7: #{stn3d_forward.2} parent=1 // loop_footer_branch
      %13 = sbr.rel target = $region3
    $region8: #{stn3d_forward.2} parent=1 // loop_exit
      _
    %1521 = vsyncpa [#allocation4], 1
    %s1522 = scalar_lea.sflag [#allocation4], 1
    %1523 = vsyncpa %s1522, 1

// kernel: stn3d_forward.3
$region0: #{stn3d_forward.3}
  #allocation0 [shape = 'u32[]', space=smem, size = 0x4, offset = 0x4, fixed_abs, tag = 'smem constant byte address 0x4 - core index']
  #allocation1 [shape = 'u32[144,128]{1,0:T(1,128)}', space=vmem, size = 0x12000, scoped, tag = 'internal scratch']
  %s0 = inlined_call_operand.vmem [shape: f32[8,1024], index: 0, kind: input, shape index: {}]
  %s1 = inlined_call_operand.hbm [shape: bf16[1024,512], index: 1, kind: input, shape index: {}]
  %s2 = inlined_call_operand.vmem [shape: f32[1,512], index: 2, kind: input, shape index: {}]
  %s3 = inlined_call_operand.vmem [shape: bf16[512,256], index: 3, kind: input, shape index: {}]
  %s4 = inlined_call_operand.vmem [shape: f32[1,256], index: 4, kind: input, shape index: {}]
  %s5 = inlined_call_operand.vmem [shape: bf16[256,128], index: 5, kind: input, shape index: {}]
  %s6 = inlined_call_operand.vmem [shape: f32[1,128], index: 6, kind: input, shape index: {}]
  %s7 = inlined_call_operand.vmem [shape: f32[8,128], index: 7, kind: output, shape index: {}]
  %s8 = sld [smem:[#allocation0]]
  $region42: #{stn3d_forward.3} parent=0
    _
  %s10 = ssub.s32 1, %s8
  %s11 = scalar_select 0, %s10, %s8
  $region1: #{stn3d_forward.3} parent=0
    #allocation2 [shape = 'u8[1048576]{0}', space=vmem, size = 0x100000, scoped, tag = 'input window, operand 1, single buffered']
    #allocation3 [shape = 's32[1]{0}', space=sflag, size = 0x4, scoped, tag = 'scoped memory for stn3d_forward.3']
    %12 = vsyncpa [#allocation3], 0
    // Predicated region
    $region2: #{stn3d_forward.3} parent=1 // pred_check
      _
    $region3: #{stn3d_forward.3} parent=1 // pred_check_branch
      %14 = sbr.rel (0) target = $region5
    $region4: #{stn3d_forward.3} parent=1 // pred_region
      _
    $region5: #{stn3d_forward.3} parent=1 // pred_fallthru
      _
    // Predicated region
    $region6: #{stn3d_forward.3} parent=1 // pred_check
      _
    $region7: #{stn3d_forward.3} parent=1 // pred_check_branch
      %16 = sbr.rel (0) target = $region9
    $region8: #{stn3d_forward.3} parent=1 // pred_region
      %s18 = ssub.s32 32768, 32768
      %19 = vsyncadd [#allocation3], %s18
      %s20 = sshll.u32 [#allocation2], 4
      %s21 = int_to_ptr.vmem [resolvable:$true] %s20
      %26 = dma.hbm_to_vmem [thread:$0]  %s1, 32768, %s21, [#allocation3], 256, 256, 16
    $region9: #{stn3d_forward.3} parent=1 // pred_fallthru
      _
    // Predicated region
    $region10: #{stn3d_forward.3} parent=1 // pred_check
      _
    $region11: #{stn3d_forward.3} parent=1 // pred_check_branch
      %28 = sbr.rel (0) target = $region13
    $region12: #{stn3d_forward.3} parent=1 // pred_region
      _
    $region13: #{stn3d_forward.3} parent=1 // pred_fallthru
      _
    // Predicated region
    $region14: #{stn3d_forward.3} parent=1 // pred_check
      _
    $region15: #{stn3d_forward.3} parent=1 // pred_check_branch
      %30 = sbr.rel (0) target = $region17
    $region16: #{stn3d_forward.3} parent=1 // pred_region
      _
    $region17: #{stn3d_forward.3} parent=1 // pred_fallthru
      _
    // Predicated region
    $region18: #{stn3d_forward.3} parent=1 // pred_check
      _
    $region19: #{stn3d_forward.3} parent=1 // pred_check_branch
      %32 = sbr.rel (0) target = $region21
    $region20: #{stn3d_forward.3} parent=1 // pred_region
      _
    $region21: #{stn3d_forward.3} parent=1 // pred_fallthru
      _
    // Predicated region
    $region22: #{stn3d_forward.3} parent=1 // pred_check
      _
    $region23: #{stn3d_forward.3} parent=1 // pred_check_branch
      %34 = sbr.rel (0) target = $region25
    $region24: #{stn3d_forward.3} parent=1 // pred_region
      _
    $region25: #{stn3d_forward.3} parent=1 // pred_fallthru
      _
    // Predicated region
    $region26: #{stn3d_forward.3} parent=1 // pred_check
      _
    $region27: #{stn3d_forward.3} parent=1 // pred_check_branch
      %36 = sbr.rel (0) target = $region29
    $region28: #{stn3d_forward.3} parent=1 // pred_region
      _
    $region29: #{stn3d_forward.3} parent=1 // pred_fallthru
      _
    // Predicated region
    $region30: #{stn3d_forward.3} parent=1 // pred_check
      _
    $region31: #{stn3d_forward.3} parent=1 // pred_check_branch
      %38 = sbr.rel (0) target = $region33
    $region32: #{stn3d_forward.3} parent=1 // pred_region
      %39 = dma.done [#allocation3], 32768
    $region33: #{stn3d_forward.3} parent=1 // pred_fallthru
      _
    %v41 = vld [vmem:[%s0] sm:$0xff]
    %v42 = vld [vmem:[%s0 + $0x8] sm:$0xff]
    %v43 = vld [vmem:[%s0 + $0x10] sm:$0xff]
    %v44 = vld [vmem:[%s0 + $0x18] sm:$0xff]
    %v45 = vld [vmem:[%s0 + $0x20] sm:$0xff]
    %v46 = vld [vmem:[%s0 + $0x28] sm:$0xff]
    %v47 = vld [vmem:[%s0 + $0x30] sm:$0xff]
    %v48 = vld [vmem:[%s0 + $0x38] sm:$0xff]
    %v49 = vpack.c.bf16 %v41, %v41
    %v50 = vpack.c.bf16 %v42, %v42
    %v51 = vpack.c.bf16 %v43, %v43
    %v52 = vpack.c.bf16 %v44, %v44
    %v53 = vpack.c.bf16 %v45, %v45
    %v54 = vpack.c.bf16 %v46, %v46
    %v55 = vpack.c.bf16 %v47, %v47
    %v56 = vpack.c.bf16 %v48, %v48
    %v57 = vld [vmem:[#allocation2] sm:$0xff]
    %v58 = vld [vmem:[#allocation2 + $0x8] sm:$0xff]
    %v59 = vld [vmem:[#allocation2 + $0x10] sm:$0xff]
    %v60 = vld [vmem:[#allocation2 + $0x18] sm:$0xff]
    %v61 = vld [vmem:[#allocation2 + $0x20] sm:$0xff]
    %v62 = vld [vmem:[#allocation2 + $0x28] sm:$0xff]
    %v63 = vld [vmem:[#allocation2 + $0x30] sm:$0xff]
    %v64 = vld [vmem:[#allocation2 + $0x38] sm:$0xff]
    %v65 = vld [vmem:[#allocation2 + $0x40] sm:$0xff]
    %v66 = vld [vmem:[#allocation2 + $0x48] sm:$0xff]
    %v67 = vld [vmem:[#allocation2 + $0x50] sm:$0xff]
    %v68 = vld [vmem:[#allocation2 + $0x58] sm:$0xff]
    %v69 = vld [vmem:[#allocation2 + $0x60] sm:$0xff]
    %v70 = vld [vmem:[#allocation2 + $0x68] sm:$0xff]
    %v71 = vld [vmem:[#allocation2 + $0x70] sm:$0xff]
    %v72 = vld [vmem:[#allocation2 + $0x78] sm:$0xff]
    %v73 = vld [vmem:[#allocation2 + $0x80] sm:$0xff]
    %v74 = vld [vmem:[#allocation2 + $0x88] sm:$0xff]
    %v75 = vld [vmem:[#allocation2 + $0x90] sm:$0xff]
    %v76 = vld [vmem:[#allocation2 + $0x98] sm:$0xff]
    %v77 = vld [vmem:[#allocation2 + $0xa0] sm:$0xff]
    %v78 = vld [vmem:[#allocation2 + $0xa8] sm:$0xff]
    %v79 = vld [vmem:[#allocation2 + $0xb0] sm:$0xff]
    %v80 = vld [vmem:[#allocation2 + $0xb8] sm:$0xff]
    %v81 = vld [vmem:[#allocation2 + $0xc0] sm:$0xff]
    %v82 = vld [vmem:[#allocation2 + $0xc8] sm:$0xff]
    %v83 = vld [vmem:[#allocation2 + $0xd0] sm:$0xff]
    %v84 = vld [vmem:[#allocation2 + $0xd8] sm:$0xff]
    %v85 = vld [vmem:[#allocation2 + $0xe0] sm:$0xff]
    %v86 = vld [vmem:[#allocation2 + $0xe8] sm:$0xff]
    %v87 = vld [vmem:[#allocation2 + $0xf0] sm:$0xff]
    %v88 = vld [vmem:[#allocation2 + $0xf8] sm:$0xff]
    %v89 = vld [vmem:[#allocation2 + $0x100] sm:$0xff]
    %v90 = vld [vmem:[#allocation2 + $0x108] sm:$0xff]
    %v91 = vld [vmem:[#allocation2 + $0x110] sm:$0xff]
    %v92 = vld [vmem:[#allocation2 + $0x118] sm:$0xff]
    %v93 = vld [vmem:[#allocation2 + $0x120] sm:$0xff]
    %v94 = vld [vmem:[#allocation2 + $0x128] sm:$0xff]
    %v95 = vld [vmem:[#allocation2 + $0x130] sm:$0xff]
    %v96 = vld [vmem:[#allocation2 + $0x138] sm:$0xff]
    %v97 = vld [vmem:[#allocation2 + $0x140] sm:$0xff]
    %v98 = vld [vmem:[#allocation2 + $0x148] sm:$0xff]
    %v99 = vld [vmem:[#allocation2 + $0x150] sm:$0xff]
    %v100 = vld [vmem:[#allocation2 + $0x158] sm:$0xff]
    %v101 = vld [vmem:[#allocation2 + $0x160] sm:$0xff]
    %v102 = vld [vmem:[#allocation2 + $0x168] sm:$0xff]
    %v103 = vld [vmem:[#allocation2 + $0x170] sm:$0xff]
    %v104 = vld [vmem:[#allocation2 + $0x178] sm:$0xff]
    %v105 = vld [vmem:[#allocation2 + $0x180] sm:$0xff]
    %v106 = vld [vmem:[#allocation2 + $0x188] sm:$0xff]
    %v107 = vld [vmem:[#allocation2 + $0x190] sm:$0xff]
    %v108 = vld [vmem:[#allocation2 + $0x198] sm:$0xff]
    %v109 = vld [vmem:[#allocation2 + $0x1a0] sm:$0xff]
    %v110 = vld [vmem:[#allocation2 + $0x1a8] sm:$0xff]
    %v111 = vld [vmem:[#allocation2 + $0x1b0] sm:$0xff]
    %v112 = vld [vmem:[#allocation2 + $0x1b8] sm:$0xff]
    %v113 = vld [vmem:[#allocation2 + $0x1c0] sm:$0xff]
    %v114 = vld [vmem:[#allocation2 + $0x1c8] sm:$0xff]
    %v115 = vld [vmem:[#allocation2 + $0x1d0] sm:$0xff]
    %v116 = vld [vmem:[#allocation2 + $0x1d8] sm:$0xff]
    %v117 = vld [vmem:[#allocation2 + $0x1e0] sm:$0xff]
    %v118 = vld [vmem:[#allocation2 + $0x1e8] sm:$0xff]
    %v119 = vld [vmem:[#allocation2 + $0x1f0] sm:$0xff]
    %v120 = vld [vmem:[#allocation2 + $0x1f8] sm:$0xff]
    %v121 = vld [vmem:[#allocation2 + $0x200] sm:$0xff]
    %v122 = vld [vmem:[#allocation2 + $0x208] sm:$0xff]
    %v123 = vld [vmem:[#allocation2 + $0x210] sm:$0xff]
    %v124 = vld [vmem:[#allocation2 + $0x218] sm:$0xff]
    %v125 = vld [vmem:[#allocation2 + $0x220] sm:$0xff]
    %v126 = vld [vmem:[#allocation2 + $0x228] sm:$0xff]
    %v127 = vld [vmem:[#allocation2 + $0x230] sm:$0xff]
    %v128 = vld [vmem:[#allocation2 + $0x238] sm:$0xff]
    %v129 = vld [vmem:[#allocation2 + $0x240] sm:$0xff]
    %v130 = vld [vmem:[#allocation2 + $0x248] sm:$0xff]
    %v131 = vld [vmem:[#allocation2 + $0x250] sm:$0xff]
    %v132 = vld [vmem:[#allocation2 + $0x258] sm:$0xff]
    %v133 = vld [vmem:[#allocation2 + $0x260] sm:$0xff]
    %v134 = vld [vmem:[#allocation2 + $0x268] sm:$0xff]
    %v135 = vld [vmem:[#allocation2 + $0x270] sm:$0xff]
    %v136 = vld [vmem:[#allocation2 + $0x278] sm:$0xff]
    %v137 = vld [vmem:[#allocation2 + $0x280] sm:$0xff]
    %v138 = vld [vmem:[#allocation2 + $0x288] sm:$0xff]
    %v139 = vld [vmem:[#allocation2 + $0x290] sm:$0xff]
    %v140 = vld [vmem:[#allocation2 + $0x298] sm:$0xff]
    %v141 = vld [vmem:[#allocation2 + $0x2a0] sm:$0xff]
    %v142 = vld [vmem:[#allocation2 + $0x2a8] sm:$0xff]
    %v143 = vld [vmem:[#allocation2 + $0x2b0] sm:$0xff]
    %v144 = vld [vmem:[#allocation2 + $0x2b8] sm:$0xff]
    %v145 = vld [vmem:[#allocation2 + $0x2c0] sm:$0xff]
    %v146 = vld [vmem:[#allocation2 + $0x2c8] sm:$0xff]
    %v147 = vld [vmem:[#allocation2 + $0x2d0] sm:$0xff]
    %v148 = vld [vmem:[#allocation2 + $0x2d8] sm:$0xff]
    %v149 = vld [vmem:[#allocation2 + $0x2e0] sm:$0xff]
    %v150 = vld [vmem:[#allocation2 + $0x2e8] sm:$0xff]
    %v151 = vld [vmem:[#allocation2 + $0x2f0] sm:$0xff]
    %v152 = vld [vmem:[#allocation2 + $0x2f8] sm:$0xff]
    %v153 = vld [vmem:[#allocation2 + $0x300] sm:$0xff]
    %v154 = vld [vmem:[#allocation2 + $0x308] sm:$0xff]
    %v155 = vld [vmem:[#allocation2 + $0x310] sm:$0xff]
    %v156 = vld [vmem:[#allocation2 + $0x318] sm:$0xff]
    %v157 = vld [vmem:[#allocation2 + $0x320] sm:$0xff]
    %v158 = vld [vmem:[#allocation2 + $0x328] sm:$0xff]
    %v159 = vld [vmem:[#allocation2 + $0x330] sm:$0xff]
    %v160 = vld [vmem:[#allocation2 + $0x338] sm:$0xff]
    %v161 = vld [vmem:[#allocation2 + $0x340] sm:$0xff]
    %v162 = vld [vmem:[#allocation2 + $0x348] sm:$0xff]
    %v163 = vld [vmem:[#allocation2 + $0x350] sm:$0xff]
    %v164 = vld [vmem:[#allocation2 + $0x358] sm:$0xff]
    %v165 = vld [vmem:[#allocation2 + $0x360] sm:$0xff]
    %v166 = vld [vmem:[#allocation2 + $0x368] sm:$0xff]
    %v167 = vld [vmem:[#allocation2 + $0x370] sm:$0xff]
    %v168 = vld [vmem:[#allocation2 + $0x378] sm:$0xff]
    %v169 = vld [vmem:[#allocation2 + $0x380] sm:$0xff]
    %v170 = vld [vmem:[#allocation2 + $0x388] sm:$0xff]
    %v171 = vld [vmem:[#allocation2 + $0x390] sm:$0xff]
    %v172 = vld [vmem:[#allocation2 + $0x398] sm:$0xff]
    %v173 = vld [vmem:[#allocation2 + $0x3a0] sm:$0xff]
    %v174 = vld [vmem:[#allocation2 + $0x3a8] sm:$0xff]
    %v175 = vld [vmem:[#allocation2 + $0x3b0] sm:$0xff]
    %v176 = vld [vmem:[#allocation2 + $0x3b8] sm:$0xff]
    %v177 = vld [vmem:[#allocation2 + $0x3c0] sm:$0xff]
    %v178 = vld [vmem:[#allocation2 + $0x3c8] sm:$0xff]
    %v179 = vld [vmem:[#allocation2 + $0x3d0] sm:$0xff]
    %v180 = vld [vmem:[#allocation2 + $0x3d8] sm:$0xff]
    %v181 = vld [vmem:[#allocation2 + $0x3e0] sm:$0xff]
    %v182 = vld [vmem:[#allocation2 + $0x3e8] sm:$0xff]
    %v183 = vld [vmem:[#allocation2 + $0x3f0] sm:$0xff]
    %v184 = vld [vmem:[#allocation2 + $0x3f8] sm:$0xff]
    %v185 = vld [vmem:[#allocation2 + $0x400] sm:$0xff]
    %v186 = vld [vmem:[#allocation2 + $0x408] sm:$0xff]
    %v187 = vld [vmem:[#allocation2 + $0x410] sm:$0xff]
    %v188 = vld [vmem:[#allocation2 + $0x418] sm:$0xff]
    %v189 = vld [vmem:[#allocation2 + $0x420] sm:$0xff]
    %v190 = vld [vmem:[#allocation2 + $0x428] sm:$0xff]
    %v191 = vld [vmem:[#allocation2 + $0x430] sm:$0xff]
    %v192 = vld [vmem:[#allocation2 + $0x438] sm:$0xff]
    %v193 = vld [vmem:[#allocation2 + $0x440] sm:$0xff]
    %v194 = vld [vmem:[#allocation2 + $0x448] sm:$0xff]
    %v195 = vld [vmem:[#allocation2 + $0x450] sm:$0xff]
    %v196 = vld [vmem:[#allocation2 + $0x458] sm:$0xff]
    %v197 = vld [vmem:[#allocation2 + $0x460] sm:$0xff]
    %v198 = vld [vmem:[#allocation2 + $0x468] sm:$0xff]
    %v199 = vld [vmem:[#allocation2 + $0x470] sm:$0xff]
    %v200 = vld [vmem:[#allocation2 + $0x478] sm:$0xff]
    %v201 = vld [vmem:[#allocation2 + $0x480] sm:$0xff]
    %v202 = vld [vmem:[#allocation2 + $0x488] sm:$0xff]
    %v203 = vld [vmem:[#allocation2 + $0x490] sm:$0xff]
    %v204 = vld [vmem:[#allocation2 + $0x498] sm:$0xff]
    %v205 = vld [vmem:[#allocation2 + $0x4a0] sm:$0xff]
    %v206 = vld [vmem:[#allocation2 + $0x4a8] sm:$0xff]
    %v207 = vld [vmem:[#allocation2 + $0x4b0] sm:$0xff]
    %v208 = vld [vmem:[#allocation2 + $0x4b8] sm:$0xff]
    %v209 = vld [vmem:[#allocation2 + $0x4c0] sm:$0xff]
    %v210 = vld [vmem:[#allocation2 + $0x4c8] sm:$0xff]
    %v211 = vld [vmem:[#allocation2 + $0x4d0] sm:$0xff]
    %v212 = vld [vmem:[#allocation2 + $0x4d8] sm:$0xff]
    %v213 = vld [vmem:[#allocation2 + $0x4e0] sm:$0xff]
    %v214 = vld [vmem:[#allocation2 + $0x4e8] sm:$0xff]
    %v215 = vld [vmem:[#allocation2 + $0x4f0] sm:$0xff]
    %v216 = vld [vmem:[#allocation2 + $0x4f8] sm:$0xff]
    %v217 = vld [vmem:[#allocation2 + $0x500] sm:$0xff]
    %v218 = vld [vmem:[#allocation2 + $0x508] sm:$0xff]
    %v219 = vld [vmem:[#allocation2 + $0x510] sm:$0xff]
    %v220 = vld [vmem:[#allocation2 + $0x518] sm:$0xff]
    %v221 = vld [vmem:[#allocation2 + $0x520] sm:$0xff]
    %v222 = vld [vmem:[#allocation2 + $0x528] sm:$0xff]
    %v223 = vld [vmem:[#allocation2 + $0x530] sm:$0xff]
    %v224 = vld [vmem:[#allocation2 + $0x538] sm:$0xff]
    %v225 = vld [vmem:[#allocation2 + $0x540] sm:$0xff]
    %v226 = vld [vmem:[#allocation2 + $0x548] sm:$0xff]
    %v227 = vld [vmem:[#allocation2 + $0x550] sm:$0xff]
    %v228 = vld [vmem:[#allocation2 + $0x558] sm:$0xff]
    %v229 = vld [vmem:[#allocation2 + $0x560] sm:$0xff]
    %v230 = vld [vmem:[#allocation2 + $0x568] sm:$0xff]
    %v231 = vld [vmem:[#allocation2 + $0x570] sm:$0xff]
    %v232 = vld [vmem:[#allocation2 + $0x578] sm:$0xff]
    %v233 = vld [vmem:[#allocation2 + $0x580] sm:$0xff]
    %v234 = vld [vmem:[#allocation2 + $0x588] sm:$0xff]
    %v235 = vld [vmem:[#allocation2 + $0x590] sm:$0xff]
    %v236 = vld [vmem:[#allocation2 + $0x598] sm:$0xff]
    %v237 = vld [vmem:[#allocation2 + $0x5a0] sm:$0xff]
    %v238 = vld [vmem:[#allocation2 + $0x5a8] sm:$0xff]
    %v239 = vld [vmem:[#allocation2 + $0x5b0] sm:$0xff]
    %v240 = vld [vmem:[#allocation2 + $0x5b8] sm:$0xff]
    %v241 = vld [vmem:[#allocation2 + $0x5c0] sm:$0xff]
    %v242 = vld [vmem:[#allocation2 + $0x5c8] sm:$0xff]
    %v243 = vld [vmem:[#allocation2 + $0x5d0] sm:$0xff]
    %v244 = vld [vmem:[#allocation2 + $0x5d8] sm:$0xff]
    %v245 = vld [vmem:[#allocation2 + $0x5e0] sm:$0xff]
    %v246 = vld [vmem:[#allocation2 + $0x5e8] sm:$0xff]
    %v247 = vld [vmem:[#allocation2 + $0x5f0] sm:$0xff]
    %v248 = vld [vmem:[#allocation2 + $0x5f8] sm:$0xff]
    %v249 = vld [vmem:[#allocation2 + $0x600] sm:$0xff]
    %v250 = vld [vmem:[#allocation2 + $0x608] sm:$0xff]
    %v251 = vld [vmem:[#allocation2 + $0x610] sm:$0xff]
    %v252 = vld [vmem:[#allocation2 + $0x618] sm:$0xff]
    %v253 = vld [vmem:[#allocation2 + $0x620] sm:$0xff]
    %v254 = vld [vmem:[#allocation2 + $0x628] sm:$0xff]
    %v255 = vld [vmem:[#allocation2 + $0x630] sm:$0xff]
    %v256 = vld [vmem:[#allocation2 + $0x638] sm:$0xff]
    %v257 = vld [vmem:[#allocation2 + $0x640] sm:$0xff]
    %v258 = vld [vmem:[#allocation2 + $0x648] sm:$0xff]
    %v259 = vld [vmem:[#allocation2 + $0x650] sm:$0xff]
    %v260 = vld [vmem:[#allocation2 + $0x658] sm:$0xff]
    %v261 = vld [vmem:[#allocation2 + $0x660] sm:$0xff]
    %v262 = vld [vmem:[#allocation2 + $0x668] sm:$0xff]
    %v263 = vld [vmem:[#allocation2 + $0x670] sm:$0xff]
    %v264 = vld [vmem:[#allocation2 + $0x678] sm:$0xff]
    %v265 = vld [vmem:[#allocation2 + $0x680] sm:$0xff]
    %v266 = vld [vmem:[#allocation2 + $0x688] sm:$0xff]
    %v267 = vld [vmem:[#allocation2 + $0x690] sm:$0xff]
    %v268 = vld [vmem:[#allocation2 + $0x698] sm:$0xff]
    %v269 = vld [vmem:[#allocation2 + $0x6a0] sm:$0xff]
    %v270 = vld [vmem:[#allocation2 + $0x6a8] sm:$0xff]
    %v271 = vld [vmem:[#allocation2 + $0x6b0] sm:$0xff]
    %v272 = vld [vmem:[#allocation2 + $0x6b8] sm:$0xff]
    %v273 = vld [vmem:[#allocation2 + $0x6c0] sm:$0xff]
    %v274 = vld [vmem:[#allocation2 + $0x6c8] sm:$0xff]
    %v275 = vld [vmem:[#allocation2 + $0x6d0] sm:$0xff]
    %v276 = vld [vmem:[#allocation2 + $0x6d8] sm:$0xff]
    %v277 = vld [vmem:[#allocation2 + $0x6e0] sm:$0xff]
    %v278 = vld [vmem:[#allocation2 + $0x6e8] sm:$0xff]
    %v279 = vld [vmem:[#allocation2 + $0x6f0] sm:$0xff]
    %v280 = vld [vmem:[#allocation2 + $0x6f8] sm:$0xff]
    %v281 = vld [vmem:[#allocation2 + $0x700] sm:$0xff]
    %v282 = vld [vmem:[#allocation2 + $0x708] sm:$0xff]
    %v283 = vld [vmem:[#allocation2 + $0x710] sm:$0xff]
    %v284 = vld [vmem:[#allocation2 + $0x718] sm:$0xff]
    %v285 = vld [vmem:[#allocation2 + $0x720] sm:$0xff]
    %v286 = vld [vmem:[#allocation2 + $0x728] sm:$0xff]
    %v287 = vld [vmem:[#allocation2 + $0x730] sm:$0xff]
    %v288 = vld [vmem:[#allocation2 + $0x738] sm:$0xff]
    %v289 = vld [vmem:[#allocation2 + $0x740] sm:$0xff]
    %v290 = vld [vmem:[#allocation2 + $0x748] sm:$0xff]
    %v291 = vld [vmem:[#allocation2 + $0x750] sm:$0xff]
    %v292 = vld [vmem:[#allocation2 + $0x758] sm:$0xff]
    %v293 = vld [vmem:[#allocation2 + $0x760] sm:$0xff]
    %v294 = vld [vmem:[#allocation2 + $0x768] sm:$0xff]
    %v295 = vld [vmem:[#allocation2 + $0x770] sm:$0xff]
    %v296 = vld [vmem:[#allocation2 + $0x778] sm:$0xff]
    %v297 = vld [vmem:[#allocation2 + $0x780] sm:$0xff]
    %v298 = vld [vmem:[#allocation2 + $0x788] sm:$0xff]
    %v299 = vld [vmem:[#allocation2 + $0x790] sm:$0xff]
    %v300 = vld [vmem:[#allocation2 + $0x798] sm:$0xff]
    %v301 = vld [vmem:[#allocation2 + $0x7a0] sm:$0xff]
    %v302 = vld [vmem:[#allocation2 + $0x7a8] sm:$0xff]
    %v303 = vld [vmem:[#allocation2 + $0x7b0] sm:$0xff]
    %v304 = vld [vmem:[#allocation2 + $0x7b8] sm:$0xff]
    %v305 = vld [vmem:[#allocation2 + $0x7c0] sm:$0xff]
    %v306 = vld [vmem:[#allocation2 + $0x7c8] sm:$0xff]
    %v307 = vld [vmem:[#allocation2 + $0x7d0] sm:$0xff]
    %v308 = vld [vmem:[#allocation2 + $0x7d8] sm:$0xff]
    %v309 = vld [vmem:[#allocation2 + $0x7e0] sm:$0xff]
    %v310 = vld [vmem:[#allocation2 + $0x7e8] sm:$0xff]
    %v311 = vld [vmem:[#allocation2 + $0x7f0] sm:$0xff]
    %v312 = vld [vmem:[#allocation2 + $0x7f8] sm:$0xff]
    %v313 = vld [vmem:[%s2] sm:$0xf]
    %v315 = vlaneseq
    %v316 = vshrl.u32 %v315, 7
    %v317 = vsub.s32 0, %v316
    %v318 = vrot.slane %v313, %v317
    %v319 = vlaneseq
    %v320 = vshrl.u32 %v319, 7
    %v321 = vsub.s32 1, %v320
    %v322 = vrot.slane %v313, %v321
    %v323 = vlaneseq
    %v324 = vshrl.u32 %v323, 7
    %v325 = vsub.s32 2, %v324
    %v326 = vrot.slane %v313, %v325
    %v327 = vlaneseq
    %v328 = vshrl.u32 %v327, 7
    %v329 = vsub.s32 3, %v328
    %v330 = vrot.slane %v313, %v329
    %v591 = vunpack.c.l.b16 %v57
    %v592 = vunpack.c.h.b16 %v57
    %v593 = vunpack.c.l.b16 %v58
    %v594 = vunpack.c.h.b16 %v58
    %v595 = vunpack.c.l.b16 %v59
    %v596 = vunpack.c.h.b16 %v59
    %v597 = vunpack.c.l.b16 %v60
    %v598 = vunpack.c.h.b16 %v60
    %v599 = vunpack.c.l.b16 %v61
    %v600 = vunpack.c.h.b16 %v61
    %v601 = vunpack.c.l.b16 %v62
    %v602 = vunpack.c.h.b16 %v62
    %v603 = vunpack.c.l.b16 %v63
    %v604 = vunpack.c.h.b16 %v63
    %v605 = vunpack.c.l.b16 %v64
    %v606 = vunpack.c.h.b16 %v64
    %v607 = vunpack.c.l.b16 %v65
    %v608 = vunpack.c.h.b16 %v65
    %v609 = vunpack.c.l.b16 %v66
    %v610 = vunpack.c.h.b16 %v66
    %v611 = vunpack.c.l.b16 %v67
    %v612 = vunpack.c.h.b16 %v67
    %v613 = vunpack.c.l.b16 %v68
    %v614 = vunpack.c.h.b16 %v68
    %v615 = vunpack.c.l.b16 %v69
    %v616 = vunpack.c.h.b16 %v69
    %v617 = vunpack.c.l.b16 %v70
    %v618 = vunpack.c.h.b16 %v70
    %v619 = vunpack.c.l.b16 %v71
    %v620 = vunpack.c.h.b16 %v71
    %v621 = vunpack.c.l.b16 %v72
    %v622 = vunpack.c.h.b16 %v72
    %v623 = vunpack.c.l.b16 %v73
    %v624 = vunpack.c.h.b16 %v73
    %v625 = vunpack.c.l.b16 %v74
    %v626 = vunpack.c.h.b16 %v74
    %v627 = vunpack.c.l.b16 %v75
    %v628 = vunpack.c.h.b16 %v75
    %v629 = vunpack.c.l.b16 %v76
    %v630 = vunpack.c.h.b16 %v76
    %v631 = vunpack.c.l.b16 %v77
    %v632 = vunpack.c.h.b16 %v77
    %v633 = vunpack.c.l.b16 %v78
    %v634 = vunpack.c.h.b16 %v78
    %v635 = vunpack.c.l.b16 %v79
    %v636 = vunpack.c.h.b16 %v79
    %v637 = vunpack.c.l.b16 %v80
    %v638 = vunpack.c.h.b16 %v80
    %v639 = vunpack.c.l.b16 %v81
    %v640 = vunpack.c.h.b16 %v81
    %v641 = vunpack.c.l.b16 %v82
    %v642 = vunpack.c.h.b16 %v82
    %v643 = vunpack.c.l.b16 %v83
    %v644 = vunpack.c.h.b16 %v83
    %v645 = vunpack.c.l.b16 %v84
    %v646 = vunpack.c.h.b16 %v84
    %v647 = vunpack.c.l.b16 %v85
    %v648 = vunpack.c.h.b16 %v85
    %v649 = vunpack.c.l.b16 %v86
    %v650 = vunpack.c.h.b16 %v86
    %v651 = vunpack.c.l.b16 %v87
    %v652 = vunpack.c.h.b16 %v87
    %v653 = vunpack.c.l.b16 %v88
    %v654 = vunpack.c.h.b16 %v88
    %v655 = vunpack.c.l.b16 %v89
    %v656 = vunpack.c.h.b16 %v89
    %v657 = vunpack.c.l.b16 %v90
    %v658 = vunpack.c.h.b16 %v90
    %v659 = vunpack.c.l.b16 %v91
    %v660 = vunpack.c.h.b16 %v91
    %v661 = vunpack.c.l.b16 %v92
    %v662 = vunpack.c.h.b16 %v92
    %v663 = vunpack.c.l.b16 %v93
    %v664 = vunpack.c.h.b16 %v93
    %v665 = vunpack.c.l.b16 %v94
    %v666 = vunpack.c.h.b16 %v94
    %v667 = vunpack.c.l.b16 %v95
    %v668 = vunpack.c.h.b16 %v95
    %v669 = vunpack.c.l.b16 %v96
    %v670 = vunpack.c.h.b16 %v96
    %v671 = vunpack.c.l.b16 %v97
    %v672 = vunpack.c.h.b16 %v97
    %v673 = vunpack.c.l.b16 %v98
    %v674 = vunpack.c.h.b16 %v98
    %v675 = vunpack.c.l.b16 %v99
    %v676 = vunpack.c.h.b16 %v99
    %v677 = vunpack.c.l.b16 %v100
    %v678 = vunpack.c.h.b16 %v100
    %v679 = vunpack.c.l.b16 %v101
    %v680 = vunpack.c.h.b16 %v101
    %v681 = vunpack.c.l.b16 %v102
    %v682 = vunpack.c.h.b16 %v102
    %v683 = vunpack.c.l.b16 %v103
    %v684 = vunpack.c.h.b16 %v103
    %v685 = vunpack.c.l.b16 %v104
    %v686 = vunpack.c.h.b16 %v104
    %v687 = vunpack.c.l.b16 %v105
    %v688 = vunpack.c.h.b16 %v105
    %v689 = vunpack.c.l.b16 %v106
    %v690 = vunpack.c.h.b16 %v106
    %v691 = vunpack.c.l.b16 %v107
    %v692 = vunpack.c.h.b16 %v107
    %v693 = vunpack.c.l.b16 %v108
    %v694 = vunpack.c.h.b16 %v108
    %v695 = vunpack.c.l.b16 %v109
    %v696 = vunpack.c.h.b16 %v109
    %v697 = vunpack.c.l.b16 %v110
    %v698 = vunpack.c.h.b16 %v110
    %v699 = vunpack.c.l.b16 %v111
    %v700 = vunpack.c.h.b16 %v111
    %v701 = vunpack.c.l.b16 %v112
    %v702 = vunpack.c.h.b16 %v112
    %v703 = vunpack.c.l.b16 %v113
    %v704 = vunpack.c.h.b16 %v113
    %v705 = vunpack.c.l.b16 %v114
    %v706 = vunpack.c.h.b16 %v114
    %v707 = vunpack.c.l.b16 %v115
    %v708 = vunpack.c.h.b16 %v115
    %v709 = vunpack.c.l.b16 %v116
    %v710 = vunpack.c.h.b16 %v116
    %v711 = vunpack.c.l.b16 %v117
    %v712 = vunpack.c.h.b16 %v117
    %v713 = vunpack.c.l.b16 %v118
    %v714 = vunpack.c.h.b16 %v118
    %v715 = vunpack.c.l.b16 %v119
    %v716 = vunpack.c.h.b16 %v119
    %v717 = vunpack.c.l.b16 %v120
    %v718 = vunpack.c.h.b16 %v120
    %v719 = vunpack.c.l.b16 %v121
    %v720 = vunpack.c.h.b16 %v121
    %v721 = vunpack.c.l.b16 %v122
    %v722 = vunpack.c.h.b16 %v122
    %v723 = vunpack.c.l.b16 %v123
    %v724 = vunpack.c.h.b16 %v123
    %v725 = vunpack.c.l.b16 %v124
    %v726 = vunpack.c.h.b16 %v124
    %v727 = vunpack.c.l.b16 %v125
    %v728 = vunpack.c.h.b16 %v125
    %v729 = vunpack.c.l.b16 %v126
    %v730 = vunpack.c.h.b16 %v126
    %v731 = vunpack.c.l.b16 %v127
    %v732 = vunpack.c.h.b16 %v127
    %v733 = vunpack.c.l.b16 %v128
    %v734 = vunpack.c.h.b16 %v128
    %v735 = vunpack.c.l.b16 %v129
    %v736 = vunpack.c.h.b16 %v129
    %v737 = vunpack.c.l.b16 %v130
    %v738 = vunpack.c.h.b16 %v130
    %v739 = vunpack.c.l.b16 %v131
    %v740 = vunpack.c.h.b16 %v131
    %v741 = vunpack.c.l.b16 %v132
    %v742 = vunpack.c.h.b16 %v132
    %v743 = vunpack.c.l.b16 %v133
    %v744 = vunpack.c.h.b16 %v133
    %v745 = vunpack.c.l.b16 %v134
    %v746 = vunpack.c.h.b16 %v134
    %v747 = vunpack.c.l.b16 %v135
    %v748 = vunpack.c.h.b16 %v135
    %v749 = vunpack.c.l.b16 %v136
    %v750 = vunpack.c.h.b16 %v136
    %v751 = vunpack.c.l.b16 %v137
    %v752 = vunpack.c.h.b16 %v137
    %v753 = vunpack.c.l.b16 %v138
    %v754 = vunpack.c.h.b16 %v138
    %v755 = vunpack.c.l.b16 %v139
    %v756 = vunpack.c.h.b16 %v139
    %v757 = vunpack.c.l.b16 %v140
    %v758 = vunpack.c.h.b16 %v140
    %v759 = vunpack.c.l.b16 %v141
    %v760 = vunpack.c.h.b16 %v141
    %v761 = vunpack.c.l.b16 %v142
    %v762 = vunpack.c.h.b16 %v142
    %v763 = vunpack.c.l.b16 %v143
    %v764 = vunpack.c.h.b16 %v143
    %v765 = vunpack.c.l.b16 %v144
    %v766 = vunpack.c.h.b16 %v144
    %v767 = vunpack.c.l.b16 %v145
    %v768 = vunpack.c.h.b16 %v145
    %v769 = vunpack.c.l.b16 %v146
    %v770 = vunpack.c.h.b16 %v146
    %v771 = vunpack.c.l.b16 %v147
    %v772 = vunpack.c.h.b16 %v147
    %v773 = vunpack.c.l.b16 %v148
    %v774 = vunpack.c.h.b16 %v148
    %v775 = vunpack.c.l.b16 %v149
    %v776 = vunpack.c.h.b16 %v149
    %v777 = vunpack.c.l.b16 %v150
    %v778 = vunpack.c.h.b16 %v150
    %v779 = vunpack.c.l.b16 %v151
    %v780 = vunpack.c.h.b16 %v151
    %v781 = vunpack.c.l.b16 %v152
    %v782 = vunpack.c.h.b16 %v152
    %v783 = vunpack.c.l.b16 %v153
    %v784 = vunpack.c.h.b16 %v153
    %v785 = vunpack.c.l.b16 %v154
    %v786 = vunpack.c.h.b16 %v154
    %v787 = vunpack.c.l.b16 %v155
    %v788 = vunpack.c.h.b16 %v155
    %v789 = vunpack.c.l.b16 %v156
    %v790 = vunpack.c.h.b16 %v156
    %v791 = vunpack.c.l.b16 %v157
    %v792 = vunpack.c.h.b16 %v157
    %v793 = vunpack.c.l.b16 %v158
    %v794 = vunpack.c.h.b16 %v158
    %v795 = vunpack.c.l.b16 %v159
    %v796 = vunpack.c.h.b16 %v159
    %v797 = vunpack.c.l.b16 %v160
    %v798 = vunpack.c.h.b16 %v160
    %v799 = vunpack.c.l.b16 %v161
    %v800 = vunpack.c.h.b16 %v161
    %v801 = vunpack.c.l.b16 %v162
    %v802 = vunpack.c.h.b16 %v162
    %v803 = vunpack.c.l.b16 %v163
    %v804 = vunpack.c.h.b16 %v163
    %v805 = vunpack.c.l.b16 %v164
    %v806 = vunpack.c.h.b16 %v164
    %v807 = vunpack.c.l.b16 %v165
    %v808 = vunpack.c.h.b16 %v165
    %v809 = vunpack.c.l.b16 %v166
    %v810 = vunpack.c.h.b16 %v166
    %v811 = vunpack.c.l.b16 %v167
    %v812 = vunpack.c.h.b16 %v167
    %v813 = vunpack.c.l.b16 %v168
    %v814 = vunpack.c.h.b16 %v168
    %v815 = vunpack.c.l.b16 %v169
    %v816 = vunpack.c.h.b16 %v169
    %v817 = vunpack.c.l.b16 %v170
    %v818 = vunpack.c.h.b16 %v170
    %v819 = vunpack.c.l.b16 %v171
    %v820 = vunpack.c.h.b16 %v171
    %v821 = vunpack.c.l.b16 %v172
    %v822 = vunpack.c.h.b16 %v172
    %v823 = vunpack.c.l.b16 %v173
    %v824 = vunpack.c.h.b16 %v173
    %v825 = vunpack.c.l.b16 %v174
    %v826 = vunpack.c.h.b16 %v174
    %v827 = vunpack.c.l.b16 %v175
    %v828 = vunpack.c.h.b16 %v175
    %v829 = vunpack.c.l.b16 %v176
    %v830 = vunpack.c.h.b16 %v176
    %v831 = vunpack.c.l.b16 %v177
    %v832 = vunpack.c.h.b16 %v177
    %v833 = vunpack.c.l.b16 %v178
    %v834 = vunpack.c.h.b16 %v178
    %v835 = vunpack.c.l.b16 %v179
    %v836 = vunpack.c.h.b16 %v179
    %v837 = vunpack.c.l.b16 %v180
    %v838 = vunpack.c.h.b16 %v180
    %v839 = vunpack.c.l.b16 %v181
    %v840 = vunpack.c.h.b16 %v181
    %v841 = vunpack.c.l.b16 %v182
    %v842 = vunpack.c.h.b16 %v182
    %v843 = vunpack.c.l.b16 %v183
    %v844 = vunpack.c.h.b16 %v183
    %v845 = vunpack.c.l.b16 %v184
    %v846 = vunpack.c.h.b16 %v184
    %v847 = vunpack.c.l.b16 %v185
    %v848 = vunpack.c.h.b16 %v185
    %v849 = vunpack.c.l.b16 %v186
    %v850 = vunpack.c.h.b16 %v186
    %v851 = vunpack.c.l.b16 %v187
    %v852 = vunpack.c.h.b16 %v187
    %v853 = vunpack.c.l.b16 %v188
    %v854 = vunpack.c.h.b16 %v188
    %v855 = vunpack.c.l.b16 %v189
    %v856 = vunpack.c.h.b16 %v189
    %v857 = vunpack.c.l.b16 %v190
    %v858 = vunpack.c.h.b16 %v190
    %v859 = vunpack.c.l.b16 %v191
    %v860 = vunpack.c.h.b16 %v191
    %v861 = vunpack.c.l.b16 %v192
    %v862 = vunpack.c.h.b16 %v192
    %v863 = vunpack.c.l.b16 %v193
    %v864 = vunpack.c.h.b16 %v193
    %v865 = vunpack.c.l.b16 %v194
    %v866 = vunpack.c.h.b16 %v194
    %v867 = vunpack.c.l.b16 %v195
    %v868 = vunpack.c.h.b16 %v195
    %v869 = vunpack.c.l.b16 %v196
    %v870 = vunpack.c.h.b16 %v196
    %v871 = vunpack.c.l.b16 %v197
    %v872 = vunpack.c.h.b16 %v197
    %v873 = vunpack.c.l.b16 %v198
    %v874 = vunpack.c.h.b16 %v198
    %v875 = vunpack.c.l.b16 %v199
    %v876 = vunpack.c.h.b16 %v199
    %v877 = vunpack.c.l.b16 %v200
    %v878 = vunpack.c.h.b16 %v200
    %v879 = vunpack.c.l.b16 %v201
    %v880 = vunpack.c.h.b16 %v201
    %v881 = vunpack.c.l.b16 %v202
    %v882 = vunpack.c.h.b16 %v202
    %v883 = vunpack.c.l.b16 %v203
    %v884 = vunpack.c.h.b16 %v203
    %v885 = vunpack.c.l.b16 %v204
    %v886 = vunpack.c.h.b16 %v204
    %v887 = vunpack.c.l.b16 %v205
    %v888 = vunpack.c.h.b16 %v205
    %v889 = vunpack.c.l.b16 %v206
    %v890 = vunpack.c.h.b16 %v206
    %v891 = vunpack.c.l.b16 %v207
    %v892 = vunpack.c.h.b16 %v207
    %v893 = vunpack.c.l.b16 %v208
    %v894 = vunpack.c.h.b16 %v208
    %v895 = vunpack.c.l.b16 %v209
    %v896 = vunpack.c.h.b16 %v209
    %v897 = vunpack.c.l.b16 %v210
    %v898 = vunpack.c.h.b16 %v210
    %v899 = vunpack.c.l.b16 %v211
    %v900 = vunpack.c.h.b16 %v211
    %v901 = vunpack.c.l.b16 %v212
    %v902 = vunpack.c.h.b16 %v212
    %v903 = vunpack.c.l.b16 %v213
    %v904 = vunpack.c.h.b16 %v213
    %v905 = vunpack.c.l.b16 %v214
    %v906 = vunpack.c.h.b16 %v214
    %v907 = vunpack.c.l.b16 %v215
    %v908 = vunpack.c.h.b16 %v215
    %v909 = vunpack.c.l.b16 %v216
    %v910 = vunpack.c.h.b16 %v216
    %v911 = vunpack.c.l.b16 %v217
    %v912 = vunpack.c.h.b16 %v217
    %v913 = vunpack.c.l.b16 %v218
    %v914 = vunpack.c.h.b16 %v218
    %v915 = vunpack.c.l.b16 %v219
    %v916 = vunpack.c.h.b16 %v219
    %v917 = vunpack.c.l.b16 %v220
    %v918 = vunpack.c.h.b16 %v220
    %v919 = vunpack.c.l.b16 %v221
    %v920 = vunpack.c.h.b16 %v221
    %v921 = vunpack.c.l.b16 %v222
    %v922 = vunpack.c.h.b16 %v222
    %v923 = vunpack.c.l.b16 %v223
    %v924 = vunpack.c.h.b16 %v223
    %v925 = vunpack.c.l.b16 %v224
    %v926 = vunpack.c.h.b16 %v224
    %v927 = vunpack.c.l.b16 %v225
    %v928 = vunpack.c.h.b16 %v225
    %v929 = vunpack.c.l.b16 %v226
    %v930 = vunpack.c.h.b16 %v226
    %v931 = vunpack.c.l.b16 %v227
    %v932 = vunpack.c.h.b16 %v227
    %v933 = vunpack.c.l.b16 %v228
    %v934 = vunpack.c.h.b16 %v228
    %v935 = vunpack.c.l.b16 %v229
    %v936 = vunpack.c.h.b16 %v229
    %v937 = vunpack.c.l.b16 %v230
    %v938 = vunpack.c.h.b16 %v230
    %v939 = vunpack.c.l.b16 %v231
    %v940 = vunpack.c.h.b16 %v231
    %v941 = vunpack.c.l.b16 %v232
    %v942 = vunpack.c.h.b16 %v232
    %v943 = vunpack.c.l.b16 %v233
    %v944 = vunpack.c.h.b16 %v233
    %v945 = vunpack.c.l.b16 %v234
    %v946 = vunpack.c.h.b16 %v234
    %v947 = vunpack.c.l.b16 %v235
    %v948 = vunpack.c.h.b16 %v235
    %v949 = vunpack.c.l.b16 %v236
    %v950 = vunpack.c.h.b16 %v236
    %v951 = vunpack.c.l.b16 %v237
    %v952 = vunpack.c.h.b16 %v237
    %v953 = vunpack.c.l.b16 %v238
    %v954 = vunpack.c.h.b16 %v238
    %v955 = vunpack.c.l.b16 %v239
    %v956 = vunpack.c.h.b16 %v239
    %v957 = vunpack.c.l.b16 %v240
    %v958 = vunpack.c.h.b16 %v240
    %v959 = vunpack.c.l.b16 %v241
    %v960 = vunpack.c.h.b16 %v241
    %v961 = vunpack.c.l.b16 %v242
    %v962 = vunpack.c.h.b16 %v242
    %v963 = vunpack.c.l.b16 %v243
    %v964 = vunpack.c.h.b16 %v243
    %v965 = vunpack.c.l.b16 %v244
    %v966 = vunpack.c.h.b16 %v244
    %v967 = vunpack.c.l.b16 %v245
    %v968 = vunpack.c.h.b16 %v245
    %v969 = vunpack.c.l.b16 %v246
    %v970 = vunpack.c.h.b16 %v246
    %v971 = vunpack.c.l.b16 %v247
    %v972 = vunpack.c.h.b16 %v247
    %v973 = vunpack.c.l.b16 %v248
    %v974 = vunpack.c.h.b16 %v248
    %v975 = vunpack.c.l.b16 %v249
    %v976 = vunpack.c.h.b16 %v249
    %v977 = vunpack.c.l.b16 %v250
    %v978 = vunpack.c.h.b16 %v250
    %v979 = vunpack.c.l.b16 %v251
    %v980 = vunpack.c.h.b16 %v251
    %v981 = vunpack.c.l.b16 %v252
    %v982 = vunpack.c.h.b16 %v252
    %v983 = vunpack.c.l.b16 %v253
    %v984 = vunpack.c.h.b16 %v253
    %v985 = vunpack.c.l.b16 %v254
    %v986 = vunpack.c.h.b16 %v254
    %v987 = vunpack.c.l.b16 %v255
    %v988 = vunpack.c.h.b16 %v255
    %v989 = vunpack.c.l.b16 %v256
    %v990 = vunpack.c.h.b16 %v256
    %v991 = vunpack.c.l.b16 %v257
    %v992 = vunpack.c.h.b16 %v257
    %v993 = vunpack.c.l.b16 %v258
    %v994 = vunpack.c.h.b16 %v258
    %v995 = vunpack.c.l.b16 %v259
    %v996 = vunpack.c.h.b16 %v259
    %v997 = vunpack.c.l.b16 %v260
    %v998 = vunpack.c.h.b16 %v260
    %v999 = vunpack.c.l.b16 %v261
    %v1000 = vunpack.c.h.b16 %v261
    %v1001 = vunpack.c.l.b16 %v262
    %v1002 = vunpack.c.h.b16 %v262
    %v1003 = vunpack.c.l.b16 %v263
    %v1004 = vunpack.c.h.b16 %v263
    %v1005 = vunpack.c.l.b16 %v264
    %v1006 = vunpack.c.h.b16 %v264
    %v1007 = vunpack.c.l.b16 %v265
    %v1008 = vunpack.c.h.b16 %v265
    %v1009 = vunpack.c.l.b16 %v266
    %v1010 = vunpack.c.h.b16 %v266
    %v1011 = vunpack.c.l.b16 %v267
    %v1012 = vunpack.c.h.b16 %v267
    %v1013 = vunpack.c.l.b16 %v268
    %v1014 = vunpack.c.h.b16 %v268
    %v1015 = vunpack.c.l.b16 %v269
    %v1016 = vunpack.c.h.b16 %v269
    %v1017 = vunpack.c.l.b16 %v270
    %v1018 = vunpack.c.h.b16 %v270
    %v1019 = vunpack.c.l.b16 %v271
    %v1020 = vunpack.c.h.b16 %v271
    %v1021 = vunpack.c.l.b16 %v272
    %v1022 = vunpack.c.h.b16 %v272
    %v1023 = vunpack.c.l.b16 %v273
    %v1024 = vunpack.c.h.b16 %v273
    %v1025 = vunpack.c.l.b16 %v274
    %v1026 = vunpack.c.h.b16 %v274
    %v1027 = vunpack.c.l.b16 %v275
    %v1028 = vunpack.c.h.b16 %v275
    %v1029 = vunpack.c.l.b16 %v276
    %v1030 = vunpack.c.h.b16 %v276
    %v1031 = vunpack.c.l.b16 %v277
    %v1032 = vunpack.c.h.b16 %v277
    %v1033 = vunpack.c.l.b16 %v278
    %v1034 = vunpack.c.h.b16 %v278
    %v1035 = vunpack.c.l.b16 %v279
    %v1036 = vunpack.c.h.b16 %v279
    %v1037 = vunpack.c.l.b16 %v280
    %v1038 = vunpack.c.h.b16 %v280
    %v1039 = vunpack.c.l.b16 %v281
    %v1040 = vunpack.c.h.b16 %v281
    %v1041 = vunpack.c.l.b16 %v282
    %v1042 = vunpack.c.h.b16 %v282
    %v1043 = vunpack.c.l.b16 %v283
    %v1044 = vunpack.c.h.b16 %v283
    %v1045 = vunpack.c.l.b16 %v284
    %v1046 = vunpack.c.h.b16 %v284
    %v1047 = vunpack.c.l.b16 %v285
    %v1048 = vunpack.c.h.b16 %v285
    %v1049 = vunpack.c.l.b16 %v286
    %v1050 = vunpack.c.h.b16 %v286
    %v1051 = vunpack.c.l.b16 %v287
    %v1052 = vunpack.c.h.b16 %v287
    %v1053 = vunpack.c.l.b16 %v288
    %v1054 = vunpack.c.h.b16 %v288
    %v1055 = vunpack.c.l.b16 %v289
    %v1056 = vunpack.c.h.b16 %v289
    %v1057 = vunpack.c.l.b16 %v290
    %v1058 = vunpack.c.h.b16 %v290
    %v1059 = vunpack.c.l.b16 %v291
    %v1060 = vunpack.c.h.b16 %v291
    %v1061 = vunpack.c.l.b16 %v292
    %v1062 = vunpack.c.h.b16 %v292
    %v1063 = vunpack.c.l.b16 %v293
    %v1064 = vunpack.c.h.b16 %v293
    %v1065 = vunpack.c.l.b16 %v294
    %v1066 = vunpack.c.h.b16 %v294
    %v1067 = vunpack.c.l.b16 %v295
    %v1068 = vunpack.c.h.b16 %v295
    %v1069 = vunpack.c.l.b16 %v296
    %v1070 = vunpack.c.h.b16 %v296
    %v1071 = vunpack.c.l.b16 %v297
    %v1072 = vunpack.c.h.b16 %v297
    %v1073 = vunpack.c.l.b16 %v298
    %v1074 = vunpack.c.h.b16 %v298
    %v1075 = vunpack.c.l.b16 %v299
    %v1076 = vunpack.c.h.b16 %v299
    %v1077 = vunpack.c.l.b16 %v300
    %v1078 = vunpack.c.h.b16 %v300
    %v1079 = vunpack.c.l.b16 %v301
    %v1080 = vunpack.c.h.b16 %v301
    %v1081 = vunpack.c.l.b16 %v302
    %v1082 = vunpack.c.h.b16 %v302
    %v1083 = vunpack.c.l.b16 %v303
    %v1084 = vunpack.c.h.b16 %v303
    %v1085 = vunpack.c.l.b16 %v304
    %v1086 = vunpack.c.h.b16 %v304
    %v1087 = vunpack.c.l.b16 %v305
    %v1088 = vunpack.c.h.b16 %v305
    %v1089 = vunpack.c.l.b16 %v306
    %v1090 = vunpack.c.h.b16 %v306
    %v1091 = vunpack.c.l.b16 %v307
    %v1092 = vunpack.c.h.b16 %v307
    %v1093 = vunpack.c.l.b16 %v308
    %v1094 = vunpack.c.h.b16 %v308
    %v1095 = vunpack.c.l.b16 %v309
    %v1096 = vunpack.c.h.b16 %v309
    %v1097 = vunpack.c.l.b16 %v310
    %v1098 = vunpack.c.h.b16 %v310
    %v1099 = vunpack.c.l.b16 %v311
    %v1100 = vunpack.c.h.b16 %v311
    %v1101 = vunpack.c.l.b16 %v312
    %v1102 = vunpack.c.h.b16 %v312
    %v1103 = vpack.c.b16 %v595, %v591
    %v1104 = vpack.c.b16 %v596, %v592
    %v1105 = vpack.c.b16 %v597, %v593
    %v1106 = vpack.c.b16 %v598, %v594
    %v1107 = vpack.c.b16 %v603, %v599
    %v1108 = vpack.c.b16 %v604, %v600
    %v1109 = vpack.c.b16 %v605, %v601
    %v1110 = vpack.c.b16 %v606, %v602
    %v1111 = vpack.c.b16 %v611, %v607
    %v1112 = vpack.c.b16 %v612, %v608
    %v1113 = vpack.c.b16 %v613, %v609
    %v1114 = vpack.c.b16 %v614, %v610
    %v1115 = vpack.c.b16 %v619, %v615
    %v1116 = vpack.c.b16 %v620, %v616
    %v1117 = vpack.c.b16 %v621, %v617
    %v1118 = vpack.c.b16 %v622, %v618
    %v1119 = vpack.c.b16 %v627, %v623
    %v1120 = vpack.c.b16 %v628, %v624
    %v1121 = vpack.c.b16 %v629, %v625
    %v1122 = vpack.c.b16 %v630, %v626
    %v1123 = vpack.c.b16 %v635, %v631
    %v1124 = vpack.c.b16 %v636, %v632
    %v1125 = vpack.c.b16 %v637, %v633
    %v1126 = vpack.c.b16 %v638, %v634
    %v1127 = vpack.c.b16 %v643, %v639
    %v1128 = vpack.c.b16 %v644, %v640
    %v1129 = vpack.c.b16 %v645, %v641
    %v1130 = vpack.c.b16 %v646, %v642
    %v1131 = vpack.c.b16 %v651, %v647
    %v1132 = vpack.c.b16 %v652, %v648
    %v1133 = vpack.c.b16 %v653, %v649
    %v1134 = vpack.c.b16 %v654, %v650
    %v1135 = vpack.c.b16 %v659, %v655
    %v1136 = vpack.c.b16 %v660, %v656
    %v1137 = vpack.c.b16 %v661, %v657
    %v1138 = vpack.c.b16 %v662, %v658
    %v1139 = vpack.c.b16 %v667, %v663
    %v1140 = vpack.c.b16 %v668, %v664
    %v1141 = vpack.c.b16 %v669, %v665
    %v1142 = vpack.c.b16 %v670, %v666
    %v1143 = vpack.c.b16 %v675, %v671
    %v1144 = vpack.c.b16 %v676, %v672
    %v1145 = vpack.c.b16 %v677, %v673
    %v1146 = vpack.c.b16 %v678, %v674
    %v1147 = vpack.c.b16 %v683, %v679
    %v1148 = vpack.c.b16 %v684, %v680
    %v1149 = vpack.c.b16 %v685, %v681
    %v1150 = vpack.c.b16 %v686, %v682
    %v1151 = vpack.c.b16 %v691, %v687
    %v1152 = vpack.c.b16 %v692, %v688
    %v1153 = vpack.c.b16 %v693, %v689
    %v1154 = vpack.c.b16 %v694, %v690
    %v1155 = vpack.c.b16 %v699, %v695
    %v1156 = vpack.c.b16 %v700, %v696
    %v1157 = vpack.c.b16 %v701, %v697
    %v1158 = vpack.c.b16 %v702, %v698
    %v1159 = vpack.c.b16 %v707, %v703
    %v1160 = vpack.c.b16 %v708, %v704
    %v1161 = vpack.c.b16 %v709, %v705
    %v1162 = vpack.c.b16 %v710, %v706
    %v1163 = vpack.c.b16 %v715, %v711
    %v1164 = vpack.c.b16 %v716, %v712
    %v1165 = vpack.c.b16 %v717, %v713
    %v1166 = vpack.c.b16 %v718, %v714
    %v1167 = vpack.c.b16 %v723, %v719
    %v1168 = vpack.c.b16 %v724, %v720
    %v1169 = vpack.c.b16 %v725, %v721
    %v1170 = vpack.c.b16 %v726, %v722
    %v1171 = vpack.c.b16 %v731, %v727
    %v1172 = vpack.c.b16 %v732, %v728
    %v1173 = vpack.c.b16 %v733, %v729
    %v1174 = vpack.c.b16 %v734, %v730
    %v1175 = vpack.c.b16 %v739, %v735
    %v1176 = vpack.c.b16 %v740, %v736
    %v1177 = vpack.c.b16 %v741, %v737
    %v1178 = vpack.c.b16 %v742, %v738
    %v1179 = vpack.c.b16 %v747, %v743
    %v1180 = vpack.c.b16 %v748, %v744
    %v1181 = vpack.c.b16 %v749, %v745
    %v1182 = vpack.c.b16 %v750, %v746
    %v1183 = vpack.c.b16 %v755, %v751
    %v1184 = vpack.c.b16 %v756, %v752
    %v1185 = vpack.c.b16 %v757, %v753
    %v1186 = vpack.c.b16 %v758, %v754
    %v1187 = vpack.c.b16 %v763, %v759
    %v1188 = vpack.c.b16 %v764, %v760
    %v1189 = vpack.c.b16 %v765, %v761
    %v1190 = vpack.c.b16 %v766, %v762
    %v1191 = vpack.c.b16 %v771, %v767
    %v1192 = vpack.c.b16 %v772, %v768
    %v1193 = vpack.c.b16 %v773, %v769
    %v1194 = vpack.c.b16 %v774, %v770
    %v1195 = vpack.c.b16 %v779, %v775
    %v1196 = vpack.c.b16 %v780, %v776
    %v1197 = vpack.c.b16 %v781, %v777
    %v1198 = vpack.c.b16 %v782, %v778
    %v1199 = vpack.c.b16 %v787, %v783
    %v1200 = vpack.c.b16 %v788, %v784
    %v1201 = vpack.c.b16 %v789, %v785
    %v1202 = vpack.c.b16 %v790, %v786
    %v1203 = vpack.c.b16 %v795, %v791
    %v1204 = vpack.c.b16 %v796, %v792
    %v1205 = vpack.c.b16 %v797, %v793
    %v1206 = vpack.c.b16 %v798, %v794
    %v1207 = vpack.c.b16 %v803, %v799
    %v1208 = vpack.c.b16 %v804, %v800
    %v1209 = vpack.c.b16 %v805, %v801
    %v1210 = vpack.c.b16 %v806, %v802
    %v1211 = vpack.c.b16 %v811, %v807
    %v1212 = vpack.c.b16 %v812, %v808
    %v1213 = vpack.c.b16 %v813, %v809
    %v1214 = vpack.c.b16 %v814, %v810
    %v1215 = vpack.c.b16 %v819, %v815
    %v1216 = vpack.c.b16 %v820, %v816
    %v1217 = vpack.c.b16 %v821, %v817
    %v1218 = vpack.c.b16 %v822, %v818
    %v1219 = vpack.c.b16 %v827, %v823
    %v1220 = vpack.c.b16 %v828, %v824
    %v1221 = vpack.c.b16 %v829, %v825
    %v1222 = vpack.c.b16 %v830, %v826
    %v1223 = vpack.c.b16 %v835, %v831
    %v1224 = vpack.c.b16 %v836, %v832
    %v1225 = vpack.c.b16 %v837, %v833
    %v1226 = vpack.c.b16 %v838, %v834
    %v1227 = vpack.c.b16 %v843, %v839
    %v1228 = vpack.c.b16 %v844, %v840
    %v1229 = vpack.c.b16 %v845, %v841
    %v1230 = vpack.c.b16 %v846, %v842
    %v1231 = vpack.c.b16 %v851, %v847
    %v1232 = vpack.c.b16 %v852, %v848
    %v1233 = vpack.c.b16 %v853, %v849
    %v1234 = vpack.c.b16 %v854, %v850
    %v1235 = vpack.c.b16 %v859, %v855
    %v1236 = vpack.c.b16 %v860, %v856
    %v1237 = vpack.c.b16 %v861, %v857
    %v1238 = vpack.c.b16 %v862, %v858
    %v1239 = vpack.c.b16 %v867, %v863
    %v1240 = vpack.c.b16 %v868, %v864
    %v1241 = vpack.c.b16 %v869, %v865
    %v1242 = vpack.c.b16 %v870, %v866
    %v1243 = vpack.c.b16 %v875, %v871
    %v1244 = vpack.c.b16 %v876, %v872
    %v1245 = vpack.c.b16 %v877, %v873
    %v1246 = vpack.c.b16 %v878, %v874
    %v1247 = vpack.c.b16 %v883, %v879
    %v1248 = vpack.c.b16 %v884, %v880
    %v1249 = vpack.c.b16 %v885, %v881
    %v1250 = vpack.c.b16 %v886, %v882
    %v1251 = vpack.c.b16 %v891, %v887
    %v1252 = vpack.c.b16 %v892, %v888
    %v1253 = vpack.c.b16 %v893, %v889
    %v1254 = vpack.c.b16 %v894, %v890
    %v1255 = vpack.c.b16 %v899, %v895
    %v1256 = vpack.c.b16 %v900, %v896
    %v1257 = vpack.c.b16 %v901, %v897
    %v1258 = vpack.c.b16 %v902, %v898
    %v1259 = vpack.c.b16 %v907, %v903
    %v1260 = vpack.c.b16 %v908, %v904
    %v1261 = vpack.c.b16 %v909, %v905
    %v1262 = vpack.c.b16 %v910, %v906
    %v1263 = vpack.c.b16 %v915, %v911
    %v1264 = vpack.c.b16 %v916, %v912
    %v1265 = vpack.c.b16 %v917, %v913
    %v1266 = vpack.c.b16 %v918, %v914
    %v1267 = vpack.c.b16 %v923, %v919
    %v1268 = vpack.c.b16 %v924, %v920
    %v1269 = vpack.c.b16 %v925, %v921
    %v1270 = vpack.c.b16 %v926, %v922
    %v1271 = vpack.c.b16 %v931, %v927
    %v1272 = vpack.c.b16 %v932, %v928
    %v1273 = vpack.c.b16 %v933, %v929
    %v1274 = vpack.c.b16 %v934, %v930
    %v1275 = vpack.c.b16 %v939, %v935
    %v1276 = vpack.c.b16 %v940, %v936
    %v1277 = vpack.c.b16 %v941, %v937
    %v1278 = vpack.c.b16 %v942, %v938
    %v1279 = vpack.c.b16 %v947, %v943
    %v1280 = vpack.c.b16 %v948, %v944
    %v1281 = vpack.c.b16 %v949, %v945
    %v1282 = vpack.c.b16 %v950, %v946
    %v1283 = vpack.c.b16 %v955, %v951
    %v1284 = vpack.c.b16 %v956, %v952
    %v1285 = vpack.c.b16 %v957, %v953
    %v1286 = vpack.c.b16 %v958, %v954
    %v1287 = vpack.c.b16 %v963, %v959
    %v1288 = vpack.c.b16 %v964, %v960
    %v1289 = vpack.c.b16 %v965, %v961
    %v1290 = vpack.c.b16 %v966, %v962
    %v1291 = vpack.c.b16 %v971, %v967
    %v1292 = vpack.c.b16 %v972, %v968
    %v1293 = vpack.c.b16 %v973, %v969
    %v1294 = vpack.c.b16 %v974, %v970
    %v1295 = vpack.c.b16 %v979, %v975
    %v1296 = vpack.c.b16 %v980, %v976
    %v1297 = vpack.c.b16 %v981, %v977
    %v1298 = vpack.c.b16 %v982, %v978
    %v1299 = vpack.c.b16 %v987, %v983
    %v1300 = vpack.c.b16 %v988, %v984
    %v1301 = vpack.c.b16 %v989, %v985
    %v1302 = vpack.c.b16 %v990, %v986
    %v1303 = vpack.c.b16 %v995, %v991
    %v1304 = vpack.c.b16 %v996, %v992
    %v1305 = vpack.c.b16 %v997, %v993
    %v1306 = vpack.c.b16 %v998, %v994
    %v1307 = vpack.c.b16 %v1003, %v999
    %v1308 = vpack.c.b16 %v1004, %v1000
    %v1309 = vpack.c.b16 %v1005, %v1001
    %v1310 = vpack.c.b16 %v1006, %v1002
    %v1311 = vpack.c.b16 %v1011, %v1007
    %v1312 = vpack.c.b16 %v1012, %v1008
    %v1313 = vpack.c.b16 %v1013, %v1009
    %v1314 = vpack.c.b16 %v1014, %v1010
    %v1315 = vpack.c.b16 %v1019, %v1015
    %v1316 = vpack.c.b16 %v1020, %v1016
    %v1317 = vpack.c.b16 %v1021, %v1017
    %v1318 = vpack.c.b16 %v1022, %v1018
    %v1319 = vpack.c.b16 %v1027, %v1023
    %v1320 = vpack.c.b16 %v1028, %v1024
    %v1321 = vpack.c.b16 %v1029, %v1025
    %v1322 = vpack.c.b16 %v1030, %v1026
    %v1323 = vpack.c.b16 %v1035, %v1031
    %v1324 = vpack.c.b16 %v1036, %v1032
    %v1325 = vpack.c.b16 %v1037, %v1033
    %v1326 = vpack.c.b16 %v1038, %v1034
    %v1327 = vpack.c.b16 %v1043, %v1039
    %v1328 = vpack.c.b16 %v1044, %v1040
    %v1329 = vpack.c.b16 %v1045, %v1041
    %v1330 = vpack.c.b16 %v1046, %v1042
    %v1331 = vpack.c.b16 %v1051, %v1047
    %v1332 = vpack.c.b16 %v1052, %v1048
    %v1333 = vpack.c.b16 %v1053, %v1049
    %v1334 = vpack.c.b16 %v1054, %v1050
    %v1335 = vpack.c.b16 %v1059, %v1055
    %v1336 = vpack.c.b16 %v1060, %v1056
    %v1337 = vpack.c.b16 %v1061, %v1057
    %v1338 = vpack.c.b16 %v1062, %v1058
    %v1339 = vpack.c.b16 %v1067, %v1063
    %v1340 = vpack.c.b16 %v1068, %v1064
    %v1341 = vpack.c.b16 %v1069, %v1065
    %v1342 = vpack.c.b16 %v1070, %v1066
    %v1343 = vpack.c.b16 %v1075, %v1071
    %v1344 = vpack.c.b16 %v1076, %v1072
    %v1345 = vpack.c.b16 %v1077, %v1073
    %v1346 = vpack.c.b16 %v1078, %v1074
    %v1347 = vpack.c.b16 %v1083, %v1079
    %v1348 = vpack.c.b16 %v1084, %v1080
    %v1349 = vpack.c.b16 %v1085, %v1081
    %v1350 = vpack.c.b16 %v1086, %v1082
    %v1351 = vpack.c.b16 %v1091, %v1087
    %v1352 = vpack.c.b16 %v1092, %v1088
    %v1353 = vpack.c.b16 %v1093, %v1089
    %v1354 = vpack.c.b16 %v1094, %v1090
    %v1355 = vpack.c.b16 %v1099, %v1095
    %v1356 = vpack.c.b16 %v1100, %v1096
    %v1357 = vpack.c.b16 %v1101, %v1097
    %v1358 = vpack.c.b16 %v1102, %v1098
    %1615 = vmatprep.subr.bf16.mxu0 %v1104
    %1616 = vmatpush1.bf16.msra.mxu0 %v1103
    %1617 = vmatprep.subr.bf16.mxu0 %v1108
    %1618 = vmatpush1.bf16.msra.mxu0 %v1107
    %1619 = vmatprep.subr.bf16.mxu0 %v1112
    %1620 = vmatpush1.bf16.msra.mxu0 %v1111
    %1621 = vmatprep.subr.bf16.mxu0 %v1116
    %1622 = vmatpush1.bf16.msra.mxu0 %v1115
    %1623 = vmatprep.subr.bf16.mxu0 %v1120
    %1624 = vmatpush1.bf16.msra.mxu0 %v1119
    %1625 = vmatprep.subr.bf16.mxu0 %v1124
    %1626 = vmatpush1.bf16.msra.mxu0 %v1123
    %1627 = vmatprep.subr.bf16.mxu0 %v1128
    %1628 = vmatpush1.bf16.msra.mxu0 %v1127
    %1629 = vmatprep.subr.bf16.mxu0 %v1132
    %1630 = vmatpush1.bf16.msra.mxu0 %v1131
    %1631 = vmatprep.subr.bf16.mxu0 %v1136
    %1632 = vmatpush1.bf16.msra.mxu0 %v1135
    %1633 = vmatprep.subr.bf16.mxu0 %v1140
    %1634 = vmatpush1.bf16.msra.mxu0 %v1139
    %1635 = vmatprep.subr.bf16.mxu0 %v1144
    %1636 = vmatpush1.bf16.msra.mxu0 %v1143
    %1637 = vmatprep.subr.bf16.mxu0 %v1148
    %1638 = vmatpush1.bf16.msra.mxu0 %v1147
    %1639 = vmatprep.subr.bf16.mxu0 %v1152
    %1640 = vmatpush1.bf16.msra.mxu0 %v1151
    %1641 = vmatprep.subr.bf16.mxu0 %v1156
    %1642 = vmatpush1.bf16.msra.mxu0 %v1155
    %1643 = vmatprep.subr.bf16.mxu0 %v1160
    %1644 = vmatpush1.bf16.msra.mxu0 %v1159
    %1645 = vmatprep.subr.bf16.mxu0 %v1164
    %1646 = vmatpush1.bf16.msra.mxu0 %v1163
    %1647 = vmatprep.mubr.bf16.mxu0 %v50
    %1648 = vmatmul.mubr.bf16.gmra.mrb[0].mxu0 %v49
    %v1649 = vpop.f32.mrb[0].mxu0
    %v1650 = vadd.f32 %v318, %v1649
    %v1651 = vpop.f32.mrb[0].mxu0
    %v1652 = vadd.f32 %v322, %v1651
    %v1653 = vpop.f32.mrb[0].mxu0
    %v1654 = vpop.f32.mrb[0].mxu0
    %1655 = vdwg.mxu0
    %1656 = vmatprep.subr.bf16.mxu0 %v1168
    %1657 = vmatpush1.bf16.msra.mxu0 %v1167
    %1658 = vmatprep.subr.bf16.mxu0 %v1172
    %1659 = vmatpush1.bf16.msra.mxu0 %v1171
    %1660 = vmatprep.subr.bf16.mxu0 %v1176
    %1661 = vmatpush1.bf16.msra.mxu0 %v1175
    %1662 = vmatprep.subr.bf16.mxu0 %v1180
    %1663 = vmatpush1.bf16.msra.mxu0 %v1179
    %1664 = vmatprep.subr.bf16.mxu0 %v1184
    %1665 = vmatpush1.bf16.msra.mxu0 %v1183
    %1666 = vmatprep.subr.bf16.mxu0 %v1188
    %1667 = vmatpush1.bf16.msra.mxu0 %v1187
    %1668 = vmatprep.subr.bf16.mxu0 %v1192
    %1669 = vmatpush1.bf16.msra.mxu0 %v1191
    %1670 = vmatprep.subr.bf16.mxu0 %v1196
    %1671 = vmatpush1.bf16.msra.mxu0 %v1195
    %1672 = vmatprep.subr.bf16.mxu0 %v1200
    %1673 = vmatpush1.bf16.msra.mxu0 %v1199
    %1674 = vmatprep.subr.bf16.mxu0 %v1204
    %1675 = vmatpush1.bf16.msra.mxu0 %v1203
    %1676 = vmatprep.subr.bf16.mxu0 %v1208
    %1677 = vmatpush1.bf16.msra.mxu0 %v1207
    %1678 = vmatprep.subr.bf16.mxu0 %v1212
    %1679 = vmatpush1.bf16.msra.mxu0 %v1211
    %1680 = vmatprep.subr.bf16.mxu0 %v1216
    %1681 = vmatpush1.bf16.msra.mxu0 %v1215
    %1682 = vmatprep.subr.bf16.mxu0 %v1220
    %1683 = vmatpush1.bf16.msra.mxu0 %v1219
    %1684 = vmatprep.subr.bf16.mxu0 %v1224
    %1685 = vmatpush1.bf16.msra.mxu0 %v1223
    %1686 = vmatprep.subr.bf16.mxu0 %v1228
    %1687 = vmatpush1.bf16.msra.mxu0 %v1227
    %1688 = vmatprep.mubr.bf16.mxu0 %v52
    %1689 = vmatmul.mubr.bf16.gmra.mrb[0].mxu0 %v51
    %v1690 = vpop.f32.mrb[0].mxu0
    %v1691 = vadd.f32 %v1650, %v1690
    %v1692 = vpop.f32.mrb[0].mxu0
    %v1693 = vadd.f32 %v1652, %v1692
    %v1694 = vpop.f32.mrb[0].mxu0
    %v1695 = vpop.f32.mrb[0].mxu0
    %1696 = vdwg.mxu0
    %1697 = vmatprep.subr.bf16.mxu0 %v1232
    %1698 = vmatpush1.bf16.msra.mxu0 %v1231
    %1699 = vmatprep.subr.bf16.mxu0 %v1236
    %1700 = vmatpush1.bf16.msra.mxu0 %v1235
    %1701 = vmatprep.subr.bf16.mxu0 %v1240
    %1702 = vmatpush1.bf16.msra.mxu0 %v1239
    %1703 = vmatprep.subr.bf16.mxu0 %v1244
    %1704 = vmatpush1.bf16.msra.mxu0 %v1243
    %1705 = vmatprep.subr.bf16.mxu0 %v1248
    %1706 = vmatpush1.bf16.msra.mxu0 %v1247
    %1707 = vmatprep.subr.bf16.mxu0 %v1252
    %1708 = vmatpush1.bf16.msra.mxu0 %v1251
    %1709 = vmatprep.subr.bf16.mxu0 %v1256
    %1710 = vmatpush1.bf16.msra.mxu0 %v1255
    %1711 = vmatprep.subr.bf16.mxu0 %v1260
    %1712 = vmatpush1.bf16.msra.mxu0 %v1259
    %1713 = vmatprep.subr.bf16.mxu0 %v1264
    %1714 = vmatpush1.bf16.msra.mxu0 %v1263
    %1715 = vmatprep.subr.bf16.mxu0 %v1268
    %1716 = vmatpush1.bf16.msra.mxu0 %v1267
    %1717 = vmatprep.subr.bf16.mxu0 %v1272
    %1718 = vmatpush1.bf16.msra.mxu0 %v1271
    %1719 = vmatprep.subr.bf16.mxu0 %v1276
    %1720 = vmatpush1.bf16.msra.mxu0 %v1275
    %1721 = vmatprep.subr.bf16.mxu0 %v1280
    %1722 = vmatpush1.bf16.msra.mxu0 %v1279
    %1723 = vmatprep.subr.bf16.mxu0 %v1284
    %1724 = vmatpush1.bf16.msra.mxu0 %v1283
    %1725 = vmatprep.subr.bf16.mxu0 %v1288
    %1726 = vmatpush1.bf16.msra.mxu0 %v1287
    %1727 = vmatprep.subr.bf16.mxu0 %v1292
    %1728 = vmatpush1.bf16.msra.mxu0 %v1291
    %1729 = vmatprep.mubr.bf16.mxu0 %v54
    %1730 = vmatmul.mubr.bf16.gmra.mrb[0].mxu0 %v53
    %v1731 = vpop.f32.mrb[0].mxu0
    %v1732 = vadd.f32 %v1691, %v1731
    %v1733 = vpop.f32.mrb[0].mxu0
    %v1734 = vadd.f32 %v1693, %v1733
    %v1735 = vpop.f32.mrb[0].mxu0
    %v1736 = vpop.f32.mrb[0].mxu0
    %1737 = vdwg.mxu0
    %1738 = vmatprep.subr.bf16.mxu0 %v1296
    %1739 = vmatpush1.bf16.msra.mxu0 %v1295
    %1740 = vmatprep.subr.bf16.mxu0 %v1300
    %1741 = vmatpush1.bf16.msra.mxu0 %v1299
    %1742 = vmatprep.subr.bf16.mxu0 %v1304
    %1743 = vmatpush1.bf16.msra.mxu0 %v1303
    %1744 = vmatprep.subr.bf16.mxu0 %v1308
    %1745 = vmatpush1.bf16.msra.mxu0 %v1307
    %1746 = vmatprep.subr.bf16.mxu0 %v1312
    %1747 = vmatpush1.bf16.msra.mxu0 %v1311
    %1748 = vmatprep.subr.bf16.mxu0 %v1316
    %1749 = vmatpush1.bf16.msra.mxu0 %v1315
    %1750 = vmatprep.subr.bf16.mxu0 %v1320
    %1751 = vmatpush1.bf16.msra.mxu0 %v1319
    %1752 = vmatprep.subr.bf16.mxu0 %v1324
    %1753 = vmatpush1.bf16.msra.mxu0 %v1323
    %1754 = vmatprep.subr.bf16.mxu0 %v1328
    %1755 = vmatpush1.bf16.msra.mxu0 %v1327
    %1756 = vmatprep.subr.bf16.mxu0 %v1332
    %1757 = vmatpush1.bf16.msra.mxu0 %v1331
    %1758 = vmatprep.subr.bf16.mxu0 %v1336
    %1759 = vmatpush1.bf16.msra.mxu0 %v1335
    %1760 = vmatprep.subr.bf16.mxu0 %v1340
    %1761 = vmatpush1.bf16.msra.mxu0 %v1339
    %1762 = vmatprep.subr.bf16.mxu0 %v1344
    %1763 = vmatpush1.bf16.msra.mxu0 %v1343
    %1764 = vmatprep.subr.bf16.mxu0 %v1348
    %1765 = vmatpush1.bf16.msra.mxu0 %v1347
    %1766 = vmatprep.subr.bf16.mxu0 %v1352
    %1767 = vmatpush1.bf16.msra.mxu0 %v1351
    %1768 = vmatprep.subr.bf16.mxu0 %v1356
    %1769 = vmatpush1.bf16.msra.mxu0 %v1355
    %1770 = vmatprep.mubr.bf16.mxu0 %v56
    %1771 = vmatmul.mubr.bf16.gmra.mrb[0].mxu0 %v55
    %v1772 = vpop.f32.mrb[0].mxu0
    %v1773 = vadd.f32 %v1732, %v1772
    %v1774 = vpop.f32.mrb[0].mxu0
    %v1775 = vadd.f32 %v1734, %v1774
    %v1776 = vpop.f32.mrb[0].mxu0
    %v1777 = vpop.f32.mrb[0].mxu0
    %1778 = vdwg.mxu0
    %1779 = vmatprep.subr.bf16.mxu0 %v1106
    %1780 = vmatpush1.bf16.msra.mxu0 %v1105
    %1781 = vmatprep.subr.bf16.mxu0 %v1110
    %1782 = vmatpush1.bf16.msra.mxu0 %v1109
    %1783 = vmatprep.subr.bf16.mxu0 %v1114
    %1784 = vmatpush1.bf16.msra.mxu0 %v1113
    %1785 = vmatprep.subr.bf16.mxu0 %v1118
    %1786 = vmatpush1.bf16.msra.mxu0 %v1117
    %1787 = vmatprep.subr.bf16.mxu0 %v1122
    %1788 = vmatpush1.bf16.msra.mxu0 %v1121
    %1789 = vmatprep.subr.bf16.mxu0 %v1126
    %1790 = vmatpush1.bf16.msra.mxu0 %v1125
    %1791 = vmatprep.subr.bf16.mxu0 %v1130
    %1792 = vmatpush1.bf16.msra.mxu0 %v1129
    %1793 = vmatprep.subr.bf16.mxu0 %v1134
    %1794 = vmatpush1.bf16.msra.mxu0 %v1133
    %1795 = vmatprep.subr.bf16.mxu0 %v1138
    %1796 = vmatpush1.bf16.msra.mxu0 %v1137
    %1797 = vmatprep.subr.bf16.mxu0 %v1142
    %1798 = vmatpush1.bf16.msra.mxu0 %v1141
    %1799 = vmatprep.subr.bf16.mxu0 %v1146
    %1800 = vmatpush1.bf16.msra.mxu0 %v1145
    %1801 = vmatprep.subr.bf16.mxu0 %v1150
    %1802 = vmatpush1.bf16.msra.mxu0 %v1149
    %1803 = vmatprep.subr.bf16.mxu0 %v1154
    %1804 = vmatpush1.bf16.msra.mxu0 %v1153
    %1805 = vmatprep.subr.bf16.mxu0 %v1158
    %1806 = vmatpush1.bf16.msra.mxu0 %v1157
    %1807 = vmatprep.subr.bf16.mxu0 %v1162
    %1808 = vmatpush1.bf16.msra.mxu0 %v1161
    %1809 = vmatprep.subr.bf16.mxu0 %v1166
    %1810 = vmatpush1.bf16.msra.mxu0 %v1165
    %1811 = vmatprep.mubr.bf16.mxu0 %v50
    %1812 = vmatmul.mubr.bf16.gmra.mrb[0].mxu0 %v49
    %v1813 = vpop.f32.mrb[0].mxu0
    %v1814 = vadd.f32 %v326, %v1813
    %v1815 = vpop.f32.mrb[0].mxu0
    %v1816 = vadd.f32 %v330, %v1815
    %v1817 = vpop.f32.mrb[0].mxu0
    %v1818 = vpop.f32.mrb[0].mxu0
    %1819 = vdwg.mxu0
    %1820 = vmatprep.subr.bf16.mxu0 %v1170
    %1821 = vmatpush1.bf16.msra.mxu0 %v1169
    %1822 = vmatprep.subr.bf16.mxu0 %v1174
    %1823 = vmatpush1.bf16.msra.mxu0 %v1173
    %1824 = vmatprep.subr.bf16.mxu0 %v1178
    %1825 = vmatpush1.bf16.msra.mxu0 %v1177
    %1826 = vmatprep.subr.bf16.mxu0 %v1182
    %1827 = vmatpush1.bf16.msra.mxu0 %v1181
    %1828 = vmatprep.subr.bf16.mxu0 %v1186
    %1829 = vmatpush1.bf16.msra.mxu0 %v1185
    %1830 = vmatprep.subr.bf16.mxu0 %v1190
    %1831 = vmatpush1.bf16.msra.mxu0 %v1189
    %1832 = vmatprep.subr.bf16.mxu0 %v1194
    %1833 = vmatpush1.bf16.msra.mxu0 %v1193
    %1834 = vmatprep.subr.bf16.mxu0 %v1198
    %1835 = vmatpush1.bf16.msra.mxu0 %v1197
    %1836 = vmatprep.subr.bf16.mxu0 %v1202
    %1837 = vmatpush1.bf16.msra.mxu0 %v1201
    %1838 = vmatprep.subr.bf16.mxu0 %v1206
    %1839 = vmatpush1.bf16.msra.mxu0 %v1205
    %1840 = vmatprep.subr.bf16.mxu0 %v1210
    %1841 = vmatpush1.bf16.msra.mxu0 %v1209
    %1842 = vmatprep.subr.bf16.mxu0 %v1214
    %1843 = vmatpush1.bf16.msra.mxu0 %v1213
    %1844 = vmatprep.subr.bf16.mxu0 %v1218
    %1845 = vmatpush1.bf16.msra.mxu0 %v1217
    %1846 = vmatprep.subr.bf16.mxu0 %v1222
    %1847 = vmatpush1.bf16.msra.mxu0 %v1221
    %1848 = vmatprep.subr.bf16.mxu0 %v1226
    %1849 = vmatpush1.bf16.msra.mxu0 %v1225
    %1850 = vmatprep.subr.bf16.mxu0 %v1230
    %1851 = vmatpush1.bf16.msra.mxu0 %v1229
    %1852 = vmatprep.mubr.bf16.mxu0 %v52
    %1853 = vmatmul.mubr.bf16.gmra.mrb[0].mxu0 %v51
    %v1854 = vpop.f32.mrb[0].mxu0
    %v1855 = vadd.f32 %v1814, %v1854
    %v1856 = vpop.f32.mrb[0].mxu0
    %v1857 = vadd.f32 %v1816, %v1856
    %v1858 = vpop.f32.mrb[0].mxu0
    %v1859 = vpop.f32.mrb[0].mxu0
    %1860 = vdwg.mxu0
    %1861 = vmatprep.subr.bf16.mxu0 %v1234
    %1862 = vmatpush1.bf16.msra.mxu0 %v1233
    %1863 = vmatprep.subr.bf16.mxu0 %v1238
    %1864 = vmatpush1.bf16.msra.mxu0 %v1237
    %1865 = vmatprep.subr.bf16.mxu0 %v1242
    %1866 = vmatpush1.bf16.msra.mxu0 %v1241
    %1867 = vmatprep.subr.bf16.mxu0 %v1246
    %1868 = vmatpush1.bf16.msra.mxu0 %v1245
    %1869 = vmatprep.subr.bf16.mxu0 %v1250
    %1870 = vmatpush1.bf16.msra.mxu0 %v1249
    %1871 = vmatprep.subr.bf16.mxu0 %v1254
    %1872 = vmatpush1.bf16.msra.mxu0 %v1253
    %1873 = vmatprep.subr.bf16.mxu0 %v1258
    %1874 = vmatpush1.bf16.msra.mxu0 %v1257
    %1875 = vmatprep.subr.bf16.mxu0 %v1262
    %1876 = vmatpush1.bf16.msra.mxu0 %v1261
    %1877 = vmatprep.subr.bf16.mxu0 %v1266
    %1878 = vmatpush1.bf16.msra.mxu0 %v1265
    %1879 = vmatprep.subr.bf16.mxu0 %v1270
    %1880 = vmatpush1.bf16.msra.mxu0 %v1269
    %1881 = vmatprep.subr.bf16.mxu0 %v1274
    %1882 = vmatpush1.bf16.msra.mxu0 %v1273
    %1883 = vmatprep.subr.bf16.mxu0 %v1278
    %1884 = vmatpush1.bf16.msra.mxu0 %v1277
    %1885 = vmatprep.subr.bf16.mxu0 %v1282
    %1886 = vmatpush1.bf16.msra.mxu0 %v1281
    %1887 = vmatprep.subr.bf16.mxu0 %v1286
    %1888 = vmatpush1.bf16.msra.mxu0 %v1285
    %1889 = vmatprep.subr.bf16.mxu0 %v1290
    %1890 = vmatpush1.bf16.msra.mxu0 %v1289
    %1891 = vmatprep.subr.bf16.mxu0 %v1294
    %1892 = vmatpush1.bf16.msra.mxu0 %v1293
    %1893 = vmatprep.mubr.bf16.mxu0 %v54
    %1894 = vmatmul.mubr.bf16.gmra.mrb[0].mxu0 %v53
    %v1895 = vpop.f32.mrb[0].mxu0
    %v1896 = vadd.f32 %v1855, %v1895
    %v1897 = vpop.f32.mrb[0].mxu0
    %v1898 = vadd.f32 %v1857, %v1897
    %v1899 = vpop.f32.mrb[0].mxu0
    %v1900 = vpop.f32.mrb[0].mxu0
    %1901 = vdwg.mxu0
    %1902 = vmatprep.subr.bf16.mxu0 %v1298
    %1903 = vmatpush1.bf16.msra.mxu0 %v1297
    %1904 = vmatprep.subr.bf16.mxu0 %v1302
    %1905 = vmatpush1.bf16.msra.mxu0 %v1301
    %1906 = vmatprep.subr.bf16.mxu0 %v1306
    %1907 = vmatpush1.bf16.msra.mxu0 %v1305
    %1908 = vmatprep.subr.bf16.mxu0 %v1310
    %1909 = vmatpush1.bf16.msra.mxu0 %v1309
    %1910 = vmatprep.subr.bf16.mxu0 %v1314
    %1911 = vmatpush1.bf16.msra.mxu0 %v1313
    %1912 = vmatprep.subr.bf16.mxu0 %v1318
    %1913 = vmatpush1.bf16.msra.mxu0 %v1317
    %1914 = vmatprep.subr.bf16.mxu0 %v1322
    %1915 = vmatpush1.bf16.msra.mxu0 %v1321
    %1916 = vmatprep.subr.bf16.mxu0 %v1326
    %1917 = vmatpush1.bf16.msra.mxu0 %v1325
    %1918 = vmatprep.subr.bf16.mxu0 %v1330
    %1919 = vmatpush1.bf16.msra.mxu0 %v1329
    %1920 = vmatprep.subr.bf16.mxu0 %v1334
    %1921 = vmatpush1.bf16.msra.mxu0 %v1333
    %1922 = vmatprep.subr.bf16.mxu0 %v1338
    %1923 = vmatpush1.bf16.msra.mxu0 %v1337
    %1924 = vmatprep.subr.bf16.mxu0 %v1342
    %1925 = vmatpush1.bf16.msra.mxu0 %v1341
    %1926 = vmatprep.subr.bf16.mxu0 %v1346
    %1927 = vmatpush1.bf16.msra.mxu0 %v1345
    %1928 = vmatprep.subr.bf16.mxu0 %v1350
    %1929 = vmatpush1.bf16.msra.mxu0 %v1349
    %1930 = vmatprep.subr.bf16.mxu0 %v1354
    %1931 = vmatpush1.bf16.msra.mxu0 %v1353
    %1932 = vmatprep.subr.bf16.mxu0 %v1358
    %1933 = vmatpush1.bf16.msra.mxu0 %v1357
    %1934 = vmatprep.mubr.bf16.mxu0 %v56
    %1935 = vmatmul.mubr.bf16.gmra.mrb[0].mxu0 %v55
    %v1936 = vpop.f32.mrb[0].mxu0
    %v1937 = vadd.f32 %v1896, %v1936
    %v1938 = vpop.f32.mrb[0].mxu0
    %v1939 = vadd.f32 %v1898, %v1938
    %v1940 = vpop.f32.mrb[0].mxu0
    %v1941 = vpop.f32.mrb[0].mxu0
    %1942 = vdwg.mxu0
    %v1943 = vmax.f32 %v1773, 0.0
    %v1944 = vmax.f32 %v1775, 0.0
    %v1945 = vmax.f32 %v1937, 0.0
    %v1946 = vmax.f32 %v1939, 0.0
    %v1947 = vpack.c.bf16 %v1943, %v1943
    %v1948 = vpack.c.bf16 %v1944, %v1944
    %v1949 = vpack.c.bf16 %v1945, %v1945
    %v1950 = vpack.c.bf16 %v1946, %v1946
    %v1951 = vld [vmem:[%s3] sm:$0xff]
    %v1952 = vld [vmem:[%s3 + $0x8] sm:$0xff]
    %v1953 = vld [vmem:[%s3 + $0x10] sm:$0xff]
    %v1954 = vld [vmem:[%s3 + $0x18] sm:$0xff]
    %v1955 = vld [vmem:[%s3 + $0x20] sm:$0xff]
    %v1956 = vld [vmem:[%s3 + $0x28] sm:$0xff]
    %v1957 = vld [vmem:[%s3 + $0x30] sm:$0xff]
    %v1958 = vld [vmem:[%s3 + $0x38] sm:$0xff]
    %v1959 = vld [vmem:[%s3 + $0x40] sm:$0xff]
    %v1960 = vld [vmem:[%s3 + $0x48] sm:$0xff]
    %v1961 = vld [vmem:[%s3 + $0x50] sm:$0xff]
    %v1962 = vld [vmem:[%s3 + $0x58] sm:$0xff]
    %v1963 = vld [vmem:[%s3 + $0x60] sm:$0xff]
    %v1964 = vld [vmem:[%s3 + $0x68] sm:$0xff]
    %v1965 = vld [vmem:[%s3 + $0x70] sm:$0xff]
    %v1966 = vld [vmem:[%s3 + $0x78] sm:$0xff]
    %v1967 = vld [vmem:[%s3 + $0x80] sm:$0xff]
    %v1968 = vld [vmem:[%s3 + $0x88] sm:$0xff]
    %v1969 = vld [vmem:[%s3 + $0x90] sm:$0xff]
    %v1970 = vld [vmem:[%s3 + $0x98] sm:$0xff]
    %v1971 = vld [vmem:[%s3 + $0xa0] sm:$0xff]
    %v1972 = vld [vmem:[%s3 + $0xa8] sm:$0xff]
    %v1973 = vld [vmem:[%s3 + $0xb0] sm:$0xff]
    %v1974 = vld [vmem:[%s3 + $0xb8] sm:$0xff]
    %v1975 = vld [vmem:[%s3 + $0xc0] sm:$0xff]
    %v1976 = vld [vmem:[%s3 + $0xc8] sm:$0xff]
    %v1977 = vld [vmem:[%s3 + $0xd0] sm:$0xff]
    %v1978 = vld [vmem:[%s3 + $0xd8] sm:$0xff]
    %v1979 = vld [vmem:[%s3 + $0xe0] sm:$0xff]
    %v1980 = vld [vmem:[%s3 + $0xe8] sm:$0xff]
    %v1981 = vld [vmem:[%s3 + $0xf0] sm:$0xff]
    %v1982 = vld [vmem:[%s3 + $0xf8] sm:$0xff]
    %v1983 = vld [vmem:[%s3 + $0x100] sm:$0xff]
    %v1984 = vld [vmem:[%s3 + $0x108] sm:$0xff]
    %v1985 = vld [vmem:[%s3 + $0x110] sm:$0xff]
    %v1986 = vld [vmem:[%s3 + $0x118] sm:$0xff]
    %v1987 = vld [vmem:[%s3 + $0x120] sm:$0xff]
    %v1988 = vld [vmem:[%s3 + $0x128] sm:$0xff]
    %v1989 = vld [vmem:[%s3 + $0x130] sm:$0xff]
    %v1990 = vld [vmem:[%s3 + $0x138] sm:$0xff]
    %v1991 = vld [vmem:[%s3 + $0x140] sm:$0xff]
    %v1992 = vld [vmem:[%s3 + $0x148] sm:$0xff]
    %v1993 = vld [vmem:[%s3 + $0x150] sm:$0xff]
    %v1994 = vld [vmem:[%s3 + $0x158] sm:$0xff]
    %v1995 = vld [vmem:[%s3 + $0x160] sm:$0xff]
    %v1996 = vld [vmem:[%s3 + $0x168] sm:$0xff]
    %v1997 = vld [vmem:[%s3 + $0x170] sm:$0xff]
    %v1998 = vld [vmem:[%s3 + $0x178] sm:$0xff]
    %v1999 = vld [vmem:[%s3 + $0x180] sm:$0xff]
    %v2000 = vld [vmem:[%s3 + $0x188] sm:$0xff]
    %v2001 = vld [vmem:[%s3 + $0x190] sm:$0xff]
    %v2002 = vld [vmem:[%s3 + $0x198] sm:$0xff]
    %v2003 = vld [vmem:[%s3 + $0x1a0] sm:$0xff]
    %v2004 = vld [vmem:[%s3 + $0x1a8] sm:$0xff]
    %v2005 = vld [vmem:[%s3 + $0x1b0] sm:$0xff]
    %v2006 = vld [vmem:[%s3 + $0x1b8] sm:$0xff]
    %v2007 = vld [vmem:[%s3 + $0x1c0] sm:$0xff]
    %v2008 = vld [vmem:[%s3 + $0x1c8] sm:$0xff]
    %v2009 = vld [vmem:[%s3 + $0x1d0] sm:$0xff]
    %v2010 = vld [vmem:[%s3 + $0x1d8] sm:$0xff]
    %v2011 = vld [vmem:[%s3 + $0x1e0] sm:$0xff]
    %v2012 = vld [vmem:[%s3 + $0x1e8] sm:$0xff]
    %v2013 = vld [vmem:[%s3 + $0x1f0] sm:$0xff]
    %v2014 = vld [vmem:[%s3 + $0x1f8] sm:$0xff]
    %v2015 = vld [vmem:[%s4] sm:$0x3]
    %v2017 = vlaneseq
    %v2018 = vshrl.u32 %v2017, 7
    %v2019 = vsub.s32 0, %v2018
    %v2020 = vrot.slane %v2015, %v2019
    %v2021 = vlaneseq
    %v2022 = vshrl.u32 %v2021, 7
    %v2023 = vsub.s32 1, %v2022
    %v2024 = vrot.slane %v2015, %v2023
    %v2091 = vunpack.c.l.b16 %v1951
    %v2092 = vunpack.c.h.b16 %v1951
    %v2093 = vunpack.c.l.b16 %v1952
    %v2094 = vunpack.c.h.b16 %v1952
    %v2095 = vunpack.c.l.b16 %v1953
    %v2096 = vunpack.c.h.b16 %v1953
    %v2097 = vunpack.c.l.b16 %v1954
    %v2098 = vunpack.c.h.b16 %v1954
    %v2099 = vunpack.c.l.b16 %v1955
    %v2100 = vunpack.c.h.b16 %v1955
    %v2101 = vunpack.c.l.b16 %v1956
    %v2102 = vunpack.c.h.b16 %v1956
    %v2103 = vunpack.c.l.b16 %v1957
    %v2104 = vunpack.c.h.b16 %v1957
    %v2105 = vunpack.c.l.b16 %v1958
    %v2106 = vunpack.c.h.b16 %v1958
    %v2107 = vunpack.c.l.b16 %v1959
    %v2108 = vunpack.c.h.b16 %v1959
    %v2109 = vunpack.c.l.b16 %v1960
    %v2110 = vunpack.c.h.b16 %v1960
    %v2111 = vunpack.c.l.b16 %v1961
    %v2112 = vunpack.c.h.b16 %v1961
    %v2113 = vunpack.c.l.b16 %v1962
    %v2114 = vunpack.c.h.b16 %v1962
    %v2115 = vunpack.c.l.b16 %v1963
    %v2116 = vunpack.c.h.b16 %v1963
    %v2117 = vunpack.c.l.b16 %v1964
    %v2118 = vunpack.c.h.b16 %v1964
    %v2119 = vunpack.c.l.b16 %v1965
    %v2120 = vunpack.c.h.b16 %v1965
    %v2121 = vunpack.c.l.b16 %v1966
    %v2122 = vunpack.c.h.b16 %v1966
    %v2123 = vunpack.c.l.b16 %v1967
    %v2124 = vunpack.c.h.b16 %v1967
    %v2125 = vunpack.c.l.b16 %v1968
    %v2126 = vunpack.c.h.b16 %v1968
    %v2127 = vunpack.c.l.b16 %v1969
    %v2128 = vunpack.c.h.b16 %v1969
    %v2129 = vunpack.c.l.b16 %v1970
    %v2130 = vunpack.c.h.b16 %v1970
    %v2131 = vunpack.c.l.b16 %v1971
    %v2132 = vunpack.c.h.b16 %v1971
    %v2133 = vunpack.c.l.b16 %v1972
    %v2134 = vunpack.c.h.b16 %v1972
    %v2135 = vunpack.c.l.b16 %v1973
    %v2136 = vunpack.c.h.b16 %v1973
    %v2137 = vunpack.c.l.b16 %v1974
    %v2138 = vunpack.c.h.b16 %v1974
    %v2139 = vunpack.c.l.b16 %v1975
    %v2140 = vunpack.c.h.b16 %v1975
    %v2141 = vunpack.c.l.b16 %v1976
    %v2142 = vunpack.c.h.b16 %v1976
    %v2143 = vunpack.c.l.b16 %v1977
    %v2144 = vunpack.c.h.b16 %v1977
    %v2145 = vunpack.c.l.b16 %v1978
    %v2146 = vunpack.c.h.b16 %v1978
    %v2147 = vunpack.c.l.b16 %v1979
    %v2148 = vunpack.c.h.b16 %v1979
    %v2149 = vunpack.c.l.b16 %v1980
    %v2150 = vunpack.c.h.b16 %v1980
    %v2151 = vunpack.c.l.b16 %v1981
    %v2152 = vunpack.c.h.b16 %v1981
    %v2153 = vunpack.c.l.b16 %v1982
    %v2154 = vunpack.c.h.b16 %v1982
    %v2155 = vunpack.c.l.b16 %v1983
    %v2156 = vunpack.c.h.b16 %v1983
    %v2157 = vunpack.c.l.b16 %v1984
    %v2158 = vunpack.c.h.b16 %v1984
    %v2159 = vunpack.c.l.b16 %v1985
    %v2160 = vunpack.c.h.b16 %v1985
    %v2161 = vunpack.c.l.b16 %v1986
    %v2162 = vunpack.c.h.b16 %v1986
    %v2163 = vunpack.c.l.b16 %v1987
    %v2164 = vunpack.c.h.b16 %v1987
    %v2165 = vunpack.c.l.b16 %v1988
    %v2166 = vunpack.c.h.b16 %v1988
    %v2167 = vunpack.c.l.b16 %v1989
    %v2168 = vunpack.c.h.b16 %v1989
    %v2169 = vunpack.c.l.b16 %v1990
    %v2170 = vunpack.c.h.b16 %v1990
    %v2171 = vunpack.c.l.b16 %v1991
    %v2172 = vunpack.c.h.b16 %v1991
    %v2173 = vunpack.c.l.b16 %v1992
    %v2174 = vunpack.c.h.b16 %v1992
    %v2175 = vunpack.c.l.b16 %v1993
    %v2176 = vunpack.c.h.b16 %v1993
    %v2177 = vunpack.c.l.b16 %v1994
    %v2178 = vunpack.c.h.b16 %v1994
    %v2179 = vunpack.c.l.b16 %v1995
    %v2180 = vunpack.c.h.b16 %v1995
    %v2181 = vunpack.c.l.b16 %v1996
    %v2182 = vunpack.c.h.b16 %v1996
    %v2183 = vunpack.c.l.b16 %v1997
    %v2184 = vunpack.c.h.b16 %v1997
    %v2185 = vunpack.c.l.b16 %v1998
    %v2186 = vunpack.c.h.b16 %v1998
    %v2187 = vunpack.c.l.b16 %v1999
    %v2188 = vunpack.c.h.b16 %v1999
    %v2189 = vunpack.c.l.b16 %v2000
    %v2190 = vunpack.c.h.b16 %v2000
    %v2191 = vunpack.c.l.b16 %v2001
    %v2192 = vunpack.c.h.b16 %v2001
    %v2193 = vunpack.c.l.b16 %v2002
    %v2194 = vunpack.c.h.b16 %v2002
    %v2195 = vunpack.c.l.b16 %v2003
    %v2196 = vunpack.c.h.b16 %v2003
    %v2197 = vunpack.c.l.b16 %v2004
    %v2198 = vunpack.c.h.b16 %v2004
    %v2199 = vunpack.c.l.b16 %v2005
    %v2200 = vunpack.c.h.b16 %v2005
    %v2201 = vunpack.c.l.b16 %v2006
    %v2202 = vunpack.c.h.b16 %v2006
    %v2203 = vunpack.c.l.b16 %v2007
    %v2204 = vunpack.c.h.b16 %v2007
    %v2205 = vunpack.c.l.b16 %v2008
    %v2206 = vunpack.c.h.b16 %v2008
    %v2207 = vunpack.c.l.b16 %v2009
    %v2208 = vunpack.c.h.b16 %v2009
    %v2209 = vunpack.c.l.b16 %v2010
    %v2210 = vunpack.c.h.b16 %v2010
    %v2211 = vunpack.c.l.b16 %v2011
    %v2212 = vunpack.c.h.b16 %v2011
    %v2213 = vunpack.c.l.b16 %v2012
    %v2214 = vunpack.c.h.b16 %v2012
    %v2215 = vunpack.c.l.b16 %v2013
    %v2216 = vunpack.c.h.b16 %v2013
    %v2217 = vunpack.c.l.b16 %v2014
    %v2218 = vunpack.c.h.b16 %v2014
    %v2219 = vpack.c.b16 %v2093, %v2091
    %v2220 = vpack.c.b16 %v2094, %v2092
    %v2221 = vpack.c.b16 %v2097, %v2095
    %v2222 = vpack.c.b16 %v2098, %v2096
    %v2223 = vpack.c.b16 %v2101, %v2099
    %v2224 = vpack.c.b16 %v2102, %v2100
    %v2225 = vpack.c.b16 %v2105, %v2103
    %v2226 = vpack.c.b16 %v2106, %v2104
    %v2227 = vpack.c.b16 %v2109, %v2107
    %v2228 = vpack.c.b16 %v2110, %v2108
    %v2229 = vpack.c.b16 %v2113, %v2111
    %v2230 = vpack.c.b16 %v2114, %v2112
    %v2231 = vpack.c.b16 %v2117, %v2115
    %v2232 = vpack.c.b16 %v2118, %v2116
    %v2233 = vpack.c.b16 %v2121, %v2119
    %v2234 = vpack.c.b16 %v2122, %v2120
    %v2235 = vpack.c.b16 %v2125, %v2123
    %v2236 = vpack.c.b16 %v2126, %v2124
    %v2237 = vpack.c.b16 %v2129, %v2127
    %v2238 = vpack.c.b16 %v2130, %v2128
    %v2239 = vpack.c.b16 %v2133, %v2131
    %v2240 = vpack.c.b16 %v2134, %v2132
    %v2241 = vpack.c.b16 %v2137, %v2135
    %v2242 = vpack.c.b16 %v2138, %v2136
    %v2243 = vpack.c.b16 %v2141, %v2139
    %v2244 = vpack.c.b16 %v2142, %v2140
    %v2245 = vpack.c.b16 %v2145, %v2143
    %v2246 = vpack.c.b16 %v2146, %v2144
    %v2247 = vpack.c.b16 %v2149, %v2147
    %v2248 = vpack.c.b16 %v2150, %v2148
    %v2249 = vpack.c.b16 %v2153, %v2151
    %v2250 = vpack.c.b16 %v2154, %v2152
    %v2251 = vpack.c.b16 %v2157, %v2155
    %v2252 = vpack.c.b16 %v2158, %v2156
    %v2253 = vpack.c.b16 %v2161, %v2159
    %v2254 = vpack.c.b16 %v2162, %v2160
    %v2255 = vpack.c.b16 %v2165, %v2163
    %v2256 = vpack.c.b16 %v2166, %v2164
    %v2257 = vpack.c.b16 %v2169, %v2167
    %v2258 = vpack.c.b16 %v2170, %v2168
    %v2259 = vpack.c.b16 %v2173, %v2171
    %v2260 = vpack.c.b16 %v2174, %v2172
    %v2261 = vpack.c.b16 %v2177, %v2175
    %v2262 = vpack.c.b16 %v2178, %v2176
    %v2263 = vpack.c.b16 %v2181, %v2179
    %v2264 = vpack.c.b16 %v2182, %v2180
    %v2265 = vpack.c.b16 %v2185, %v2183
    %v2266 = vpack.c.b16 %v2186, %v2184
    %v2267 = vpack.c.b16 %v2189, %v2187
    %v2268 = vpack.c.b16 %v2190, %v2188
    %v2269 = vpack.c.b16 %v2193, %v2191
    %v2270 = vpack.c.b16 %v2194, %v2192
    %v2271 = vpack.c.b16 %v2197, %v2195
    %v2272 = vpack.c.b16 %v2198, %v2196
    %v2273 = vpack.c.b16 %v2201, %v2199
    %v2274 = vpack.c.b16 %v2202, %v2200
    %v2275 = vpack.c.b16 %v2205, %v2203
    %v2276 = vpack.c.b16 %v2206, %v2204
    %v2277 = vpack.c.b16 %v2209, %v2207
    %v2278 = vpack.c.b16 %v2210, %v2208
    %v2279 = vpack.c.b16 %v2213, %v2211
    %v2280 = vpack.c.b16 %v2214, %v2212
    %v2281 = vpack.c.b16 %v2217, %v2215
    %v2282 = vpack.c.b16 %v2218, %v2216
    %2347 = vmatprep.subr.bf16.mxu0 %v2220
    %2348 = vmatpush1.bf16.msra.mxu0 %v2219
    %2349 = vmatprep.subr.bf16.mxu0 %v2222
    %2350 = vmatpush1.bf16.msra.mxu0 %v2221
    %2351 = vmatprep.subr.bf16.mxu0 %v2224
    %2352 = vmatpush1.bf16.msra.mxu0 %v2223
    %2353 = vmatprep.subr.bf16.mxu0 %v2226
    %2354 = vmatpush1.bf16.msra.mxu0 %v2225
    %2355 = vmatprep.subr.bf16.mxu0 %v2228
    %2356 = vmatpush1.bf16.msra.mxu0 %v2227
    %2357 = vmatprep.subr.bf16.mxu0 %v2230
    %2358 = vmatpush1.bf16.msra.mxu0 %v2229
    %2359 = vmatprep.subr.bf16.mxu0 %v2232
    %2360 = vmatpush1.bf16.msra.mxu0 %v2231
    %2361 = vmatprep.subr.bf16.mxu0 %v2234
    %2362 = vmatpush1.bf16.msra.mxu0 %v2233
    %2363 = vmatprep.subr.bf16.mxu0 %v2236
    %2364 = vmatpush1.bf16.msra.mxu0 %v2235
    %2365 = vmatprep.subr.bf16.mxu0 %v2238
    %2366 = vmatpush1.bf16.msra.mxu0 %v2237
    %2367 = vmatprep.subr.bf16.mxu0 %v2240
    %2368 = vmatpush1.bf16.msra.mxu0 %v2239
    %2369 = vmatprep.subr.bf16.mxu0 %v2242
    %2370 = vmatpush1.bf16.msra.mxu0 %v2241
    %2371 = vmatprep.subr.bf16.mxu0 %v2244
    %2372 = vmatpush1.bf16.msra.mxu0 %v2243
    %2373 = vmatprep.subr.bf16.mxu0 %v2246
    %2374 = vmatpush1.bf16.msra.mxu0 %v2245
    %2375 = vmatprep.subr.bf16.mxu0 %v2248
    %2376 = vmatpush1.bf16.msra.mxu0 %v2247
    %2377 = vmatprep.subr.bf16.mxu0 %v2250
    %2378 = vmatpush1.bf16.msra.mxu0 %v2249
    %2379 = vmatprep.mubr.bf16.mxu0 %v1948
    %2380 = vmatmul.mubr.bf16.gmra.mrb[0].mxu0 %v1947
    %v2381 = vpop.f32.mrb[0].mxu0
    %v2382 = vadd.f32 %v2020, %v2381
    %v2383 = vpop.f32.mrb[0].mxu0
    %v2384 = vadd.f32 %v2024, %v2383
    %v2385 = vpop.f32.mrb[0].mxu0
    %v2386 = vpop.f32.mrb[0].mxu0
    %2387 = vdwg.mxu0
    %2388 = vmatprep.subr.bf16.mxu0 %v2252
    %2389 = vmatpush1.bf16.msra.mxu0 %v2251
    %2390 = vmatprep.subr.bf16.mxu0 %v2254
    %2391 = vmatpush1.bf16.msra.mxu0 %v2253
    %2392 = vmatprep.subr.bf16.mxu0 %v2256
    %2393 = vmatpush1.bf16.msra.mxu0 %v2255
    %2394 = vmatprep.subr.bf16.mxu0 %v2258
    %2395 = vmatpush1.bf16.msra.mxu0 %v2257
    %2396 = vmatprep.subr.bf16.mxu0 %v2260
    %2397 = vmatpush1.bf16.msra.mxu0 %v2259
    %2398 = vmatprep.subr.bf16.mxu0 %v2262
    %2399 = vmatpush1.bf16.msra.mxu0 %v2261
    %2400 = vmatprep.subr.bf16.mxu0 %v2264
    %2401 = vmatpush1.bf16.msra.mxu0 %v2263
    %2402 = vmatprep.subr.bf16.mxu0 %v2266
    %2403 = vmatpush1.bf16.msra.mxu0 %v2265
    %2404 = vmatprep.subr.bf16.mxu0 %v2268
    %2405 = vmatpush1.bf16.msra.mxu0 %v2267
    %2406 = vmatprep.subr.bf16.mxu0 %v2270
    %2407 = vmatpush1.bf16.msra.mxu0 %v2269
    %2408 = vmatprep.subr.bf16.mxu0 %v2272
    %2409 = vmatpush1.bf16.msra.mxu0 %v2271
    %2410 = vmatprep.subr.bf16.mxu0 %v2274
    %2411 = vmatpush1.bf16.msra.mxu0 %v2273
    %2412 = vmatprep.subr.bf16.mxu0 %v2276
    %2413 = vmatpush1.bf16.msra.mxu0 %v2275
    %2414 = vmatprep.subr.bf16.mxu0 %v2278
    %2415 = vmatpush1.bf16.msra.mxu0 %v2277
    %2416 = vmatprep.subr.bf16.mxu0 %v2280
    %2417 = vmatpush1.bf16.msra.mxu0 %v2279
    %2418 = vmatprep.subr.bf16.mxu0 %v2282
    %2419 = vmatpush1.bf16.msra.mxu0 %v2281
    %2420 = vmatprep.mubr.bf16.mxu0 %v1950
    %2421 = vmatmul.mubr.bf16.gmra.mrb[0].mxu0 %v1949
    %v2422 = vpop.f32.mrb[0].mxu0
    %v2423 = vadd.f32 %v2382, %v2422
    %v2424 = vpop.f32.mrb[0].mxu0
    %v2425 = vadd.f32 %v2384, %v2424
    %v2426 = vpop.f32.mrb[0].mxu0
    %v2427 = vpop.f32.mrb[0].mxu0
    %2428 = vdwg.mxu0
    %v2429 = vmax.f32 %v2423, 0.0
    %v2430 = vmax.f32 %v2425, 0.0
    %v2431 = vpack.c.bf16 %v2429, %v2429
    %v2432 = vpack.c.bf16 %v2430, %v2430
    %v2433 = vld [vmem:[%s5] sm:$0xf]
    %v2434 = vld [vmem:[%s5 + $0x4] sm:$0xf]
    %v2435 = vld [vmem:[%s5 + $0x8] sm:$0xf]
    %v2436 = vld [vmem:[%s5 + $0xc] sm:$0xf]
    %v2437 = vld [vmem:[%s5 + $0x10] sm:$0xf]
    %v2438 = vld [vmem:[%s5 + $0x14] sm:$0xf]
    %v2439 = vld [vmem:[%s5 + $0x18] sm:$0xf]
    %v2440 = vld [vmem:[%s5 + $0x1c] sm:$0xf]
    %v2441 = vld [vmem:[%s5 + $0x20] sm:$0xf]
    %v2442 = vld [vmem:[%s5 + $0x24] sm:$0xf]
    %v2443 = vld [vmem:[%s5 + $0x28] sm:$0xf]
    %v2444 = vld [vmem:[%s5 + $0x2c] sm:$0xf]
    %v2445 = vld [vmem:[%s5 + $0x30] sm:$0xf]
    %v2446 = vld [vmem:[%s5 + $0x34] sm:$0xf]
    %v2447 = vld [vmem:[%s5 + $0x38] sm:$0xf]
    %v2448 = vld [vmem:[%s5 + $0x3c] sm:$0xf]
    %v2449 = vld [vmem:[%s5 + $0x40] sm:$0xf]
    %v2450 = vld [vmem:[%s5 + $0x44] sm:$0xf]
    %v2451 = vld [vmem:[%s5 + $0x48] sm:$0xf]
    %v2452 = vld [vmem:[%s5 + $0x4c] sm:$0xf]
    %v2453 = vld [vmem:[%s5 + $0x50] sm:$0xf]
    %v2454 = vld [vmem:[%s5 + $0x54] sm:$0xf]
    %v2455 = vld [vmem:[%s5 + $0x58] sm:$0xf]
    %v2456 = vld [vmem:[%s5 + $0x5c] sm:$0xf]
    %v2457 = vld [vmem:[%s5 + $0x60] sm:$0xf]
    %v2458 = vld [vmem:[%s5 + $0x64] sm:$0xf]
    %v2459 = vld [vmem:[%s5 + $0x68] sm:$0xf]
    %v2460 = vld [vmem:[%s5 + $0x6c] sm:$0xf]
    %v2461 = vld [vmem:[%s5 + $0x70] sm:$0xf]
    %v2462 = vld [vmem:[%s5 + $0x74] sm:$0xf]
    %v2463 = vld [vmem:[%s5 + $0x78] sm:$0xf]
    %v2464 = vld [vmem:[%s5 + $0x7c] sm:$0xf]
    %v2465 = vld [vmem:[%s6] sm:$0x1]
    %v2467 = vlaneseq
    %v2468 = vshrl.u32 %v2467, 7
    %v2469 = vsub.s32 0, %v2468
    %v2470 = vrot.slane %v2465, %v2469
    %v2504 = vunpack.c.l.b16 %v2433
    %v2505 = vunpack.c.l.b16 %v2434
    %v2506 = vunpack.c.l.b16 %v2435
    %v2507 = vunpack.c.l.b16 %v2436
    %v2508 = vunpack.c.l.b16 %v2437
    %v2509 = vunpack.c.l.b16 %v2438
    %v2510 = vunpack.c.l.b16 %v2439
    %v2511 = vunpack.c.l.b16 %v2440
    %v2512 = vunpack.c.l.b16 %v2441
    %v2513 = vunpack.c.l.b16 %v2442
    %v2514 = vunpack.c.l.b16 %v2443
    %v2515 = vunpack.c.l.b16 %v2444
    %v2516 = vunpack.c.l.b16 %v2445
    %v2517 = vunpack.c.l.b16 %v2446
    %v2518 = vunpack.c.l.b16 %v2447
    %v2519 = vunpack.c.l.b16 %v2448
    %v2520 = vunpack.c.l.b16 %v2449
    %v2521 = vunpack.c.l.b16 %v2450
    %v2522 = vunpack.c.l.b16 %v2451
    %v2523 = vunpack.c.l.b16 %v2452
    %v2524 = vunpack.c.l.b16 %v2453
    %v2525 = vunpack.c.l.b16 %v2454
    %v2526 = vunpack.c.l.b16 %v2455
    %v2527 = vunpack.c.l.b16 %v2456
    %v2528 = vunpack.c.l.b16 %v2457
    %v2529 = vunpack.c.l.b16 %v2458
    %v2530 = vunpack.c.l.b16 %v2459
    %v2531 = vunpack.c.l.b16 %v2460
    %v2532 = vunpack.c.l.b16 %v2461
    %v2533 = vunpack.c.l.b16 %v2462
    %v2534 = vunpack.c.l.b16 %v2463
    %v2535 = vunpack.c.l.b16 %v2464
    %v2536 = vpack.c.b16 %v2505, %v2504
    %v2537 = vpack.c.b16 %v2507, %v2506
    %v2538 = vpack.c.b16 %v2509, %v2508
    %v2539 = vpack.c.b16 %v2511, %v2510
    %v2540 = vpack.c.b16 %v2513, %v2512
    %v2541 = vpack.c.b16 %v2515, %v2514
    %v2542 = vpack.c.b16 %v2517, %v2516
    %v2543 = vpack.c.b16 %v2519, %v2518
    %v2544 = vpack.c.b16 %v2521, %v2520
    %v2545 = vpack.c.b16 %v2523, %v2522
    %v2546 = vpack.c.b16 %v2525, %v2524
    %v2547 = vpack.c.b16 %v2527, %v2526
    %v2548 = vpack.c.b16 %v2529, %v2528
    %v2549 = vpack.c.b16 %v2531, %v2530
    %v2550 = vpack.c.b16 %v2533, %v2532
    %v2551 = vpack.c.b16 %v2535, %v2534
    %2568 = vmatprep.subr.bf16.mxu0 0
    %2569 = vmatpush1.bf16.msra.mxu0 %v2536
    %2570 = vmatprep.subr.bf16.mxu0 0
    %2571 = vmatpush1.bf16.msra.mxu0 %v2537
    %2572 = vmatprep.subr.bf16.mxu0 0
    %2573 = vmatpush1.bf16.msra.mxu0 %v2538
    %2574 = vmatprep.subr.bf16.mxu0 0
    %2575 = vmatpush1.bf16.msra.mxu0 %v2539
    %2576 = vmatprep.subr.bf16.mxu0 0
    %2577 = vmatpush1.bf16.msra.mxu0 %v2540
    %2578 = vmatprep.subr.bf16.mxu0 0
    %2579 = vmatpush1.bf16.msra.mxu0 %v2541
    %2580 = vmatprep.subr.bf16.mxu0 0
    %2581 = vmatpush1.bf16.msra.mxu0 %v2542
    %2582 = vmatprep.subr.bf16.mxu0 0
    %2583 = vmatpush1.bf16.msra.mxu0 %v2543
    %2584 = vmatprep.subr.bf16.mxu0 0
    %2585 = vmatpush1.bf16.msra.mxu0 %v2544
    %2586 = vmatprep.subr.bf16.mxu0 0
    %2587 = vmatpush1.bf16.msra.mxu0 %v2545
    %2588 = vmatprep.subr.bf16.mxu0 0
    %2589 = vmatpush1.bf16.msra.mxu0 %v2546
    %2590 = vmatprep.subr.bf16.mxu0 0
    %2591 = vmatpush1.bf16.msra.mxu0 %v2547
    %2592 = vmatprep.subr.bf16.mxu0 0
    %2593 = vmatpush1.bf16.msra.mxu0 %v2548
    %2594 = vmatprep.subr.bf16.mxu0 0
    %2595 = vmatpush1.bf16.msra.mxu0 %v2549
    %2596 = vmatprep.subr.bf16.mxu0 0
    %2597 = vmatpush1.bf16.msra.mxu0 %v2550
    %2598 = vmatprep.subr.bf16.mxu0 0
    %2599 = vmatpush1.bf16.msra.mxu0 %v2551
    %2600 = vmatprep.mubr.bf16.mxu0 %v2432
    %2601 = vmatmul.mubr.bf16.gmra.mrb[0].mxu0 %v2431
    %v2602 = vpop.f32.mrb[0].mxu0
    %v2603 = vadd.f32 %v2470, %v2602
    %v2604 = vpop.f32.mrb[0].mxu0
    %v2605 = vpop.f32.mrb[0].mxu0
    %v2606 = vpop.f32.mrb[0].mxu0
    %2607 = vdwg.mxu0
    %2608 = vst [vmem:[%s7] sm:$0xff] %v2603
    // Predicated region
    $region34: #{stn3d_forward.3} parent=1 // pred_check
      _
    $region35: #{stn3d_forward.3} parent=1 // pred_check_branch
      %2610 = sbr.rel (0) target = $region37
    $region36: #{stn3d_forward.3} parent=1 // pred_region
      _
    $region37: #{stn3d_forward.3} parent=1 // pred_fallthru
      _
    // Predicated region
    $region38: #{stn3d_forward.3} parent=1 // pred_check
      _
    $region39: #{stn3d_forward.3} parent=1 // pred_check_branch
      %2612 = sbr.rel (0) target = $region41
    $region40: #{stn3d_forward.3} parent=1 // pred_region
      _
    $region41: #{stn3d_forward.3} parent=1 // pred_fallthru
      _
    %2613 = vsyncpa [#allocation3], 1

</llo_original>
